<compile_context>
chip_gen: v5e
topology: v5e:2x2
jax: 0.10.0
libtpu: 0.0.40
codegen_flags: <defaults>
</compile_context>

<pallas_src>
import functools

import jax
import jax.numpy as jnp
from jax.experimental import pallas as pl
from jax.experimental.pallas import tpu as pltpu

_ADAIN_EPS = 1e-5


# ----------------------------------------------------------------------------
# Device-aware tuning knobs
# ----------------------------------------------------------------------------

def _device_kind():
    try:
        return jax.devices()[0].device_kind.lower()
    except Exception:
        return ""


def _vmem_limit_bytes():
    # v5e/v6e: 128 MiB physical VMEM -> raise the 32 MiB scoped default to ~96 MiB.
    # v7x: only 64 MiB physical -> stay at 48 MiB.
    try:
        cap = int(pltpu.get_tpu_info().vmem_capacity_bytes)
        return min(cap * 3 // 4, 100 * 1024 * 1024)
    except Exception:
        pass
    return (48 if "v7" in _device_kind() else 96) * 1024 * 1024


_VMEM_LIMIT = _vmem_limit_bytes()
# v5-class MXU is 4x128x128: tn=256 gives no MXU benefit but doubles the live
# fp32 accumulator -> prefer tn=128 there.
_PREFER_TN128 = "v5" in _device_kind()


def _cout_tile(cout):
    if cout <= 128:
        return cout                       # native (full) channel dim -> legal block
    if cout % 256 == 0 and not _PREFER_TN128:
        return 256
    assert cout % 128 == 0, cout
    return 128


def _h_tile(h, w, tn, target=32):
    """Largest row tile <= target dividing h with a modest fp32 accumulator."""
    t = min(h, target)
    while t > 1 and (h % t != 0 or t * w * tn * 4 > (4 << 20)):
        t -= 1
    return t


def _m_tile(m, target=512):
    if m <= target:
        return m
    for t in range(target - target % 8, 7, -8):
        if m % t == 0:
            return t
    return m  # awkward M: single resident block (only hit for tiny/odd maps)


# ----------------------------------------------------------------------------
# Pallas kernels
# ----------------------------------------------------------------------------

def _conv_tap_kernel(x_ref, w_ref, b_ref, o_ref, *, ksize, relu):
    """Fused reflection-padded conv: k*k shifted bf16 matmuls into an fp32 acc.

    x_ref: (Hp, Wp, Cin)   whole padded image for this batch item (resident).
    w_ref: (k*k, Cin, tn)  weight slab for this Cout tile (resident across row tiles).
    b_ref: (1, tn)         fp32 bias.
    o_ref: (th, W, tn)     bf16 output tile, rows [ii*th, ii*th + th).
    """
    th, wout, tn = o_ref.shape
    cin = x_ref.shape[-1]
    row0 = pl.program_id(2) * th          # row-tile axis is the innermost grid axis
    acc = jnp.zeros((th * wout, tn), jnp.float32)
    # TODO(synk): fold the dx taps into the contraction (3 dots of K=3*Cin) and use
    # v7x MRB in-place accumulation to cut the per-tap VALU adds / VMEM copies.
    for dy in range(ksize):
        for dx in range(ksize):
            xs = x_ref[pl.ds(row0 + dy, th), pl.ds(dx, wout), :]   # (th, W, Cin)
            xs = xs.reshape(th * wout, cin)                         # W % 8 == 0 here
            acc = acc + jnp.dot(xs, w_ref[dy * ksize + dx],
                                preferred_element_type=jnp.float32)
    y = acc + b_ref[...]
    if relu:
        y = jnp.maximum(y, 0.0)
    o_ref[...] = y.reshape(th, wout, tn).astype(o_ref.dtype)


def _matmul_bias_kernel(x_ref, w_ref, b_ref, o_ref, *, relu):
    """Folded-taps fallback: (tm, K) @ (K, tn) + bias (+ReLU), fp32 acc."""
    y = jnp.dot(x_ref[...], w_ref[...], preferred_element_type=jnp.float32)
    y = y + b_ref[...]
    if relu:
        y = jnp.maximum(y, 0.0)
    o_ref[...] = y.astype(o_ref.dtype)


# ----------------------------------------------------------------------------
# Kernel wrappers
# ----------------------------------------------------------------------------

def conv_fused(x, w, b, *, ksize, relu):
    """x: (B,H,W,Cin) bf16.  w: (k*k,Cin,Cout) or per-batch (B,k*k,Cin,Cout) bf16.
    b: (1,Cout) or per-batch (B,1,Cout) f32."""
    B, H, W, Cin = x.shape
    per_batch = (w.ndim == 4)
    kk = w.shape[1] if per_batch else w.shape[0]
    Cout = w.shape[-1]
    pad = (ksize - 1) // 2
    xp = jnp.pad(x, ((0, 0), (pad, pad), (pad, pad), (0, 0)), mode="reflect") if pad else x
    Hp, Wp = H + 2 * pad, W + 2 * pad
    tn = _cout_tile(Cout)
    th = _h_tile(H, W, tn)
    # Grid (batch, cout-tile, row-tile): the weight block index depends only on the
    # cout-tile axis, so it is DMA'd once per (batch, cout-tile) and stays resident
    # across all row tiles (innermost axis) -- no re-streaming of the weight slab.
    grid = (B, Cout // tn, H // th)
    if per_batch:
        w_spec = pl.BlockSpec((pl.Squeezed(), kk, Cin, tn),
                              lambda bb, jj, ii: (bb, 0, 0, jj))
        b_spec = pl.BlockSpec((pl.Squeezed(), 1, tn), lambda bb, jj, ii: (bb, 0, jj))
    else:
        w_spec = pl.BlockSpec((kk, Cin, tn), lambda bb, jj, ii: (0, 0, jj))
        b_spec = pl.BlockSpec((1, tn), lambda bb, jj, ii: (0, jj))
    return pl.pallas_call(
        functools.partial(_conv_tap_kernel, ksize=ksize, relu=relu),
        out_shape=jax.ShapeDtypeStruct((B, H, W, Cout), jnp.bfloat16),
        grid=grid,
        in_specs=[
            # Whole padded image per batch item; constant across (jj, ii) -> resident.
            # TODO(synk): halo row-band tiling of x (manual DMA) for very large
            # H*W*Cin so the resident image never exceeds v7x's 64 MiB VMEM.
            pl.BlockSpec((pl.Squeezed(), Hp, Wp, Cin), lambda bb, jj, ii: (bb, 0, 0, 0)),
            w_spec,
            b_spec,
        ],
        out_specs=pl.BlockSpec((pl.Squeezed(), th, W, tn),
                               lambda bb, jj, ii: (bb, ii, 0, jj)),
        compiler_params=pltpu.CompilerParams(
            dimension_semantics=("parallel", "parallel", "parallel"),
            vmem_limit_bytes=_VMEM_LIMIT,
        ),
    )(xp, w, b)


def im2col_3x3_reflect(x):
    """x: (B,H,W,C) -> (B, H*W, 9*C) with ReflectionPad2d((1,1,1,1))."""
    B, H, W, C = x.shape
    xp = jnp.pad(x, ((0, 0), (1, 1), (1, 1), (0, 0)), mode="reflect")
    cols = [xp[:, dy:dy + H, dx:dx + W, :] for dy in range(3) for dx in range(3)]
    return jnp.concatenate(cols, axis=-1).reshape(B, H * W, 9 * C)


def conv_matmul(x, w, b, *, ksize, relu):
    """Fallback: tiny spatial maps (W % 8 != 0) or tiny Cin (stem).  Taps are folded
    into the contraction (K = k*k*Cin, e.g. 27 for the 3->64 conv) -> one matmul."""
    B, H, W, Cin = x.shape
    per_batch = (w.ndim == 4)
    kk = ksize * ksize
    Cout = w.shape[-1]
    col = im2col_3x3_reflect(x) if ksize == 3 else x.reshape(B, H * W, Cin)
    M, K = H * W, col.shape[-1]
    w2 = w.reshape(B, kk * Cin, Cout) if per_batch else w.reshape(kk * Cin, Cout)
    tn = _cout_tile(Cout)
    tm = _m_tile(M)
    grid = (B, Cout // tn, M // tm)       # row tiles innermost -> weights resident
    if per_batch:
        w_spec = pl.BlockSpec((pl.Squeezed(), K, tn), lambda bb, jj, ii: (bb, 0, jj))
        b_spec = pl.BlockSpec((pl.Squeezed(), 1, tn), lambda bb, jj, ii: (bb, 0, jj))
    else:
        w_spec = pl.BlockSpec((K, tn), lambda bb, jj, ii: (0, jj))
        b_spec = pl.BlockSpec((1, tn), lambda bb, jj, ii: (0, jj))
    out = pl.pallas_call(
        functools.partial(_matmul_bias_kernel, relu=relu),
        out_shape=jax.ShapeDtypeStruct((B, M, Cout), jnp.bfloat16),
        grid=grid,
        in_specs=[
            pl.BlockSpec((pl.Squeezed(), tm, K), lambda bb, jj, ii: (bb, ii, 0)),
            w_spec,
            b_spec,
        ],
        out_specs=pl.BlockSpec((pl.Squeezed(), tm, tn), lambda bb, jj, ii: (bb, ii, jj)),
        compiler_params=pltpu.CompilerParams(
            dimension_semantics=("parallel", "parallel", "parallel"),
            vmem_limit_bytes=_VMEM_LIMIT,
        ),
    )(col, w2, b)
    return out.reshape(B, H, W, Cout)


def conv_layer(x, w, b, *, ksize, relu):
    if ksize == 3 and x.shape[2] % 8 == 0 and x.shape[-1] >= 8:
        return conv_fused(x, w, b, ksize=ksize, relu=relu)
    return conv_matmul(x, w, b, ksize=ksize, relu=relu)


def adain_fold_conv_params(cf, sf, w, b, alpha, eps=_ADAIN_EPS):
    """Fold the AdaIN affine (alpha-blended moment matching) into the weights/bias
    of the conv that consumes it: conv(adain(cf, sf)) == conv_folded(cf).
    Exact, because reflection padding commutes with a per-channel affine."""
    c32 = cf.astype(jnp.float32)
    s32 = sf.astype(jnp.float32)
    cm = c32.mean(axis=(1, 2)); cv = c32.var(axis=(1, 2))     # (B, C)
    sm = s32.mean(axis=(1, 2)); sv = s32.var(axis=(1, 2))
    k = jnp.sqrt((sv + eps) / (cv + eps))
    scale = alpha * k + (1.0 - alpha)                          # (B, C)
    shift = alpha * (sm - cm * k)                              # (B, C)
    w32 = w.astype(jnp.float32)                                # (kk, Cin, Cout)
    wf = (w32[None] * scale[:, None, :, None]).astype(jnp.bfloat16)   # (B,kk,Cin,Cout)
    bf = b[None] + jnp.einsum("bc,kcn->bn", shift, w32)[:, None, :]   # (B,1,Cout) f32
    return wf, bf


# ----------------------------------------------------------------------------
# Cheap JAX glue
# ----------------------------------------------------------------------------

def maxpool2x2(x):
    B, H, W, C = x.shape
    # MaxPool2d((2,2),(2,2)) ceil_mode=True; spatial sizes here are even, so ceil==floor.
    assert H % 2 == 0 and W % 2 == 0, "odd spatial size: ceil_mode pool path not implemented"
    return x.reshape(B, H // 2, 2, W // 2, 2, C).max(axis=(2, 4))


def upsample2x(x):
    # TODO(synk): fuse nearest-upsample (and encoder maxpool) into the adjacent
    # conv's VMEM load/epilogue instead of a full HBM round trip of the 4x tensor.
    return jnp.repeat(jnp.repeat(x, 2, axis=1), 2, axis=2)


# ----------------------------------------------------------------------------
# Network definitions (VGG-normalised encoders / feature-invertor decoders)
# ----------------------------------------------------------------------------

ENC_OPS_FULL = [
    ("c1", 3, 3, False),
    ("c3", 3, 64, True),
    ("c3", 64, 64, True),
    ("pool",),
    ("c3", 64, 128, True),
    ("c3", 128, 128, True),
    ("pool",),
    ("c3", 128, 256, True),
    ("c3", 256, 256, True),
    ("c3", 256, 256, True),
    ("c3", 256, 256, True),
    ("pool",),
    ("c3", 256, 512, True),
]
# op-count prefixes matching vgg_normalised_conv5_1[:4], [:11], [:18], [:31]
ENC_PREFIX = {1: 2, 2: 5, 3: 8, 4: 13}

DEC_OPS = {
    4: [("c3", 512, 256, True), ("up",),
        ("c3", 256, 256, True), ("c3", 256, 256, True), ("c3", 256, 256, True),
        ("c3", 256, 128, True), ("up",),
        ("c3", 128, 128, True), ("c3", 128, 64, True), ("up",),
        ("c3", 64, 64, True), ("c3", 64, 3, False)],
    3: [("c3", 256, 128, True), ("up",),
        ("c3", 128, 128, True), ("c3", 128, 64, True), ("up",),
        ("c3", 64, 64, True), ("c3", 64, 3, False)],
    2: [("c3", 128, 64, True), ("up",),
        ("c3", 64, 64, True), ("c3", 64, 3, False)],
    1: [("c3", 64, 3, False)],
}


def init_conv_params(key, ops):
    """He-normal synthetic weights at NATIVE channel counts (bf16 weights, f32 bias)."""
    params = []
    i = 0
    for op in ops:
        if op[0] in ("c1", "c3"):
            _, cin, cout, _ = op
            k = 3 if op[0] == "c3" else 1
            sub = jax.random.fold_in(key, i)
            i += 1
            std = (2.0 / (k * k * cin)) ** 0.5
            w = std * jax.random.normal(sub, (k * k, cin, cout), jnp.float32)
            b = jnp.zeros((1, cout), jnp.float32)
            params.append((w.astype(jnp.bfloat16), b))
    return params


def run_net(x, ops, params, capture=None):
    """Run a conv/pool/upsample op list on NHWC bf16 input x."""
    feats = {}
    pi = 0
    for oi, op in enumerate(ops):
        kind = op[0]
        if kind in ("c1", "c3"):
            w, b = params[pi]
            pi += 1
            x = conv_layer(x, w, b, ksize=3 if kind == "c3" else 1, relu=op[3])
        elif kind == "pool":
            x = maxpool2x2(x)
        elif kind == "up":
            x = upsample2x(x)
        if capture is not None and (oi + 1) in capture:
            feats[oi + 1] = x
    if capture is not None:
        return x, feats
    return x


def _to_nhwc_bf16(img_nchw):
    return jnp.transpose(img_nchw, (0, 2, 3, 1)).astype(jnp.bfloat16)


def multilevel_forward(content_nchw, style_nchw, enc_params, dec_params, alpha):
    """MultiLevelNetwork.forward (additional_style_flag=False path)."""
    c = _to_nhwc_bf16(content_nchw)
    s = _to_nhwc_bf16(style_nchw)
    # Encode the style image ONCE through the depth-4 trunk; cache depth-1..4
    # features (pure algorithmic saving: halves encoder matmuls, no math change).
    _, style_feats = run_net(s, ENC_OPS_FULL[:ENC_PREFIX[4]], enc_params,
                             capture=set(ENC_PREFIX.values()))
    for depth in (4, 3, 2, 1):
        n_ops = ENC_PREFIX[depth]
        ops = ENC_OPS_FULL[:n_ops]
        nconv = sum(1 for o in ops if o[0] in ("c1", "c3"))
        cf = run_net(c, ops, enc_params[:nconv])     # content re-encoded each level
        sf = style_feats[n_ops]
        # AdaIN folded into the first decoder conv: no standalone affine pass / no
        # extra HBM round trip of the level-L feature map.
        w0, b0 = dec_params[depth][0]
        op0 = DEC_OPS[depth][0]
        wf, bf = adain_fold_conv_params(cf, sf, w0, b0, alpha)
        x = conv_layer(cf, wf, bf, ksize=3, relu=op0[3])
        c = run_net(x, DEC_OPS[depth][1:], dec_params[depth][1:])
    return jnp.transpose(c, (0, 3, 1, 2)).astype(jnp.float32)   # NCHW f32


# ----------------------------------------------------------------------------
# Reference conv / AdaIN (numerical self-check of the Pallas kernels)
# ----------------------------------------------------------------------------

def _conv_ref(x, w, b, ksize, relu):
    xf = x.astype(jnp.float32)
    pad = (ksize - 1) // 2
    xp = jnp.pad(xf, ((0, 0), (pad, pad), (pad, pad), (0, 0)), mode="reflect") if pad else xf
    B, H, W, _ = x.shape
    cout = w.shape[-1]
    y = jnp.zeros((B, H, W, cout), jnp.float32)
    for dy in range(ksize):
        for dx in range(ksize):
            y = y + jnp.einsum("bhwc,cn->bhwn", xp[:, dy:dy + H, dx:dx + W, :],
                               w[dy * ksize + dx].astype(jnp.float32))
    y = y + b
    return jnp.maximum(y, 0.0) if relu else y


def _adain_ref(cf, sf, alpha, eps=_ADAIN_EPS):
    c32 = cf.astype(jnp.float32)
    s32 = sf.astype(jnp.float32)
    cm = c32.mean(axis=(1, 2), keepdims=True); cv = c32.var(axis=(1, 2), keepdims=True)
    sm = s32.mean(axis=(1, 2), keepdims=True); sv = s32.var(axis=(1, 2), keepdims=True)
    k = jnp.sqrt((sv + eps) / (cv + eps))
    return alpha * ((c32 - cm) * k + sm) + (1.0 - alpha) * c32


# ----------------------------------------------------------------------------
# Main
# ----------------------------------------------------------------------------

if __name__ == "__main__":
    key = jax.random.PRNGKey(0)
    (k_content, k_style, k_enc, k_d4, k_d3, k_d2, k_d1,
     k_t1, k_t2, k_t3, k_t4) = jax.random.split(key, 11)

    # batch=2, channels=3, spatial=16x16 (NCHW content/style)
    content = jax.random.uniform(k_content, (2, 3, 16, 16), jnp.float32)
    style = jax.random.uniform(k_style, (2, 3, 16, 16), jnp.float32)

    # Synthetic deterministic parameters (encoders e1..e4 share the VGG trunk).
    enc_params = init_conv_params(k_enc, ENC_OPS_FULL)
    dec_params = {
        4: init_conv_params(k_d4, DEC_OPS[4]),
        3: init_conv_params(k_d3, DEC_OPS[3]),
        2: init_conv_params(k_d2, DEC_OPS[2]),
        1: init_conv_params(k_d1, DEC_OPS[1]),
    }

    # --- numerical self-checks (bf16 tolerance) -------------------------------
    # 1) main (tap-accumulation) conv path, native 64 channels
    xt = jax.random.normal(k_t1, (2, 16, 16, 64), jnp.float32).astype(jnp.bfloat16)
    wt, bt = enc_params[2]                       # 64->64 conv
    got = conv_layer(xt, wt, bt, ksize=3, relu=True).astype(jnp.float32)
    want = _conv_ref(xt, wt, bt, 3, True)
    assert bool(jnp.allclose(got, want, rtol=5e-2, atol=5e-2)), "fused conv mismatch"

    # 2) folded-taps fallback path (tiny 4x4 map, 256 channels)
    xt2 = jax.random.normal(k_t2, (2, 4, 4, 256), jnp.float32).astype(jnp.bfloat16)
    wt2, bt2 = dec_params[4][1]                  # 256->256 conv
    got2 = conv_layer(xt2, wt2, bt2, ksize=3, relu=True).astype(jnp.float32)
    want2 = _conv_ref(xt2, wt2, bt2, 3, True)
    assert bool(jnp.allclose(got2, want2, rtol=5e-2, atol=5e-2)), "fallback conv mismatch"

    # 3) AdaIN fused into the conv via weight/bias folding (per-batch weights)
    cf = jax.random.normal(k_t3, (2, 8, 8, 64), jnp.float32).astype(jnp.bfloat16)
    sf = jax.random.normal(k_t4, (2, 8, 8, 64), jnp.float32).astype(jnp.bfloat16)
    wf, bfold = adain_fold_conv_params(cf, sf, wt, bt, 0.5)
    got3 = conv_layer(cf, wf, bfold, ksize=3, relu=True).astype(jnp.float32)
    want3 = _conv_ref(_adain_ref(cf, sf, 0.5), wt, bt, 3, True)
    assert bool(jnp.allclose(got3, want3, rtol=5e-2, atol=5e-2)), "fused adain-conv mismatch"

    # --- full multi-level forward ---------------------------------------------
    alpha = 0.5  # module default; beta=0 path (no second style image)
    fwd = jax.jit(functools.partial(multilevel_forward, alpha=alpha))
    out = jax.block_until_ready(fwd(content, style, enc_params, dec_params))

    assert out.shape == (2, 3, 16, 16), out.shape
    assert bool(jnp.all(jnp.isfinite(out)))
    print("KERNEL_OK")
</pallas_src>

<mosaic_0001>
module attributes {stable_mosaic.version = 11 : i64} {
  func.func @_conv_tap_kernel(%arg0: i32, %arg1: i32, %arg2: i32, %arg3: memref<1x18x18x64xbf16, #tpu.memory_space<vmem>>, %arg4: memref<9x64x64xbf16, #tpu.memory_space<vmem>>, %arg5: memref<1x64xf32, #tpu.memory_space<vmem>>, %arg6: memref<1x16x16x64xbf16, #tpu.memory_space<vmem>>) attributes {dimension_semantics = [#tpu.dimension_semantics<parallel>, #tpu.dimension_semantics<parallel>, #tpu.dimension_semantics<parallel>], iteration_bounds = array<i64: 2, 1, 1>, scalar_prefetch = 0 : i64, scratch_operands = 0 : i64, tpu.core_type = #tpu.core_type<tc>, window_params = [{transform_indices = @transform_0, window_bounds = array<i64: 1, 18, 18, 64>}, {transform_indices = @transform_1, window_bounds = array<i64: 9, 64, 64>}, {transform_indices = @transform_2, window_bounds = array<i64: 1, 64>}, {transform_indices = @transform_3, window_bounds = array<i64: 1, 16, 16, 64>}]} {
    %c16_i32 = arith.constant 16 : i32
    %0 = arith.muli %arg2, %c16_i32 : i32
    %cst = arith.constant 0.000000e+00 : f32
    %1 = vector.broadcast %cst : f32 to vector<256x64xf32>
    %c0_i32 = arith.constant 0 : i32
    %2 = arith.addi %0, %c0_i32 : i32
    %c0 = arith.constant 0 : index
    %3 = arith.index_cast %2 : i32 to index
    %c0_0 = arith.constant 0 : index
    %c0_1 = arith.constant 0 : index
    %4 = vector.load %arg3[%c0, %3, %c0_0, %c0_1] : memref<1x18x18x64xbf16, #tpu.memory_space<vmem>>, vector<1x16x16x64xbf16>
    %5 = vector.shape_cast %4 : vector<1x16x16x64xbf16> to vector<16x16x64xbf16>
    %6 = vector.shape_cast %5 : vector<16x16x64xbf16> to vector<256x64xbf16>
    %c0_2 = arith.constant 0 : index
    %c0_3 = arith.constant 0 : index
    %c0_4 = arith.constant 0 : index
    %7 = vector.load %arg4[%c0_2, %c0_3, %c0_4] : memref<9x64x64xbf16, #tpu.memory_space<vmem>>, vector<1x64x64xbf16>
    %8 = vector.shape_cast %7 : vector<1x64x64xbf16> to vector<64x64xbf16>
    %cst_5 = arith.constant dense<0.000000e+00> : vector<256x64xf32>
    %9 = tpu.matmul %6, %8, %cst_5 {dimension_numbers = #tpu.dot_dimension_numbers<[1], [0], [0], [1], [0, 0, 1, 1], [], []>} : vector<256x64xbf16>, vector<64x64xbf16>, vector<256x64xf32> -> vector<256x64xf32>
    %10 = arith.addf %1, %9 : vector<256x64xf32>
    %c0_i32_6 = arith.constant 0 : i32
    %11 = arith.addi %0, %c0_i32_6 : i32
    %c0_7 = arith.constant 0 : index
    %12 = arith.index_cast %11 : i32 to index
    %c1 = arith.constant 1 : index
    %c0_8 = arith.constant 0 : index
    %13 = vector.load %arg3[%c0_7, %12, %c1, %c0_8] : memref<1x18x18x64xbf16, #tpu.memory_space<vmem>>, vector<1x16x16x64xbf16>
    %14 = vector.shape_cast %13 : vector<1x16x16x64xbf16> to vector<16x16x64xbf16>
    %15 = vector.shape_cast %14 : vector<16x16x64xbf16> to vector<256x64xbf16>
    %c1_9 = arith.constant 1 : index
    %c0_10 = arith.constant 0 : index
    %c0_11 = arith.constant 0 : index
    %16 = vector.load %arg4[%c1_9, %c0_10, %c0_11] : memref<9x64x64xbf16, #tpu.memory_space<vmem>>, vector<1x64x64xbf16>
    %17 = vector.shape_cast %16 : vector<1x64x64xbf16> to vector<64x64xbf16>
    %cst_12 = arith.constant dense<0.000000e+00> : vector<256x64xf32>
    %18 = tpu.matmul %15, %17, %cst_12 {dimension_numbers = #tpu.dot_dimension_numbers<[1], [0], [0], [1], [0, 0, 1, 1], [], []>} : vector<256x64xbf16>, vector<64x64xbf16>, vector<256x64xf32> -> vector<256x64xf32>
    %19 = arith.addf %10, %18 : vector<256x64xf32>
    %c0_i32_13 = arith.constant 0 : i32
    %20 = arith.addi %0, %c0_i32_13 : i32
    %c0_14 = arith.constant 0 : index
    %21 = arith.index_cast %20 : i32 to index
    %c2 = arith.constant 2 : index
    %c0_15 = arith.constant 0 : index
    %22 = vector.load %arg3[%c0_14, %21, %c2, %c0_15] : memref<1x18x18x64xbf16, #tpu.memory_space<vmem>>, vector<1x16x16x64xbf16>
    %23 = vector.shape_cast %22 : vector<1x16x16x64xbf16> to vector<16x16x64xbf16>
    %24 = vector.shape_cast %23 : vector<16x16x64xbf16> to vector<256x64xbf16>
    %c2_16 = arith.constant 2 : index
    %c0_17 = arith.constant 0 : index
    %c0_18 = arith.constant 0 : index
    %25 = vector.load %arg4[%c2_16, %c0_17, %c0_18] : memref<9x64x64xbf16, #tpu.memory_space<vmem>>, vector<1x64x64xbf16>
    %26 = vector.shape_cast %25 : vector<1x64x64xbf16> to vector<64x64xbf16>
    %cst_19 = arith.constant dense<0.000000e+00> : vector<256x64xf32>
    %27 = tpu.matmul %24, %26, %cst_19 {dimension_numbers = #tpu.dot_dimension_numbers<[1], [0], [0], [1], [0, 0, 1, 1], [], []>} : vector<256x64xbf16>, vector<64x64xbf16>, vector<256x64xf32> -> vector<256x64xf32>
    %28 = arith.addf %19, %27 : vector<256x64xf32>
    %c1_i32 = arith.constant 1 : i32
    %29 = arith.addi %0, %c1_i32 : i32
    %c0_20 = arith.constant 0 : index
    %30 = arith.index_cast %29 : i32 to index
    %c0_21 = arith.constant 0 : index
    %c0_22 = arith.constant 0 : index
    %31 = vector.load %arg3[%c0_20, %30, %c0_21, %c0_22] : memref<1x18x18x64xbf16, #tpu.memory_space<vmem>>, vector<1x16x16x64xbf16>
    %32 = vector.shape_cast %31 : vector<1x16x16x64xbf16> to vector<16x16x64xbf16>
    %33 = vector.shape_cast %32 : vector<16x16x64xbf16> to vector<256x64xbf16>
    %c3 = arith.constant 3 : index
    %c0_23 = arith.constant 0 : index
    %c0_24 = arith.constant 0 : index
    %34 = vector.load %arg4[%c3, %c0_23, %c0_24] : memref<9x64x64xbf16, #tpu.memory_space<vmem>>, vector<1x64x64xbf16>
    %35 = vector.shape_cast %34 : vector<1x64x64xbf16> to vector<64x64xbf16>
    %cst_25 = arith.constant dense<0.000000e+00> : vector<256x64xf32>
    %36 = tpu.matmul %33, %35, %cst_25 {dimension_numbers = #tpu.dot_dimension_numbers<[1], [0], [0], [1], [0, 0, 1, 1], [], []>} : vector<256x64xbf16>, vector<64x64xbf16>, vector<256x64xf32> -> vector<256x64xf32>
    %37 = arith.addf %28, %36 : vector<256x64xf32>
    %c1_i32_26 = arith.constant 1 : i32
    %38 = arith.addi %0, %c1_i32_26 : i32
    %c0_27 = arith.constant 0 : index
    %39 = arith.index_cast %38 : i32 to index
    %c1_28 = arith.constant 1 : index
    %c0_29 = arith.constant 0 : index
    %40 = vector.load %arg3[%c0_27, %39, %c1_28, %c0_29] : memref<1x18x18x64xbf16, #tpu.memory_space<vmem>>, vector<1x16x16x64xbf16>
    %41 = vector.shape_cast %40 : vector<1x16x16x64xbf16> to vector<16x16x64xbf16>
    %42 = vector.shape_cast %41 : vector<16x16x64xbf16> to vector<256x64xbf16>
    %c4 = arith.constant 4 : index
    %c0_30 = arith.constant 0 : index
    %c0_31 = arith.constant 0 : index
    %43 = vector.load %arg4[%c4, %c0_30, %c0_31] : memref<9x64x64xbf16, #tpu.memory_space<vmem>>, vector<1x64x64xbf16>
    %44 = vector.shape_cast %43 : vector<1x64x64xbf16> to vector<64x64xbf16>
    %cst_32 = arith.constant dense<0.000000e+00> : vector<256x64xf32>
    %45 = tpu.matmul %42, %44, %cst_32 {dimension_numbers = #tpu.dot_dimension_numbers<[1], [0], [0], [1], [0, 0, 1, 1], [], []>} : vector<256x64xbf16>, vector<64x64xbf16>, vector<256x64xf32> -> vector<256x64xf32>
    %46 = arith.addf %37, %45 : vector<256x64xf32>
    %c1_i32_33 = arith.constant 1 : i32
    %47 = arith.addi %0, %c1_i32_33 : i32
    %c0_34 = arith.constant 0 : index
    %48 = arith.index_cast %47 : i32 to index
    %c2_35 = arith.constant 2 : index
    %c0_36 = arith.constant 0 : index
    %49 = vector.load %arg3[%c0_34, %48, %c2_35, %c0_36] : memref<1x18x18x64xbf16, #tpu.memory_space<vmem>>, vector<1x16x16x64xbf16>
    %50 = vector.shape_cast %49 : vector<1x16x16x64xbf16> to vector<16x16x64xbf16>
    %51 = vector.shape_cast %50 : vector<16x16x64xbf16> to vector<256x64xbf16>
    %c5 = arith.constant 5 : index
    %c0_37 = arith.constant 0 : index
    %c0_38 = arith.constant 0 : index
    %52 = vector.load %arg4[%c5, %c0_37, %c0_38] : memref<9x64x64xbf16, #tpu.memory_space<vmem>>, vector<1x64x64xbf16>
    %53 = vector.shape_cast %52 : vector<1x64x64xbf16> to vector<64x64xbf16>
    %cst_39 = arith.constant dense<0.000000e+00> : vector<256x64xf32>
    %54 = tpu.matmul %51, %53, %cst_39 {dimension_numbers = #tpu.dot_dimension_numbers<[1], [0], [0], [1], [0, 0, 1, 1], [], []>} : vector<256x64xbf16>, vector<64x64xbf16>, vector<256x64xf32> -> vector<256x64xf32>
    %55 = arith.addf %46, %54 : vector<256x64xf32>
    %c2_i32 = arith.constant 2 : i32
    %56 = arith.addi %0, %c2_i32 : i32
    %c0_40 = arith.constant 0 : index
    %57 = arith.index_cast %56 : i32 to index
    %c0_41 = arith.constant 0 : index
    %c0_42 = arith.constant 0 : index
    %58 = vector.load %arg3[%c0_40, %57, %c0_41, %c0_42] : memref<1x18x18x64xbf16, #tpu.memory_space<vmem>>, vector<1x16x16x64xbf16>
    %59 = vector.shape_cast %58 : vector<1x16x16x64xbf16> to vector<16x16x64xbf16>
    %60 = vector.shape_cast %59 : vector<16x16x64xbf16> to vector<256x64xbf16>
    %c6 = arith.constant 6 : index
    %c0_43 = arith.constant 0 : index
    %c0_44 = arith.constant 0 : index
    %61 = vector.load %arg4[%c6, %c0_43, %c0_44] : memref<9x64x64xbf16, #tpu.memory_space<vmem>>, vector<1x64x64xbf16>
    %62 = vector.shape_cast %61 : vector<1x64x64xbf16> to vector<64x64xbf16>
    %cst_45 = arith.constant dense<0.000000e+00> : vector<256x64xf32>
    %63 = tpu.matmul %60, %62, %cst_45 {dimension_numbers = #tpu.dot_dimension_numbers<[1], [0], [0], [1], [0, 0, 1, 1], [], []>} : vector<256x64xbf16>, vector<64x64xbf16>, vector<256x64xf32> -> vector<256x64xf32>
    %64 = arith.addf %55, %63 : vector<256x64xf32>
    %c2_i32_46 = arith.constant 2 : i32
    %65 = arith.addi %0, %c2_i32_46 : i32
    %c0_47 = arith.constant 0 : index
    %66 = arith.index_cast %65 : i32 to index
    %c1_48 = arith.constant 1 : index
    %c0_49 = arith.constant 0 : index
    %67 = vector.load %arg3[%c0_47, %66, %c1_48, %c0_49] : memref<1x18x18x64xbf16, #tpu.memory_space<vmem>>, vector<1x16x16x64xbf16>
    %68 = vector.shape_cast %67 : vector<1x16x16x64xbf16> to vector<16x16x64xbf16>
    %69 = vector.shape_cast %68 : vector<16x16x64xbf16> to vector<256x64xbf16>
    %c7 = arith.constant 7 : index
    %c0_50 = arith.constant 0 : index
    %c0_51 = arith.constant 0 : index
    %70 = vector.load %arg4[%c7, %c0_50, %c0_51] : memref<9x64x64xbf16, #tpu.memory_space<vmem>>, vector<1x64x64xbf16>
    %71 = vector.shape_cast %70 : vector<1x64x64xbf16> to vector<64x64xbf16>
    %cst_52 = arith.constant dense<0.000000e+00> : vector<256x64xf32>
    %72 = tpu.matmul %69, %71, %cst_52 {dimension_numbers = #tpu.dot_dimension_numbers<[1], [0], [0], [1], [0, 0, 1, 1], [], []>} : vector<256x64xbf16>, vector<64x64xbf16>, vector<256x64xf32> -> vector<256x64xf32>
    %73 = arith.addf %64, %72 : vector<256x64xf32>
    %c2_i32_53 = arith.constant 2 : i32
    %74 = arith.addi %0, %c2_i32_53 : i32
    %c0_54 = arith.constant 0 : index
    %75 = arith.index_cast %74 : i32 to index
    %c2_55 = arith.constant 2 : index
    %c0_56 = arith.constant 0 : index
    %76 = vector.load %arg3[%c0_54, %75, %c2_55, %c0_56] : memref<1x18x18x64xbf16, #tpu.memory_space<vmem>>, vector<1x16x16x64xbf16>
    %77 = vector.shape_cast %76 : vector<1x16x16x64xbf16> to vector<16x16x64xbf16>
    %78 = vector.shape_cast %77 : vector<16x16x64xbf16> to vector<256x64xbf16>
    %c8 = arith.constant 8 : index
    %c0_57 = arith.constant 0 : index
    %c0_58 = arith.constant 0 : index
    %79 = vector.load %arg4[%c8, %c0_57, %c0_58] : memref<9x64x64xbf16, #tpu.memory_space<vmem>>, vector<1x64x64xbf16>
    %80 = vector.shape_cast %79 : vector<1x64x64xbf16> to vector<64x64xbf16>
    %cst_59 = arith.constant dense<0.000000e+00> : vector<256x64xf32>
    %81 = tpu.matmul %78, %80, %cst_59 {dimension_numbers = #tpu.dot_dimension_numbers<[1], [0], [0], [1], [0, 0, 1, 1], [], []>} : vector<256x64xbf16>, vector<64x64xbf16>, vector<256x64xf32> -> vector<256x64xf32>
    %82 = arith.addf %73, %81 : vector<256x64xf32>
    %c0_60 = arith.constant 0 : index
    %c0_61 = arith.constant 0 : index
    %83 = vector.load %arg5[%c0_60, %c0_61] : memref<1x64xf32, #tpu.memory_space<vmem>>, vector<1x64xf32>
    %84 = vector.broadcast %83 : vector<1x64xf32> to vector<256x64xf32>
    %85 = arith.addf %82, %84 : vector<256x64xf32>
    %cst_62 = arith.constant 0.000000e+00 : f32
    %86 = vector.broadcast %cst_62 : f32 to vector<256x64xf32>
    %87 = arith.maximumf %85, %86 : vector<256x64xf32>
    %88 = vector.shape_cast %87 : vector<256x64xf32> to vector<16x16x64xf32>
    %89 = arith.truncf %88 : vector<16x16x64xf32> to vector<16x16x64xbf16>
    %c0_63 = arith.constant 0 : index
    %c0_64 = arith.constant 0 : index
    %c0_65 = arith.constant 0 : index
    %c0_66 = arith.constant 0 : index
    %90 = vector.load %arg6[%c0_63, %c0_64, %c0_65, %c0_66] : memref<1x16x16x64xbf16, #tpu.memory_space<vmem>>, vector<1x16x16x64xbf16>
    %91 = vector.shape_cast %90 : vector<1x16x16x64xbf16> to vector<16x16x64xbf16>
    %92 = vector.shape_cast %89 : vector<16x16x64xbf16> to vector<1x16x16x64xbf16>
    tpu.vector_store %arg6[%c0_63, %c0_64, %c0_65, %c0_66], %92 {strides = array<i32>} : memref<1x16x16x64xbf16, #tpu.memory_space<vmem>>, vector<1x16x16x64xbf16>,
    return
  }
  func.func @transform_0(%arg0: i32, %arg1: i32, %arg2: i32) -> (i32, i32, i32, i32) {
    %c0_i32 = arith.constant 0 : i32
    %c0_i32_0 = arith.constant 0 : i32
    %c0_i32_1 = arith.constant 0 : i32
    %c0_i32_2 = arith.constant 0 : i32
    return %arg0, %c0_i32, %c0_i32_0, %c0_i32_1 : i32, i32, i32, i32
  }
  func.func @transform_1(%arg0: i32, %arg1: i32, %arg2: i32) -> (i32, i32, i32) {
    %c0_i32 = arith.constant 0 : i32
    %c0_i32_0 = arith.constant 0 : i32
    %c0_i32_1 = arith.constant 0 : i32
    return %c0_i32, %c0_i32_0, %arg1 : i32, i32, i32
  }
  func.func @transform_2(%arg0: i32, %arg1: i32, %arg2: i32) -> (i32, i32) {
    %c0_i32 = arith.constant 0 : i32
    %c0_i32_0 = arith.constant 0 : i32
    return %c0_i32, %arg1 : i32, i32
  }
  func.func @transform_3(%arg0: i32, %arg1: i32, %arg2: i32) -> (i32, i32, i32, i32) {
    %c0_i32 = arith.constant 0 : i32
    %c0_i32_0 = arith.constant 0 : i32
    return %arg0, %arg2, %c0_i32, %arg1 : i32, i32, i32, i32
  }
}

</mosaic_0001>

<llo_original>
// kernel: tpu_custom_call.1
$region0: #{tpu_custom_call.1}
  #allocation0 [shape = 'u32[]', space=smem, size = 0x4, offset = 0x4, fixed_abs, tag = 'smem constant byte address 0x4 - core index']
  #allocation1 [shape = 'u32[72,128]{1,0:T(1,128)}', space=vmem, size = 0x9000, scoped, tag = 'internal scratch']
  %s0 = inlined_call_operand.vmem [shape: bf16[2,18,18,64], index: 0, kind: input, shape index: {}]
  %s1 = inlined_call_operand.vmem [shape: bf16[9,64,64], index: 1, kind: input, shape index: {}]
  %s2 = inlined_call_operand.vmem [shape: f32[1,64], index: 2, kind: input, shape index: {}]
  %s3 = inlined_call_operand.hbm [shape: bf16[2,16,16,64], index: 3, kind: output, shape index: {}]
  %s4 = sld [smem:[#allocation0]]
  $region45: #{tpu_custom_call.1} parent=0
    _
  %s6 = ssub.s32 1, %s4
  %s7 = scalar_select 0, %s6, %s4
  $region1: #{tpu_custom_call.1} parent=0
    #allocation2 [shape = 'u8[131072]{0}', space=vmem, size = 0x20000, scoped, tag = 'output window, operand 0']
    #allocation3 [shape = 's32[2]{0}', space=sflag, size = 0x8, scoped, tag = 'scoped memory for tpu_custom_call.1']
    %8 = vsyncpa [#allocation3], 0
    %s9 = scalar_lea.sflag [#allocation3], 1
    %10 = vsyncpa %s9, 0
    loop: start=0, step=1, limit=4
    $region2: #{tpu_custom_call.1} parent=1 // loop_pre_header
      _
    $region3: #{tpu_custom_call.1} parent=1 // loop_header
      %s12 = sphi 0, %s16
      %p13 = scmp.ge.s32.totalorder %s12, 4
      %s19 = sphi 0, %s38
      %s20 = sphi 0, %s34
      %s21 = sphi 0, %s30
      %s22 = sphi 0, %s19
      %s23 = sphi 0, %s20
      %s24 = sphi 0, %s21
      %s25 = sphi 0, %s22
      %s26 = sphi 0, %s23
      %s27 = sphi 0, %s24
      %s41 = sphi 0, %s43
      %s44 = sphi 0, %s41
      %s45 = sphi 0, %s44
      %s61 = sphi 0, %s45
      %s67 = sphi 0, %s69
      %s70 = sphi 0, %s67
      %s71 = sphi 0, %s70
      %s87 = sphi 0, %s71
      %s93 = sphi 0, %s95
      %s96 = sphi 0, %s93
      %s97 = sphi 0, %s96
      %s113 = sphi 0, %s97
      %s123 = sphi 0, %s125
      %s126 = sphi 0, %s123
      %s127 = sphi 0, %s126
      %s143 = sphi 0, %s127
    $region4: #{tpu_custom_call.1} parent=1 // loop_header_branch
      %15 = sbr.rel (%p13) target = $region8
    $region5: #{tpu_custom_call.1} parent=1 // loop_body
      %s17 = ssub.s32 %s12, 1
      %s18 = ssub.s32 %s12, 2
      %s28 = sadd.s32 1, %s21
      %p29 = scmp.ge.s32.totalorder %s28, 1
      %s30 = scalar_select %p29, 0, %s28
      %s31 = sadd.s32 1, %s20
      %s32 = scalar_select %p29, %s31, %s20
      %p33 = scmp.ge.s32.totalorder %s32, 1
      %s34 = scalar_select %p33, 0, %s32
      %s35 = sadd.s32 1, %s19
      %s36 = scalar_select %p33, %s35, %s19
      %p37 = scmp.ge.s32.totalorder %s36, 2
      %s38 = scalar_select %p37, 0, %s36
      %s39 = ssub.s32 %s19, %s38
      %p40 = scmp.eq.s32.totalorder %s39, 0
      %s42 = sadd.s32 %s41, 1
      %s43 = scalar_select %p40, %s41, %s42
      %p46 = pneg %p40
      %p47 = scmp.eq.s32.totalorder %s12, 1
      %p48 = por %p46, %p47
      %p49 = scmp.ne.s32.totalorder %s41, %s44
      %p50 = scmp.eq.s32.totalorder %s12, 0
      %p51 = por %p49, %p50
      %p52 = scmp.ne.s32.totalorder %s41, %s44
      %p53 = scmp.eq.s32.totalorder %s17, 1
      %p54 = por %p52, %p53
      %p55 = scmp.ne.s32.totalorder %s44, %s45
      %p56 = scmp.eq.s32.totalorder %s17, 0
      %p57 = por %p55, %p56
      %p58 = scmp.ne.s32.totalorder %s44, %s45
      %p59 = scmp.eq.s32.totalorder %s18, 1
      %p60 = por %p58, %p59
      %p62 = scmp.ne.s32.totalorder %s45, %s61
      %p63 = scmp.eq.s32.totalorder %s18, 0
      %p64 = por %p62, %p63
      %s65 = ssub.s32 %s20, %s34
      %p66 = scmp.eq.s32.totalorder %s65, 0
      %s68 = sadd.s32 %s67, 1
      %s69 = scalar_select %p66, %s67, %s68
      %p72 = pneg %p66
      %p73 = scmp.eq.s32.totalorder %s12, 1
      %p74 = por %p72, %p73
      %p75 = scmp.ne.s32.totalorder %s67, %s70
      %p76 = scmp.eq.s32.totalorder %s12, 0
      %p77 = por %p75, %p76
      %p78 = scmp.ne.s32.totalorder %s67, %s70
      %p79 = scmp.eq.s32.totalorder %s17, 1
      %p80 = por %p78, %p79
      %p81 = scmp.ne.s32.totalorder %s70, %s71
      %p82 = scmp.eq.s32.totalorder %s17, 0
      %p83 = por %p81, %p82
      %p84 = scmp.ne.s32.totalorder %s70, %s71
      %p85 = scmp.eq.s32.totalorder %s18, 1
      %p86 = por %p84, %p85
      %p88 = scmp.ne.s32.totalorder %s71, %s87
      %p89 = scmp.eq.s32.totalorder %s18, 0
      %p90 = por %p88, %p89
      %s91 = ssub.s32 %s20, %s34
      %p92 = scmp.eq.s32.totalorder %s91, 0
      %s94 = sadd.s32 %s93, 1
      %s95 = scalar_select %p92, %s93, %s94
      %p98 = pneg %p92
      %p99 = scmp.eq.s32.totalorder %s12, 1
      %p100 = por %p98, %p99
      %p101 = scmp.ne.s32.totalorder %s93, %s96
      %p102 = scmp.eq.s32.totalorder %s12, 0
      %p103 = por %p101, %p102
      %p104 = scmp.ne.s32.totalorder %s93, %s96
      %p105 = scmp.eq.s32.totalorder %s17, 1
      %p106 = por %p104, %p105
      %p107 = scmp.ne.s32.totalorder %s96, %s97
      %p108 = scmp.eq.s32.totalorder %s17, 0
      %p109 = por %p107, %p108
      %p110 = scmp.ne.s32.totalorder %s96, %s97
      %p111 = scmp.eq.s32.totalorder %s18, 1
      %p112 = por %p110, %p111
      %p114 = scmp.ne.s32.totalorder %s97, %s113
      %p115 = scmp.eq.s32.totalorder %s18, 0
      %p116 = por %p114, %p115
      %s117 = ssub.s32 %s19, %s38
      %s118 = ssub.s32 %s21, %s30
      %s119 = sor.u32 %s117, %s118
      %s120 = ssub.s32 %s20, %s34
      %s121 = sor.u32 %s119, %s120
      %p122 = scmp.eq.s32.totalorder %s121, 0
      %s124 = sadd.s32 %s123, 1
      %s125 = scalar_select %p122, %s123, %s124
      %p128 = pneg %p122
      %p129 = scmp.eq.s32.totalorder %s12, 1
      %p130 = por %p128, %p129
      %p131 = scmp.ne.s32.totalorder %s123, %s126
      %p132 = scmp.eq.s32.totalorder %s12, 0
      %p133 = por %p131, %p132
      %p134 = scmp.ne.s32.totalorder %s123, %s126
      %p135 = scmp.eq.s32.totalorder %s17, 1
      %p136 = por %p134, %p135
      %p137 = scmp.ne.s32.totalorder %s126, %s127
      %p138 = scmp.eq.s32.totalorder %s17, 0
      %p139 = por %p137, %p138
      %p140 = scmp.ne.s32.totalorder %s126, %s127
      %p141 = scmp.eq.s32.totalorder %s18, 1
      %p142 = por %p140, %p141
      %p144 = scmp.ne.s32.totalorder %s127, %s143
      %p145 = scmp.eq.s32.totalorder %s18, 0
      %p146 = por %p144, %p145
      %p147 = scmp.le.s32.totalorder 1, %s12
      %p148 = scmp.lt.s32.totalorder %s12, 3
      %p149 = pnand %p147, %p148
      %p150 = pneg %p149
      // Predicated region
      $region9: #{tpu_custom_call.1} parent=5 // pred_check
        _
      $region10: #{tpu_custom_call.1} parent=5 // pred_check_branch
        %152 = sbr.rel (%p149) target = $region12
      $region11: #{tpu_custom_call.1} parent=5 // pred_region
        %s153 = ssub.s32 %s12, 1
        // Predicated region
        $region13: #{tpu_custom_call.1} parent=11 // pred_check
          %p154 = pneg %p83
        $region14: #{tpu_custom_call.1} parent=11 // pred_check_branch
          %156 = sbr.rel (%p154) target = $region16
        $region15: #{tpu_custom_call.1} parent=11 // pred_region
          %p157 = scmp.lt.s32.totalorder %s23, 0
          %s158 = scalar_select %p157, %s23, 0
          %s159 = smul.addr %s158, 4
          %s160 = scalar_lea.vmem %s1, %s159
        $region16: #{tpu_custom_call.1} parent=11 // pred_fallthru
          _
        // Predicated region
        $region17: #{tpu_custom_call.1} parent=11 // pred_check
          %p161 = pneg %p109
        $region18: #{tpu_custom_call.1} parent=11 // pred_check_branch
          %163 = sbr.rel (%p161) target = $region20
        $region19: #{tpu_custom_call.1} parent=11 // pred_region
          %p164 = scmp.lt.s32.totalorder %s23, 0
          %s165 = scalar_select %p164, %s23, 0
          %s166 = scalar_lea.vmem %s2, %s165
        $region20: #{tpu_custom_call.1} parent=11 // pred_fallthru
          _
      $region12: #{tpu_custom_call.1} parent=5 // pred_fallthru
        _
      %p167 = scmp.lt.s32.totalorder %s12, 2
      // Predicated region
      $region21: #{tpu_custom_call.1} parent=5 // pred_check
        %p168 = pneg %p167
      $region22: #{tpu_custom_call.1} parent=5 // pred_check_branch
        %170 = sbr.rel (%p168) target = $region24
      $region23: #{tpu_custom_call.1} parent=5 // pred_region
        // Predicated region
        $region25: #{tpu_custom_call.1} parent=23 // pred_check
          %p171 = pneg %p51
        $region26: #{tpu_custom_call.1} parent=23 // pred_check_branch
          %173 = sbr.rel (%p171) target = $region28
        $region27: #{tpu_custom_call.1} parent=23 // pred_region
          %p174 = scmp.lt.s32.totalorder %s19, 1
          %s175 = scalar_select %p174, %s19, 1
          %s176 = smul.addr %s175, 54
          %s177 = smul.addr %s176, 4
          %s178 = scalar_lea.vmem %s0, %s177
        $region28: #{tpu_custom_call.1} parent=23 // pred_fallthru
          _
      $region24: #{tpu_custom_call.1} parent=5 // pred_fallthru
        _
      %p179 = scmp.le.s32.totalorder 1, %s12
      %p180 = scmp.lt.s32.totalorder %s12, 3
      %p181 = pnand %p179, %p180
      %p182 = pneg %p181
      // Predicated region
      $region29: #{tpu_custom_call.1} parent=5 // pred_check
        _
      $region30: #{tpu_custom_call.1} parent=5 // pred_check_branch
        %184 = sbr.rel (%p181) target = $region32
      $region31: #{tpu_custom_call.1} parent=5 // pred_region
        %s185 = ssub.s32 %s12, 1
        %p186 = scmp.lt.s32.totalorder %s22, 1
        %s187 = scalar_select %p186, %s22, 1
        %s188 = smul.addr %s187, 54
        %s189 = smul.addr %s188, 4
        %s190 = scalar_lea.vmem %s0, %s189
        %p191 = pneg %p57
        %p192 = pneg %p54
        %p193 = scmp.lt.s32.totalorder %s23, 0
        %s194 = scalar_select %p193, %s23, 0
        %s195 = smul.addr %s194, 4
        %s196 = scalar_lea.vmem %s1, %s195
        %p197 = pneg %p83
        %p198 = pneg %p80
        %p199 = scmp.lt.s32.totalorder %s23, 0
        %s200 = scalar_select %p199, %s23, 0
        %s201 = scalar_lea.vmem %s2, %s200
        %p202 = pneg %p109
        %p203 = pneg %p106
        %p204 = pneg %p139
        %p205 = pneg %p136
        %s206 = sand.u32 %s126, 1
        %s207 = scalar_lea.sflag [#allocation3], %s206
        %s208 = sand.u32 %s126, 1
        %s209 = smul.addr %s208, 128
        %s210 = scalar_lea.vmem [#allocation2], %s209
        %p211 = scmp.lt.s32.totalorder %s22, 1
        %s212 = scalar_select %p211, %s22, 1
        %s213 = smul.addr %s212, 54
        %s214 = smul.addr %s213, 4
        %s215 = scalar_lea.vmem %s0, %s214
        %p216 = scmp.lt.s32.totalorder %s23, 0
        %s217 = scalar_select %p216, %s23, 0
        %s218 = smul.addr %s217, 4
        %s219 = scalar_lea.vmem %s1, %s218
        %p220 = scmp.lt.s32.totalorder %s23, 0
        %s221 = scalar_select %p220, %s23, 0
        %s222 = scalar_lea.vmem %s2, %s221
        %s223 = smul.u32 16, %s24
        %s225 = smul.u32 %s24, 16
        %s226 = smul.u32 %s225, 3
        %s227 = smul.addr %s226, 4
        %s228 = scalar_lea.vmem %s215, %s227
        %v229 = vld [vmem:[%s228] sm:$0xf]
        %v230 = vld [vmem:[%s228 + $0x4] sm:$0xf]
        %v231 = vld [vmem:[%s228 + $0xc] sm:$0xf]
        %v232 = vld [vmem:[%s228 + $0x10] sm:$0xf]
        %v233 = vld [vmem:[%s228 + $0x18] sm:$0xf]
        %v234 = vld [vmem:[%s228 + $0x1c] sm:$0xf]
        %v235 = vld [vmem:[%s228 + $0x24] sm:$0xf]
        %v236 = vld [vmem:[%s228 + $0x28] sm:$0xf]
        %v237 = vld [vmem:[%s228 + $0x30] sm:$0xf]
        %v238 = vld [vmem:[%s228 + $0x34] sm:$0xf]
        %v239 = vld [vmem:[%s228 + $0x3c] sm:$0xf]
        %v240 = vld [vmem:[%s228 + $0x40] sm:$0xf]
        %v241 = vld [vmem:[%s228 + $0x48] sm:$0xf]
        %v242 = vld [vmem:[%s228 + $0x4c] sm:$0xf]
        %v243 = vld [vmem:[%s228 + $0x54] sm:$0xf]
        %v244 = vld [vmem:[%s228 + $0x58] sm:$0xf]
        %v245 = vld [vmem:[%s228 + $0x60] sm:$0xf]
        %v246 = vld [vmem:[%s228 + $0x64] sm:$0xf]
        %v247 = vld [vmem:[%s228 + $0x6c] sm:$0xf]
        %v248 = vld [vmem:[%s228 + $0x70] sm:$0xf]
        %v249 = vld [vmem:[%s228 + $0x78] sm:$0xf]
        %v250 = vld [vmem:[%s228 + $0x7c] sm:$0xf]
        %v251 = vld [vmem:[%s228 + $0x84] sm:$0xf]
        %v252 = vld [vmem:[%s228 + $0x88] sm:$0xf]
        %v253 = vld [vmem:[%s228 + $0x90] sm:$0xf]
        %v254 = vld [vmem:[%s228 + $0x94] sm:$0xf]
        %v255 = vld [vmem:[%s228 + $0x9c] sm:$0xf]
        %v256 = vld [vmem:[%s228 + $0xa0] sm:$0xf]
        %v257 = vld [vmem:[%s228 + $0xa8] sm:$0xf]
        %v258 = vld [vmem:[%s228 + $0xac] sm:$0xf]
        %v259 = vld [vmem:[%s228 + $0xb4] sm:$0xf]
        %v260 = vld [vmem:[%s228 + $0xb8] sm:$0xf]
        %v261 = vld [vmem:[%s219] sm:$0xf]
        %v262 = vld [vmem:[%s219 + $0x4] sm:$0xf]
        %v263 = vld [vmem:[%s219 + $0x8] sm:$0xf]
        %v264 = vld [vmem:[%s219 + $0xc] sm:$0xf]
        %v265 = vld [vmem:[%s219 + $0x10] sm:$0xf]
        %v266 = vld [vmem:[%s219 + $0x14] sm:$0xf]
        %v267 = vld [vmem:[%s219 + $0x18] sm:$0xf]
        %v268 = vld [vmem:[%s219 + $0x1c] sm:$0xf]
        %v269 = vld [vmem:[%s228 + $0x8] sm:$0x1]
        %v270 = vld [vmem:[%s228 + $0x14] sm:$0x1]
        %v271 = vld [vmem:[%s228 + $0x20] sm:$0x1]
        %v272 = vld [vmem:[%s228 + $0x2c] sm:$0x1]
        %v273 = vld [vmem:[%s228 + $0x38] sm:$0x1]
        %v274 = vld [vmem:[%s228 + $0x44] sm:$0x1]
        %v275 = vld [vmem:[%s228 + $0x50] sm:$0x1]
        %v276 = vld [vmem:[%s228 + $0x5c] sm:$0x1]
        %v277 = vld [vmem:[%s228 + $0x68] sm:$0x1]
        %v278 = vld [vmem:[%s228 + $0x74] sm:$0x1]
        %v279 = vld [vmem:[%s228 + $0x80] sm:$0x1]
        %v280 = vld [vmem:[%s228 + $0x8c] sm:$0x1]
        %v281 = vld [vmem:[%s228 + $0x98] sm:$0x1]
        %v282 = vld [vmem:[%s228 + $0xa4] sm:$0x1]
        %v283 = vld [vmem:[%s228 + $0xb0] sm:$0x1]
        %v284 = vld [vmem:[%s228 + $0xbc] sm:$0x1]
        %vm285 = vsmask.f32 3328
        %vm286 = vsmask.f32 7440
        %vm287 = vmor %vm285, %vm286
        %v289 = vshrl.u32 %v229, 16
        %v291 = vrot.slane %v289, 4
        %v292 = vshll.u32 %v229, 16
        %v294 = vrot.slane %v292, 5
        %v295 = vor.u32 %v291, %v294
        %v296 = vrot.slane %v295, 4
        %v298 = vshll.u32 %v230, 16
        %v300 = vrot.slane %v298, 5
        %v301 = vsel %vm287, %v296, %v300
        %v302 = vshrl.u32 %v230, 16
        %v304 = vrot.slane %v302, 4
        %v305 = vor.u32 %v304, %v300
        %v306 = vrot.slane %v305, 4
        %v308 = vshll.u32 %v269, 16
        %v310 = vrot.slane %v308, 5
        %v311 = vsel %vm287, %v306, %v310
        %v313 = vshrl.u32 %v231, 16
        %v315 = vrot.slane %v313, 4
        %v316 = vshll.u32 %v231, 16
        %v318 = vrot.slane %v316, 5
        %v319 = vor.u32 %v315, %v318
        %v320 = vrot.slane %v319, 4
        %v322 = vshll.u32 %v232, 16
        %v324 = vrot.slane %v322, 5
        %v325 = vsel %vm287, %v320, %v324
        %v326 = vshrl.u32 %v232, 16
        %v328 = vrot.slane %v326, 4
        %v329 = vor.u32 %v328, %v324
        %v330 = vrot.slane %v329, 4
        %v332 = vshll.u32 %v270, 16
        %v334 = vrot.slane %v332, 5
        %v335 = vsel %vm287, %v330, %v334
        %v337 = vshrl.u32 %v233, 16
        %v339 = vrot.slane %v337, 4
        %v340 = vshll.u32 %v233, 16
        %v342 = vrot.slane %v340, 5
        %v343 = vor.u32 %v339, %v342
        %v344 = vrot.slane %v343, 4
        %v346 = vshll.u32 %v234, 16
        %v348 = vrot.slane %v346, 5
        %v349 = vsel %vm287, %v344, %v348
        %v350 = vshrl.u32 %v234, 16
        %v352 = vrot.slane %v350, 4
        %v353 = vor.u32 %v352, %v348
        %v354 = vrot.slane %v353, 4
        %v356 = vshll.u32 %v271, 16
        %v358 = vrot.slane %v356, 5
        %v359 = vsel %vm287, %v354, %v358
        %v361 = vshrl.u32 %v235, 16
        %v363 = vrot.slane %v361, 4
        %v364 = vshll.u32 %v235, 16
        %v366 = vrot.slane %v364, 5
        %v367 = vor.u32 %v363, %v366
        %v368 = vrot.slane %v367, 4
        %v370 = vshll.u32 %v236, 16
        %v372 = vrot.slane %v370, 5
        %v373 = vsel %vm287, %v368, %v372
        %v374 = vshrl.u32 %v236, 16
        %v376 = vrot.slane %v374, 4
        %v377 = vor.u32 %v376, %v372
        %v378 = vrot.slane %v377, 4
        %v380 = vshll.u32 %v272, 16
        %v382 = vrot.slane %v380, 5
        %v383 = vsel %vm287, %v378, %v382
        %v385 = vshrl.u32 %v237, 16
        %v387 = vrot.slane %v385, 4
        %v388 = vshll.u32 %v237, 16
        %v390 = vrot.slane %v388, 5
        %v391 = vor.u32 %v387, %v390
        %v392 = vrot.slane %v391, 4
        %v394 = vshll.u32 %v238, 16
        %v396 = vrot.slane %v394, 5
        %v397 = vsel %vm287, %v392, %v396
        %v398 = vshrl.u32 %v238, 16
        %v400 = vrot.slane %v398, 4
        %v401 = vor.u32 %v400, %v396
        %v402 = vrot.slane %v401, 4
        %v404 = vshll.u32 %v273, 16
        %v406 = vrot.slane %v404, 5
        %v407 = vsel %vm287, %v402, %v406
        %v409 = vshrl.u32 %v239, 16
        %v411 = vrot.slane %v409, 4
        %v412 = vshll.u32 %v239, 16
        %v414 = vrot.slane %v412, 5
        %v415 = vor.u32 %v411, %v414
        %v416 = vrot.slane %v415, 4
        %v418 = vshll.u32 %v240, 16
        %v420 = vrot.slane %v418, 5
        %v421 = vsel %vm287, %v416, %v420
        %v422 = vshrl.u32 %v240, 16
        %v424 = vrot.slane %v422, 4
        %v425 = vor.u32 %v424, %v420
        %v426 = vrot.slane %v425, 4
        %v428 = vshll.u32 %v274, 16
        %v430 = vrot.slane %v428, 5
        %v431 = vsel %vm287, %v426, %v430
        %v433 = vshrl.u32 %v241, 16
        %v435 = vrot.slane %v433, 4
        %v436 = vshll.u32 %v241, 16
        %v438 = vrot.slane %v436, 5
        %v439 = vor.u32 %v435, %v438
        %v440 = vrot.slane %v439, 4
        %v442 = vshll.u32 %v242, 16
        %v444 = vrot.slane %v442, 5
        %v445 = vsel %vm287, %v440, %v444
        %v446 = vshrl.u32 %v242, 16
        %v448 = vrot.slane %v446, 4
        %v449 = vor.u32 %v448, %v444
        %v450 = vrot.slane %v449, 4
        %v452 = vshll.u32 %v275, 16
        %v454 = vrot.slane %v452, 5
        %v455 = vsel %vm287, %v450, %v454
        %v457 = vshrl.u32 %v243, 16
        %v459 = vrot.slane %v457, 4
        %v460 = vshll.u32 %v243, 16
        %v462 = vrot.slane %v460, 5
        %v463 = vor.u32 %v459, %v462
        %v464 = vrot.slane %v463, 4
        %v466 = vshll.u32 %v244, 16
        %v468 = vrot.slane %v466, 5
        %v469 = vsel %vm287, %v464, %v468
        %v470 = vshrl.u32 %v244, 16
        %v472 = vrot.slane %v470, 4
        %v473 = vor.u32 %v472, %v468
        %v474 = vrot.slane %v473, 4
        %v476 = vshll.u32 %v276, 16
        %v478 = vrot.slane %v476, 5
        %v479 = vsel %vm287, %v474, %v478
        %v481 = vshrl.u32 %v245, 16
        %v483 = vrot.slane %v481, 4
        %v484 = vshll.u32 %v245, 16
        %v486 = vrot.slane %v484, 5
        %v487 = vor.u32 %v483, %v486
        %v488 = vrot.slane %v487, 4
        %v490 = vshll.u32 %v246, 16
        %v492 = vrot.slane %v490, 5
        %v493 = vsel %vm287, %v488, %v492
        %v494 = vshrl.u32 %v246, 16
        %v496 = vrot.slane %v494, 4
        %v497 = vor.u32 %v496, %v492
        %v498 = vrot.slane %v497, 4
        %v500 = vshll.u32 %v277, 16
        %v502 = vrot.slane %v500, 5
        %v503 = vsel %vm287, %v498, %v502
        %v505 = vshrl.u32 %v247, 16
        %v507 = vrot.slane %v505, 4
        %v508 = vshll.u32 %v247, 16
        %v510 = vrot.slane %v508, 5
        %v511 = vor.u32 %v507, %v510
        %v512 = vrot.slane %v511, 4
        %v514 = vshll.u32 %v248, 16
        %v516 = vrot.slane %v514, 5
        %v517 = vsel %vm287, %v512, %v516
        %v518 = vshrl.u32 %v248, 16
        %v520 = vrot.slane %v518, 4
        %v521 = vor.u32 %v520, %v516
        %v522 = vrot.slane %v521, 4
        %v524 = vshll.u32 %v278, 16
        %v526 = vrot.slane %v524, 5
        %v527 = vsel %vm287, %v522, %v526
        %v529 = vshrl.u32 %v249, 16
        %v531 = vrot.slane %v529, 4
        %v532 = vshll.u32 %v249, 16
        %v534 = vrot.slane %v532, 5
        %v535 = vor.u32 %v531, %v534
        %v536 = vrot.slane %v535, 4
        %v538 = vshll.u32 %v250, 16
        %v540 = vrot.slane %v538, 5
        %v541 = vsel %vm287, %v536, %v540
        %v542 = vshrl.u32 %v250, 16
        %v544 = vrot.slane %v542, 4
        %v545 = vor.u32 %v544, %v540
        %v546 = vrot.slane %v545, 4
        %v548 = vshll.u32 %v279, 16
        %v550 = vrot.slane %v548, 5
        %v551 = vsel %vm287, %v546, %v550
        %v553 = vshrl.u32 %v251, 16
        %v555 = vrot.slane %v553, 4
        %v556 = vshll.u32 %v251, 16
        %v558 = vrot.slane %v556, 5
        %v559 = vor.u32 %v555, %v558
        %v560 = vrot.slane %v559, 4
        %v562 = vshll.u32 %v252, 16
        %v564 = vrot.slane %v562, 5
        %v565 = vsel %vm287, %v560, %v564
        %v566 = vshrl.u32 %v252, 16
        %v568 = vrot.slane %v566, 4
        %v569 = vor.u32 %v568, %v564
        %v570 = vrot.slane %v569, 4
        %v572 = vshll.u32 %v280, 16
        %v574 = vrot.slane %v572, 5
        %v575 = vsel %vm287, %v570, %v574
        %v577 = vshrl.u32 %v253, 16
        %v579 = vrot.slane %v577, 4
        %v580 = vshll.u32 %v253, 16
        %v582 = vrot.slane %v580, 5
        %v583 = vor.u32 %v579, %v582
        %v584 = vrot.slane %v583, 4
        %v586 = vshll.u32 %v254, 16
        %v588 = vrot.slane %v586, 5
        %v589 = vsel %vm287, %v584, %v588
        %v590 = vshrl.u32 %v254, 16
        %v592 = vrot.slane %v590, 4
        %v593 = vor.u32 %v592, %v588
        %v594 = vrot.slane %v593, 4
        %v596 = vshll.u32 %v281, 16
        %v598 = vrot.slane %v596, 5
        %v599 = vsel %vm287, %v594, %v598
        %v601 = vshrl.u32 %v255, 16
        %v603 = vrot.slane %v601, 4
        %v604 = vshll.u32 %v255, 16
        %v606 = vrot.slane %v604, 5
        %v607 = vor.u32 %v603, %v606
        %v608 = vrot.slane %v607, 4
        %v610 = vshll.u32 %v256, 16
        %v612 = vrot.slane %v610, 5
        %v613 = vsel %vm287, %v608, %v612
        %v614 = vshrl.u32 %v256, 16
        %v616 = vrot.slane %v614, 4
        %v617 = vor.u32 %v616, %v612
        %v618 = vrot.slane %v617, 4
        %v620 = vshll.u32 %v282, 16
        %v622 = vrot.slane %v620, 5
        %v623 = vsel %vm287, %v618, %v622
        %v625 = vshrl.u32 %v257, 16
        %v627 = vrot.slane %v625, 4
        %v628 = vshll.u32 %v257, 16
        %v630 = vrot.slane %v628, 5
        %v631 = vor.u32 %v627, %v630
        %v632 = vrot.slane %v631, 4
        %v634 = vshll.u32 %v258, 16
        %v636 = vrot.slane %v634, 5
        %v637 = vsel %vm287, %v632, %v636
        %v638 = vshrl.u32 %v258, 16
        %v640 = vrot.slane %v638, 4
        %v641 = vor.u32 %v640, %v636
        %v642 = vrot.slane %v641, 4
        %v644 = vshll.u32 %v283, 16
        %v646 = vrot.slane %v644, 5
        %v647 = vsel %vm287, %v642, %v646
        %v649 = vshrl.u32 %v259, 16
        %v651 = vrot.slane %v649, 4
        %v652 = vshll.u32 %v259, 16
        %v654 = vrot.slane %v652, 5
        %v655 = vor.u32 %v651, %v654
        %v656 = vrot.slane %v655, 4
        %v658 = vshll.u32 %v260, 16
        %v660 = vrot.slane %v658, 5
        %v661 = vsel %vm287, %v656, %v660
        %v662 = vshrl.u32 %v260, 16
        %v664 = vrot.slane %v662, 4
        %v665 = vor.u32 %v664, %v660
        %v666 = vrot.slane %v665, 4
        %v668 = vshll.u32 %v284, 16
        %v670 = vrot.slane %v668, 5
        %v671 = vsel %vm287, %v666, %v670
        %s672 = scalar_lea.vmem %s219, 32
        %v673 = vld [vmem:[%s672] sm:$0xf]
        %v674 = vld [vmem:[%s672 + $0x4] sm:$0xf]
        %v675 = vld [vmem:[%s672 + $0x8] sm:$0xf]
        %v676 = vld [vmem:[%s672 + $0xc] sm:$0xf]
        %v677 = vld [vmem:[%s672 + $0x10] sm:$0xf]
        %v678 = vld [vmem:[%s672 + $0x14] sm:$0xf]
        %v679 = vld [vmem:[%s672 + $0x18] sm:$0xf]
        %v680 = vld [vmem:[%s672 + $0x1c] sm:$0xf]
        %v681 = vunpack.c.l.b16 %v301
        %v682 = vunpack.c.l.b16 %v311
        %v683 = vunpack.c.l.b16 %v325
        %v684 = vunpack.c.l.b16 %v335
        %v685 = vunpack.c.l.b16 %v349
        %v686 = vunpack.c.l.b16 %v359
        %v687 = vunpack.c.l.b16 %v373
        %v688 = vunpack.c.l.b16 %v383
        %v689 = vunpack.c.l.b16 %v397
        %v690 = vunpack.c.l.b16 %v407
        %v691 = vunpack.c.l.b16 %v421
        %v692 = vunpack.c.l.b16 %v431
        %v693 = vunpack.c.l.b16 %v445
        %v694 = vunpack.c.l.b16 %v455
        %v695 = vunpack.c.l.b16 %v469
        %v696 = vunpack.c.l.b16 %v479
        %v697 = vunpack.c.l.b16 %v493
        %v698 = vunpack.c.l.b16 %v503
        %v699 = vunpack.c.l.b16 %v517
        %v700 = vunpack.c.l.b16 %v527
        %v701 = vunpack.c.l.b16 %v541
        %v702 = vunpack.c.l.b16 %v551
        %v703 = vunpack.c.l.b16 %v565
        %v704 = vunpack.c.l.b16 %v575
        %v705 = vunpack.c.l.b16 %v589
        %v706 = vunpack.c.l.b16 %v599
        %v707 = vunpack.c.l.b16 %v613
        %v708 = vunpack.c.l.b16 %v623
        %v709 = vunpack.c.l.b16 %v637
        %v710 = vunpack.c.l.b16 %v647
        %v711 = vunpack.c.l.b16 %v661
        %v712 = vunpack.c.l.b16 %v671
        %v713 = vpack.c.b16 %v682, %v681
        %v714 = vpack.c.b16 %v684, %v683
        %v715 = vpack.c.b16 %v686, %v685
        %v716 = vpack.c.b16 %v688, %v687
        %v717 = vpack.c.b16 %v690, %v689
        %v718 = vpack.c.b16 %v692, %v691
        %v719 = vpack.c.b16 %v694, %v693
        %v720 = vpack.c.b16 %v696, %v695
        %v721 = vpack.c.b16 %v698, %v697
        %v722 = vpack.c.b16 %v700, %v699
        %v723 = vpack.c.b16 %v702, %v701
        %v724 = vpack.c.b16 %v704, %v703
        %v725 = vpack.c.b16 %v706, %v705
        %v726 = vpack.c.b16 %v708, %v707
        %v727 = vpack.c.b16 %v710, %v709
        %v728 = vpack.c.b16 %v712, %v711
        %v737 = vunpack.c.l.b16 %v673
        %v738 = vunpack.c.l.b16 %v674
        %v739 = vunpack.c.l.b16 %v675
        %v740 = vunpack.c.l.b16 %v676
        %v741 = vunpack.c.l.b16 %v677
        %v742 = vunpack.c.l.b16 %v678
        %v743 = vunpack.c.l.b16 %v679
        %v744 = vunpack.c.l.b16 %v680
        %v745 = vpack.c.b16 %v738, %v737
        %v746 = vpack.c.b16 %v740, %v739
        %v747 = vpack.c.b16 %v742, %v741
        %v748 = vpack.c.b16 %v744, %v743
        %vm753 = vcmask 523264
        %v755 = vsel %vm753, %v713, 0
        %v758 = vsel %vm753, %v714, 0
        %v761 = vsel %vm753, %v715, 0
        %v764 = vsel %vm753, %v716, 0
        %v767 = vsel %vm753, %v717, 0
        %v770 = vsel %vm753, %v718, 0
        %v773 = vsel %vm753, %v719, 0
        %v776 = vsel %vm753, %v720, 0
        %v779 = vsel %vm753, %v721, 0
        %v782 = vsel %vm753, %v722, 0
        %v785 = vsel %vm753, %v723, 0
        %v788 = vsel %vm753, %v724, 0
        %v791 = vsel %vm753, %v725, 0
        %v794 = vsel %vm753, %v726, 0
        %v797 = vsel %vm753, %v727, 0
        %v800 = vsel %vm753, %v728, 0
        %802 = vmatpush.bf16.msra.mxu0 0
        %803 = vmatpush.bf16.msra.mxu0 0
        %804 = vmatpush.bf16.msra.mxu0 0
        %805 = vmatpush.bf16.msra.mxu0 0
        %806 = vmatpush.bf16.msra.mxu0 %v748
        %807 = vmatpush.bf16.msra.mxu0 %v747
        %808 = vmatpush.bf16.msra.mxu0 %v746
        %809 = vmatpush.bf16.msra.mxu0 %v745
        %810 = vmatmul.bf16.gmra.mxu0 %v755
        %v811 = vpop.f32.mrf.mxu0
        %v812 = vadd.f32 0.0, %v811
        %v813 = vpop.f32.mrf.mxu0
        %v814 = vadd.f32 0.0, %v813
        %815 = vmatmul.bf16.gmra.mxu0 %v758
        %v816 = vpop.f32.mrf.mxu0
        %v817 = vadd.f32 0.0, %v816
        %v818 = vpop.f32.mrf.mxu0
        %v819 = vadd.f32 0.0, %v818
        %820 = vmatmul.bf16.gmra.mxu0 %v761
        %v821 = vpop.f32.mrf.mxu0
        %v822 = vadd.f32 0.0, %v821
        %v823 = vpop.f32.mrf.mxu0
        %v824 = vadd.f32 0.0, %v823
        %825 = vmatmul.bf16.gmra.mxu0 %v764
        %v826 = vpop.f32.mrf.mxu0
        %v827 = vadd.f32 0.0, %v826
        %v828 = vpop.f32.mrf.mxu0
        %v829 = vadd.f32 0.0, %v828
        %830 = vmatmul.bf16.gmra.mxu0 %v767
        %v831 = vpop.f32.mrf.mxu0
        %v832 = vadd.f32 0.0, %v831
        %v833 = vpop.f32.mrf.mxu0
        %v834 = vadd.f32 0.0, %v833
        %835 = vmatmul.bf16.gmra.mxu0 %v770
        %v836 = vpop.f32.mrf.mxu0
        %v837 = vadd.f32 0.0, %v836
        %v838 = vpop.f32.mrf.mxu0
        %v839 = vadd.f32 0.0, %v838
        %840 = vmatmul.bf16.gmra.mxu0 %v773
        %v841 = vpop.f32.mrf.mxu0
        %v842 = vadd.f32 0.0, %v841
        %v843 = vpop.f32.mrf.mxu0
        %v844 = vadd.f32 0.0, %v843
        %845 = vmatmul.bf16.gmra.mxu0 %v776
        %v846 = vpop.f32.mrf.mxu0
        %v847 = vadd.f32 0.0, %v846
        %v848 = vpop.f32.mrf.mxu0
        %v849 = vadd.f32 0.0, %v848
        %850 = vmatmul.bf16.gmra.mxu0 %v779
        %v851 = vpop.f32.mrf.mxu0
        %v852 = vadd.f32 0.0, %v851
        %v853 = vpop.f32.mrf.mxu0
        %v854 = vadd.f32 0.0, %v853
        %855 = vmatmul.bf16.gmra.mxu0 %v782
        %v856 = vpop.f32.mrf.mxu0
        %v857 = vadd.f32 0.0, %v856
        %v858 = vpop.f32.mrf.mxu0
        %v859 = vadd.f32 0.0, %v858
        %860 = vmatmul.bf16.gmra.mxu0 %v785
        %v861 = vpop.f32.mrf.mxu0
        %v862 = vadd.f32 0.0, %v861
        %v863 = vpop.f32.mrf.mxu0
        %v864 = vadd.f32 0.0, %v863
        %865 = vmatmul.bf16.gmra.mxu0 %v788
        %v866 = vpop.f32.mrf.mxu0
        %v867 = vadd.f32 0.0, %v866
        %v868 = vpop.f32.mrf.mxu0
        %v869 = vadd.f32 0.0, %v868
        %870 = vmatmul.bf16.gmra.mxu0 %v791
        %v871 = vpop.f32.mrf.mxu0
        %v872 = vadd.f32 0.0, %v871
        %v873 = vpop.f32.mrf.mxu0
        %v874 = vadd.f32 0.0, %v873
        %875 = vmatmul.bf16.gmra.mxu0 %v794
        %v876 = vpop.f32.mrf.mxu0
        %v877 = vadd.f32 0.0, %v876
        %v878 = vpop.f32.mrf.mxu0
        %v879 = vadd.f32 0.0, %v878
        %880 = vmatmul.bf16.gmra.mxu0 %v797
        %v881 = vpop.f32.mrf.mxu0
        %v882 = vadd.f32 0.0, %v881
        %v883 = vpop.f32.mrf.mxu0
        %v884 = vadd.f32 0.0, %v883
        %885 = vmatmul.bf16.gmra.mxu0 %v800
        %v886 = vpop.f32.mrf.mxu0
        %v887 = vadd.f32 0.0, %v886
        %v888 = vpop.f32.mrf.mxu0
        %v889 = vadd.f32 0.0, %v888
        %890 = vdwg.mxu0
        %v923 = vunpack.c.l.b16 %v229
        %v924 = vunpack.c.l.b16 %v230
        %v925 = vunpack.c.l.b16 %v231
        %v926 = vunpack.c.l.b16 %v232
        %v927 = vunpack.c.l.b16 %v233
        %v928 = vunpack.c.l.b16 %v234
        %v929 = vunpack.c.l.b16 %v235
        %v930 = vunpack.c.l.b16 %v236
        %v931 = vunpack.c.l.b16 %v237
        %v932 = vunpack.c.l.b16 %v238
        %v933 = vunpack.c.l.b16 %v239
        %v934 = vunpack.c.l.b16 %v240
        %v935 = vunpack.c.l.b16 %v241
        %v936 = vunpack.c.l.b16 %v242
        %v937 = vunpack.c.l.b16 %v243
        %v938 = vunpack.c.l.b16 %v244
        %v939 = vunpack.c.l.b16 %v245
        %v940 = vunpack.c.l.b16 %v246
        %v941 = vunpack.c.l.b16 %v247
        %v942 = vunpack.c.l.b16 %v248
        %v943 = vunpack.c.l.b16 %v249
        %v944 = vunpack.c.l.b16 %v250
        %v945 = vunpack.c.l.b16 %v251
        %v946 = vunpack.c.l.b16 %v252
        %v947 = vunpack.c.l.b16 %v253
        %v948 = vunpack.c.l.b16 %v254
        %v949 = vunpack.c.l.b16 %v255
        %v950 = vunpack.c.l.b16 %v256
        %v951 = vunpack.c.l.b16 %v257
        %v952 = vunpack.c.l.b16 %v258
        %v953 = vunpack.c.l.b16 %v259
        %v954 = vunpack.c.l.b16 %v260
        %v955 = vpack.c.b16 %v924, %v923
        %v956 = vpack.c.b16 %v926, %v925
        %v957 = vpack.c.b16 %v928, %v927
        %v958 = vpack.c.b16 %v930, %v929
        %v959 = vpack.c.b16 %v932, %v931
        %v960 = vpack.c.b16 %v934, %v933
        %v961 = vpack.c.b16 %v936, %v935
        %v962 = vpack.c.b16 %v938, %v937
        %v963 = vpack.c.b16 %v940, %v939
        %v964 = vpack.c.b16 %v942, %v941
        %v965 = vpack.c.b16 %v944, %v943
        %v966 = vpack.c.b16 %v946, %v945
        %v967 = vpack.c.b16 %v948, %v947
        %v968 = vpack.c.b16 %v950, %v949
        %v969 = vpack.c.b16 %v952, %v951
        %v970 = vpack.c.b16 %v954, %v953
        %v979 = vunpack.c.l.b16 %v261
        %v980 = vunpack.c.l.b16 %v262
        %v981 = vunpack.c.l.b16 %v263
        %v982 = vunpack.c.l.b16 %v264
        %v983 = vunpack.c.l.b16 %v265
        %v984 = vunpack.c.l.b16 %v266
        %v985 = vunpack.c.l.b16 %v267
        %v986 = vunpack.c.l.b16 %v268
        %v987 = vpack.c.b16 %v980, %v979
        %v988 = vpack.c.b16 %v982, %v981
        %v989 = vpack.c.b16 %v984, %v983
        %v990 = vpack.c.b16 %v986, %v985
        %v996 = vsel %vm753, %v955, 0
        %v999 = vsel %vm753, %v956, 0
        %v1002 = vsel %vm753, %v957, 0
        %v1005 = vsel %vm753, %v958, 0
        %v1008 = vsel %vm753, %v959, 0
        %v1011 = vsel %vm753, %v960, 0
        %v1014 = vsel %vm753, %v961, 0
        %v1017 = vsel %vm753, %v962, 0
        %v1020 = vsel %vm753, %v963, 0
        %v1023 = vsel %vm753, %v964, 0
        %v1026 = vsel %vm753, %v965, 0
        %v1029 = vsel %vm753, %v966, 0
        %v1032 = vsel %vm753, %v967, 0
        %v1035 = vsel %vm753, %v968, 0
        %v1038 = vsel %vm753, %v969, 0
        %v1041 = vsel %vm753, %v970, 0
        %1043 = vmatpush.bf16.msra.mxu0 0
        %1044 = vmatpush.bf16.msra.mxu0 0
        %1045 = vmatpush.bf16.msra.mxu0 0
        %1046 = vmatpush.bf16.msra.mxu0 0
        %1047 = vmatpush.bf16.msra.mxu0 %v990
        %1048 = vmatpush.bf16.msra.mxu0 %v989
        %1049 = vmatpush.bf16.msra.mxu0 %v988
        %1050 = vmatpush.bf16.msra.mxu0 %v987
        %1051 = vmatmul.bf16.gmra.mxu0 %v996
        %v1052 = vpop.f32.mrf.mxu0
        %v1053 = vadd.f32 %v812, %v1052
        %v1054 = vpop.f32.mrf.mxu0
        %v1055 = vadd.f32 %v814, %v1054
        %1056 = vmatmul.bf16.gmra.mxu0 %v999
        %v1057 = vpop.f32.mrf.mxu0
        %v1058 = vadd.f32 %v817, %v1057
        %v1059 = vpop.f32.mrf.mxu0
        %v1060 = vadd.f32 %v819, %v1059
        %1061 = vmatmul.bf16.gmra.mxu0 %v1002
        %v1062 = vpop.f32.mrf.mxu0
        %v1063 = vadd.f32 %v822, %v1062
        %v1064 = vpop.f32.mrf.mxu0
        %v1065 = vadd.f32 %v824, %v1064
        %1066 = vmatmul.bf16.gmra.mxu0 %v1005
        %v1067 = vpop.f32.mrf.mxu0
        %v1068 = vadd.f32 %v827, %v1067
        %v1069 = vpop.f32.mrf.mxu0
        %v1070 = vadd.f32 %v829, %v1069
        %1071 = vmatmul.bf16.gmra.mxu0 %v1008
        %v1072 = vpop.f32.mrf.mxu0
        %v1073 = vadd.f32 %v832, %v1072
        %v1074 = vpop.f32.mrf.mxu0
        %v1075 = vadd.f32 %v834, %v1074
        %1076 = vmatmul.bf16.gmra.mxu0 %v1011
        %v1077 = vpop.f32.mrf.mxu0
        %v1078 = vadd.f32 %v837, %v1077
        %v1079 = vpop.f32.mrf.mxu0
        %v1080 = vadd.f32 %v839, %v1079
        %1081 = vmatmul.bf16.gmra.mxu0 %v1014
        %v1082 = vpop.f32.mrf.mxu0
        %v1083 = vadd.f32 %v842, %v1082
        %v1084 = vpop.f32.mrf.mxu0
        %v1085 = vadd.f32 %v844, %v1084
        %1086 = vmatmul.bf16.gmra.mxu0 %v1017
        %v1087 = vpop.f32.mrf.mxu0
        %v1088 = vadd.f32 %v847, %v1087
        %v1089 = vpop.f32.mrf.mxu0
        %v1090 = vadd.f32 %v849, %v1089
        %1091 = vmatmul.bf16.gmra.mxu0 %v1020
        %v1092 = vpop.f32.mrf.mxu0
        %v1093 = vadd.f32 %v852, %v1092
        %v1094 = vpop.f32.mrf.mxu0
        %v1095 = vadd.f32 %v854, %v1094
        %1096 = vmatmul.bf16.gmra.mxu0 %v1023
        %v1097 = vpop.f32.mrf.mxu0
        %v1098 = vadd.f32 %v857, %v1097
        %v1099 = vpop.f32.mrf.mxu0
        %v1100 = vadd.f32 %v859, %v1099
        %1101 = vmatmul.bf16.gmra.mxu0 %v1026
        %v1102 = vpop.f32.mrf.mxu0
        %v1103 = vadd.f32 %v862, %v1102
        %v1104 = vpop.f32.mrf.mxu0
        %v1105 = vadd.f32 %v864, %v1104
        %1106 = vmatmul.bf16.gmra.mxu0 %v1029
        %v1107 = vpop.f32.mrf.mxu0
        %v1108 = vadd.f32 %v867, %v1107
        %v1109 = vpop.f32.mrf.mxu0
        %v1110 = vadd.f32 %v869, %v1109
        %1111 = vmatmul.bf16.gmra.mxu0 %v1032
        %v1112 = vpop.f32.mrf.mxu0
        %v1113 = vadd.f32 %v872, %v1112
        %v1114 = vpop.f32.mrf.mxu0
        %v1115 = vadd.f32 %v874, %v1114
        %1116 = vmatmul.bf16.gmra.mxu0 %v1035
        %v1117 = vpop.f32.mrf.mxu0
        %v1118 = vadd.f32 %v877, %v1117
        %v1119 = vpop.f32.mrf.mxu0
        %v1120 = vadd.f32 %v879, %v1119
        %1121 = vmatmul.bf16.gmra.mxu0 %v1038
        %v1122 = vpop.f32.mrf.mxu0
        %v1123 = vadd.f32 %v882, %v1122
        %v1124 = vpop.f32.mrf.mxu0
        %v1125 = vadd.f32 %v884, %v1124
        %1126 = vmatmul.bf16.gmra.mxu0 %v1041
        %v1127 = vpop.f32.mrf.mxu0
        %v1128 = vadd.f32 %v887, %v1127
        %v1129 = vpop.f32.mrf.mxu0
        %v1130 = vadd.f32 %v889, %v1129
        %1131 = vdwg.mxu0
        %v1132 = vld [vmem:[%s228] sm:$0xe]
        %v1133 = vld [vmem:[%s228 + $0xc] sm:$0xe]
        %v1134 = vld [vmem:[%s228 + $0x18] sm:$0xe]
        %v1135 = vld [vmem:[%s228 + $0x24] sm:$0xe]
        %v1136 = vld [vmem:[%s228 + $0x30] sm:$0xe]
        %v1137 = vld [vmem:[%s228 + $0x3c] sm:$0xe]
        %v1138 = vld [vmem:[%s228 + $0x48] sm:$0xe]
        %v1139 = vld [vmem:[%s228 + $0x54] sm:$0xe]
        %v1140 = vld [vmem:[%s228 + $0x60] sm:$0xe]
        %v1141 = vld [vmem:[%s228 + $0x6c] sm:$0xe]
        %v1142 = vld [vmem:[%s228 + $0x78] sm:$0xe]
        %v1143 = vld [vmem:[%s228 + $0x84] sm:$0xe]
        %v1144 = vld [vmem:[%s228 + $0x90] sm:$0xe]
        %v1145 = vld [vmem:[%s228 + $0x9c] sm:$0xe]
        %v1146 = vld [vmem:[%s228 + $0xa8] sm:$0xe]
        %v1147 = vld [vmem:[%s228 + $0xb4] sm:$0xe]
        %vm1180 = vcmask 1042432
        %vm1181 = vcmask 1046532
        %vm1182 = vmor %vm1180, %vm1181
        %v1183 = vrot.slane %v1132, 5
        %v1184 = vrot.slane %v1183, 4
        %v1185 = vrot.slane %v230, 5
        %v1186 = vsel %vm1182, %v1184, %v1185
        %v1187 = vrot.slane %v1185, 4
        %v1188 = vrot.slane %v269, 5
        %v1189 = vsel %vm1182, %v1187, %v1188
        %v1190 = vrot.slane %v1133, 5
        %v1191 = vrot.slane %v1190, 4
        %v1192 = vrot.slane %v232, 5
        %v1193 = vsel %vm1182, %v1191, %v1192
        %v1194 = vrot.slane %v1192, 4
        %v1195 = vrot.slane %v270, 5
        %v1196 = vsel %vm1182, %v1194, %v1195
        %v1197 = vrot.slane %v1134, 5
        %v1198 = vrot.slane %v1197, 4
        %v1199 = vrot.slane %v234, 5
        %v1200 = vsel %vm1182, %v1198, %v1199
        %v1201 = vrot.slane %v1199, 4
        %v1202 = vrot.slane %v271, 5
        %v1203 = vsel %vm1182, %v1201, %v1202
        %v1204 = vrot.slane %v1135, 5
        %v1205 = vrot.slane %v1204, 4
        %v1206 = vrot.slane %v236, 5
        %v1207 = vsel %vm1182, %v1205, %v1206
        %v1208 = vrot.slane %v1206, 4
        %v1209 = vrot.slane %v272, 5
        %v1210 = vsel %vm1182, %v1208, %v1209
        %v1211 = vrot.slane %v1136, 5
        %v1212 = vrot.slane %v1211, 4
        %v1213 = vrot.slane %v238, 5
        %v1214 = vsel %vm1182, %v1212, %v1213
        %v1215 = vrot.slane %v1213, 4
        %v1216 = vrot.slane %v273, 5
        %v1217 = vsel %vm1182, %v1215, %v1216
        %v1218 = vrot.slane %v1137, 5
        %v1219 = vrot.slane %v1218, 4
        %v1220 = vrot.slane %v240, 5
        %v1221 = vsel %vm1182, %v1219, %v1220
        %v1222 = vrot.slane %v1220, 4
        %v1223 = vrot.slane %v274, 5
        %v1224 = vsel %vm1182, %v1222, %v1223
        %v1225 = vrot.slane %v1138, 5
        %v1226 = vrot.slane %v1225, 4
        %v1227 = vrot.slane %v242, 5
        %v1228 = vsel %vm1182, %v1226, %v1227
        %v1229 = vrot.slane %v1227, 4
        %v1230 = vrot.slane %v275, 5
        %v1231 = vsel %vm1182, %v1229, %v1230
        %v1232 = vrot.slane %v1139, 5
        %v1233 = vrot.slane %v1232, 4
        %v1234 = vrot.slane %v244, 5
        %v1235 = vsel %vm1182, %v1233, %v1234
        %v1236 = vrot.slane %v1234, 4
        %v1237 = vrot.slane %v276, 5
        %v1238 = vsel %vm1182, %v1236, %v1237
        %v1239 = vrot.slane %v1140, 5
        %v1240 = vrot.slane %v1239, 4
        %v1241 = vrot.slane %v246, 5
        %v1242 = vsel %vm1182, %v1240, %v1241
        %v1243 = vrot.slane %v1241, 4
        %v1244 = vrot.slane %v277, 5
        %v1245 = vsel %vm1182, %v1243, %v1244
        %v1246 = vrot.slane %v1141, 5
        %v1247 = vrot.slane %v1246, 4
        %v1248 = vrot.slane %v248, 5
        %v1249 = vsel %vm1182, %v1247, %v1248
        %v1250 = vrot.slane %v1248, 4
        %v1251 = vrot.slane %v278, 5
        %v1252 = vsel %vm1182, %v1250, %v1251
        %v1253 = vrot.slane %v1142, 5
        %v1254 = vrot.slane %v1253, 4
        %v1255 = vrot.slane %v250, 5
        %v1256 = vsel %vm1182, %v1254, %v1255
        %v1257 = vrot.slane %v1255, 4
        %v1258 = vrot.slane %v279, 5
        %v1259 = vsel %vm1182, %v1257, %v1258
        %v1260 = vrot.slane %v1143, 5
        %v1261 = vrot.slane %v1260, 4
        %v1262 = vrot.slane %v252, 5
        %v1263 = vsel %vm1182, %v1261, %v1262
        %v1264 = vrot.slane %v1262, 4
        %v1265 = vrot.slane %v280, 5
        %v1266 = vsel %vm1182, %v1264, %v1265
        %v1267 = vrot.slane %v1144, 5
        %v1268 = vrot.slane %v1267, 4
        %v1269 = vrot.slane %v254, 5
        %v1270 = vsel %vm1182, %v1268, %v1269
        %v1271 = vrot.slane %v1269, 4
        %v1272 = vrot.slane %v281, 5
        %v1273 = vsel %vm1182, %v1271, %v1272
        %v1274 = vrot.slane %v1145, 5
        %v1275 = vrot.slane %v1274, 4
        %v1276 = vrot.slane %v256, 5
        %v1277 = vsel %vm1182, %v1275, %v1276
        %v1278 = vrot.slane %v1276, 4
        %v1279 = vrot.slane %v282, 5
        %v1280 = vsel %vm1182, %v1278, %v1279
        %v1281 = vrot.slane %v1146, 5
        %v1282 = vrot.slane %v1281, 4
        %v1283 = vrot.slane %v258, 5
        %v1284 = vsel %vm1182, %v1282, %v1283
        %v1285 = vrot.slane %v1283, 4
        %v1286 = vrot.slane %v283, 5
        %v1287 = vsel %vm1182, %v1285, %v1286
        %v1288 = vrot.slane %v1147, 5
        %v1289 = vrot.slane %v1288, 4
        %v1290 = vrot.slane %v260, 5
        %v1291 = vsel %vm1182, %v1289, %v1290
        %v1292 = vrot.slane %v1290, 4
        %v1293 = vrot.slane %v284, 5
        %v1294 = vsel %vm1182, %v1292, %v1293
        %s1295 = scalar_lea.vmem %s219, 64
        %v1296 = vld [vmem:[%s1295] sm:$0xf]
        %v1297 = vld [vmem:[%s1295 + $0x4] sm:$0xf]
        %v1298 = vld [vmem:[%s1295 + $0x8] sm:$0xf]
        %v1299 = vld [vmem:[%s1295 + $0xc] sm:$0xf]
        %v1300 = vld [vmem:[%s1295 + $0x10] sm:$0xf]
        %v1301 = vld [vmem:[%s1295 + $0x14] sm:$0xf]
        %v1302 = vld [vmem:[%s1295 + $0x18] sm:$0xf]
        %v1303 = vld [vmem:[%s1295 + $0x1c] sm:$0xf]
        %v1304 = vunpack.c.l.b16 %v1186
        %v1305 = vunpack.c.l.b16 %v1189
        %v1306 = vunpack.c.l.b16 %v1193
        %v1307 = vunpack.c.l.b16 %v1196
        %v1308 = vunpack.c.l.b16 %v1200
        %v1309 = vunpack.c.l.b16 %v1203
        %v1310 = vunpack.c.l.b16 %v1207
        %v1311 = vunpack.c.l.b16 %v1210
        %v1312 = vunpack.c.l.b16 %v1214
        %v1313 = vunpack.c.l.b16 %v1217
        %v1314 = vunpack.c.l.b16 %v1221
        %v1315 = vunpack.c.l.b16 %v1224
        %v1316 = vunpack.c.l.b16 %v1228
        %v1317 = vunpack.c.l.b16 %v1231
        %v1318 = vunpack.c.l.b16 %v1235
        %v1319 = vunpack.c.l.b16 %v1238
        %v1320 = vunpack.c.l.b16 %v1242
        %v1321 = vunpack.c.l.b16 %v1245
        %v1322 = vunpack.c.l.b16 %v1249
        %v1323 = vunpack.c.l.b16 %v1252
        %v1324 = vunpack.c.l.b16 %v1256
        %v1325 = vunpack.c.l.b16 %v1259
        %v1326 = vunpack.c.l.b16 %v1263
        %v1327 = vunpack.c.l.b16 %v1266
        %v1328 = vunpack.c.l.b16 %v1270
        %v1329 = vunpack.c.l.b16 %v1273
        %v1330 = vunpack.c.l.b16 %v1277
        %v1331 = vunpack.c.l.b16 %v1280
        %v1332 = vunpack.c.l.b16 %v1284
        %v1333 = vunpack.c.l.b16 %v1287
        %v1334 = vunpack.c.l.b16 %v1291
        %v1335 = vunpack.c.l.b16 %v1294
        %v1336 = vpack.c.b16 %v1305, %v1304
        %v1337 = vpack.c.b16 %v1307, %v1306
        %v1338 = vpack.c.b16 %v1309, %v1308
        %v1339 = vpack.c.b16 %v1311, %v1310
        %v1340 = vpack.c.b16 %v1313, %v1312
        %v1341 = vpack.c.b16 %v1315, %v1314
        %v1342 = vpack.c.b16 %v1317, %v1316
        %v1343 = vpack.c.b16 %v1319, %v1318
        %v1344 = vpack.c.b16 %v1321, %v1320
        %v1345 = vpack.c.b16 %v1323, %v1322
        %v1346 = vpack.c.b16 %v1325, %v1324
        %v1347 = vpack.c.b16 %v1327, %v1326
        %v1348 = vpack.c.b16 %v1329, %v1328
        %v1349 = vpack.c.b16 %v1331, %v1330
        %v1350 = vpack.c.b16 %v1333, %v1332
        %v1351 = vpack.c.b16 %v1335, %v1334
        %v1360 = vunpack.c.l.b16 %v1296
        %v1361 = vunpack.c.l.b16 %v1297
        %v1362 = vunpack.c.l.b16 %v1298
        %v1363 = vunpack.c.l.b16 %v1299
        %v1364 = vunpack.c.l.b16 %v1300
        %v1365 = vunpack.c.l.b16 %v1301
        %v1366 = vunpack.c.l.b16 %v1302
        %v1367 = vunpack.c.l.b16 %v1303
        %v1368 = vpack.c.b16 %v1361, %v1360
        %v1369 = vpack.c.b16 %v1363, %v1362
        %v1370 = vpack.c.b16 %v1365, %v1364
        %v1371 = vpack.c.b16 %v1367, %v1366
        %v1377 = vsel %vm753, %v1336, 0
        %v1380 = vsel %vm753, %v1337, 0
        %v1383 = vsel %vm753, %v1338, 0
        %v1386 = vsel %vm753, %v1339, 0
        %v1389 = vsel %vm753, %v1340, 0
        %v1392 = vsel %vm753, %v1341, 0
        %v1395 = vsel %vm753, %v1342, 0
        %v1398 = vsel %vm753, %v1343, 0
        %v1401 = vsel %vm753, %v1344, 0
        %v1404 = vsel %vm753, %v1345, 0
        %v1407 = vsel %vm753, %v1346, 0
        %v1410 = vsel %vm753, %v1347, 0
        %v1413 = vsel %vm753, %v1348, 0
        %v1416 = vsel %vm753, %v1349, 0
        %v1419 = vsel %vm753, %v1350, 0
        %v1422 = vsel %vm753, %v1351, 0
        %1424 = vmatpush.bf16.msra.mxu0 0
        %1425 = vmatpush.bf16.msra.mxu0 0
        %1426 = vmatpush.bf16.msra.mxu0 0
        %1427 = vmatpush.bf16.msra.mxu0 0
        %1428 = vmatpush.bf16.msra.mxu0 %v1371
        %1429 = vmatpush.bf16.msra.mxu0 %v1370
        %1430 = vmatpush.bf16.msra.mxu0 %v1369
        %1431 = vmatpush.bf16.msra.mxu0 %v1368
        %1432 = vmatmul.bf16.gmra.mxu0 %v1377
        %v1433 = vpop.f32.mrf.mxu0
        %v1434 = vadd.f32 0.0, %v1433
        %v1435 = vpop.f32.mrf.mxu0
        %v1436 = vadd.f32 0.0, %v1435
        %1437 = vmatmul.bf16.gmra.mxu0 %v1380
        %v1438 = vpop.f32.mrf.mxu0
        %v1439 = vadd.f32 0.0, %v1438
        %v1440 = vpop.f32.mrf.mxu0
        %v1441 = vadd.f32 0.0, %v1440
        %1442 = vmatmul.bf16.gmra.mxu0 %v1383
        %v1443 = vpop.f32.mrf.mxu0
        %v1444 = vadd.f32 0.0, %v1443
        %v1445 = vpop.f32.mrf.mxu0
        %v1446 = vadd.f32 0.0, %v1445
        %1447 = vmatmul.bf16.gmra.mxu0 %v1386
        %v1448 = vpop.f32.mrf.mxu0
        %v1449 = vadd.f32 0.0, %v1448
        %v1450 = vpop.f32.mrf.mxu0
        %v1451 = vadd.f32 0.0, %v1450
        %1452 = vmatmul.bf16.gmra.mxu0 %v1389
        %v1453 = vpop.f32.mrf.mxu0
        %v1454 = vadd.f32 0.0, %v1453
        %v1455 = vpop.f32.mrf.mxu0
        %v1456 = vadd.f32 0.0, %v1455
        %1457 = vmatmul.bf16.gmra.mxu0 %v1392
        %v1458 = vpop.f32.mrf.mxu0
        %v1459 = vadd.f32 0.0, %v1458
        %v1460 = vpop.f32.mrf.mxu0
        %v1461 = vadd.f32 0.0, %v1460
        %1462 = vmatmul.bf16.gmra.mxu0 %v1395
        %v1463 = vpop.f32.mrf.mxu0
        %v1464 = vadd.f32 0.0, %v1463
        %v1465 = vpop.f32.mrf.mxu0
        %v1466 = vadd.f32 0.0, %v1465
        %1467 = vmatmul.bf16.gmra.mxu0 %v1398
        %v1468 = vpop.f32.mrf.mxu0
        %v1469 = vadd.f32 0.0, %v1468
        %v1470 = vpop.f32.mrf.mxu0
        %v1471 = vadd.f32 0.0, %v1470
        %1472 = vmatmul.bf16.gmra.mxu0 %v1401
        %v1473 = vpop.f32.mrf.mxu0
        %v1474 = vadd.f32 0.0, %v1473
        %v1475 = vpop.f32.mrf.mxu0
        %v1476 = vadd.f32 0.0, %v1475
        %1477 = vmatmul.bf16.gmra.mxu0 %v1404
        %v1478 = vpop.f32.mrf.mxu0
        %v1479 = vadd.f32 0.0, %v1478
        %v1480 = vpop.f32.mrf.mxu0
        %v1481 = vadd.f32 0.0, %v1480
        %1482 = vmatmul.bf16.gmra.mxu0 %v1407
        %v1483 = vpop.f32.mrf.mxu0
        %v1484 = vadd.f32 0.0, %v1483
        %v1485 = vpop.f32.mrf.mxu0
        %v1486 = vadd.f32 0.0, %v1485
        %1487 = vmatmul.bf16.gmra.mxu0 %v1410
        %v1488 = vpop.f32.mrf.mxu0
        %v1489 = vadd.f32 0.0, %v1488
        %v1490 = vpop.f32.mrf.mxu0
        %v1491 = vadd.f32 0.0, %v1490
        %1492 = vmatmul.bf16.gmra.mxu0 %v1413
        %v1493 = vpop.f32.mrf.mxu0
        %v1494 = vadd.f32 0.0, %v1493
        %v1495 = vpop.f32.mrf.mxu0
        %v1496 = vadd.f32 0.0, %v1495
        %1497 = vmatmul.bf16.gmra.mxu0 %v1416
        %v1498 = vpop.f32.mrf.mxu0
        %v1499 = vadd.f32 0.0, %v1498
        %v1500 = vpop.f32.mrf.mxu0
        %v1501 = vadd.f32 0.0, %v1500
        %1502 = vmatmul.bf16.gmra.mxu0 %v1419
        %v1503 = vpop.f32.mrf.mxu0
        %v1504 = vadd.f32 0.0, %v1503
        %v1505 = vpop.f32.mrf.mxu0
        %v1506 = vadd.f32 0.0, %v1505
        %1507 = vmatmul.bf16.gmra.mxu0 %v1422
        %v1508 = vpop.f32.mrf.mxu0
        %v1509 = vadd.f32 0.0, %v1508
        %v1510 = vpop.f32.mrf.mxu0
        %v1511 = vadd.f32 0.0, %v1510
        %1512 = vdwg.mxu0
        %v1513 = vadd.f32 %v1053, %v1434
        %v1514 = vadd.f32 %v1055, %v1436
        %v1515 = vadd.f32 %v1058, %v1439
        %v1516 = vadd.f32 %v1060, %v1441
        %v1517 = vadd.f32 %v1063, %v1444
        %v1518 = vadd.f32 %v1065, %v1446
        %v1519 = vadd.f32 %v1068, %v1449
        %v1520 = vadd.f32 %v1070, %v1451
        %v1521 = vadd.f32 %v1073, %v1454
        %v1522 = vadd.f32 %v1075, %v1456
        %v1523 = vadd.f32 %v1078, %v1459
        %v1524 = vadd.f32 %v1080, %v1461
        %v1525 = vadd.f32 %v1083, %v1464
        %v1526 = vadd.f32 %v1085, %v1466
        %v1527 = vadd.f32 %v1088, %v1469
        %v1528 = vadd.f32 %v1090, %v1471
        %v1529 = vadd.f32 %v1093, %v1474
        %v1530 = vadd.f32 %v1095, %v1476
        %v1531 = vadd.f32 %v1098, %v1479
        %v1532 = vadd.f32 %v1100, %v1481
        %v1533 = vadd.f32 %v1103, %v1484
        %v1534 = vadd.f32 %v1105, %v1486
        %v1535 = vadd.f32 %v1108, %v1489
        %v1536 = vadd.f32 %v1110, %v1491
        %v1537 = vadd.f32 %v1113, %v1494
        %v1538 = vadd.f32 %v1115, %v1496
        %v1539 = vadd.f32 %v1118, %v1499
        %v1540 = vadd.f32 %v1120, %v1501
        %v1541 = vadd.f32 %v1123, %v1504
        %v1542 = vadd.f32 %v1125, %v1506
        %v1543 = vadd.f32 %v1128, %v1509
        %v1544 = vadd.f32 %v1130, %v1511
        %s1545 = sadd.s32 %s225, 1
        %s1546 = smul.u32 %s1545, 3
        %s1547 = smul.addr %s1546, 4
        %s1548 = scalar_lea.vmem %s215, %s1547
        %v1549 = vld [vmem:[%s1548] sm:$0xf]
        %v1550 = vld [vmem:[%s1548 + $0x4] sm:$0xf]
        %v1551 = vld [vmem:[%s1548 + $0xc] sm:$0xf]
        %v1552 = vld [vmem:[%s1548 + $0x10] sm:$0xf]
        %v1553 = vld [vmem:[%s1548 + $0x18] sm:$0xf]
        %v1554 = vld [vmem:[%s1548 + $0x1c] sm:$0xf]
        %v1555 = vld [vmem:[%s1548 + $0x24] sm:$0xf]
        %v1556 = vld [vmem:[%s1548 + $0x28] sm:$0xf]
        %v1557 = vld [vmem:[%s1548 + $0x30] sm:$0xf]
        %v1558 = vld [vmem:[%s1548 + $0x34] sm:$0xf]
        %v1559 = vld [vmem:[%s1548 + $0x3c] sm:$0xf]
        %v1560 = vld [vmem:[%s1548 + $0x40] sm:$0xf]
        %v1561 = vld [vmem:[%s1548 + $0x48] sm:$0xf]
        %v1562 = vld [vmem:[%s1548 + $0x4c] sm:$0xf]
        %v1563 = vld [vmem:[%s1548 + $0x54] sm:$0xf]
        %v1564 = vld [vmem:[%s1548 + $0x58] sm:$0xf]
        %v1565 = vld [vmem:[%s1548 + $0x60] sm:$0xf]
        %v1566 = vld [vmem:[%s1548 + $0x64] sm:$0xf]
        %v1567 = vld [vmem:[%s1548 + $0x6c] sm:$0xf]
        %v1568 = vld [vmem:[%s1548 + $0x70] sm:$0xf]
        %v1569 = vld [vmem:[%s1548 + $0x78] sm:$0xf]
        %v1570 = vld [vmem:[%s1548 + $0x7c] sm:$0xf]
        %v1571 = vld [vmem:[%s1548 + $0x84] sm:$0xf]
        %v1572 = vld [vmem:[%s1548 + $0x88] sm:$0xf]
        %v1573 = vld [vmem:[%s1548 + $0x90] sm:$0xf]
        %v1574 = vld [vmem:[%s1548 + $0x94] sm:$0xf]
        %v1575 = vld [vmem:[%s1548 + $0x9c] sm:$0xf]
        %v1576 = vld [vmem:[%s1548 + $0xa0] sm:$0xf]
        %v1577 = vld [vmem:[%s1548 + $0xa8] sm:$0xf]
        %v1578 = vld [vmem:[%s1548 + $0xac] sm:$0xf]
        %v1579 = vld [vmem:[%s1548 + $0xb4] sm:$0xf]
        %v1580 = vld [vmem:[%s1548 + $0xb8] sm:$0xf]
        %s1581 = scalar_lea.vmem %s219, 96
        %v1582 = vld [vmem:[%s1581] sm:$0xf]
        %v1583 = vld [vmem:[%s1581 + $0x4] sm:$0xf]
        %v1584 = vld [vmem:[%s1581 + $0x8] sm:$0xf]
        %v1585 = vld [vmem:[%s1581 + $0xc] sm:$0xf]
        %v1586 = vld [vmem:[%s1581 + $0x10] sm:$0xf]
        %v1587 = vld [vmem:[%s1581 + $0x14] sm:$0xf]
        %v1588 = vld [vmem:[%s1581 + $0x18] sm:$0xf]
        %v1589 = vld [vmem:[%s1581 + $0x1c] sm:$0xf]
        %v1622 = vunpack.c.l.b16 %v1549
        %v1623 = vunpack.c.l.b16 %v1550
        %v1624 = vunpack.c.l.b16 %v1551
        %v1625 = vunpack.c.l.b16 %v1552
        %v1626 = vunpack.c.l.b16 %v1553
        %v1627 = vunpack.c.l.b16 %v1554
        %v1628 = vunpack.c.l.b16 %v1555
        %v1629 = vunpack.c.l.b16 %v1556
        %v1630 = vunpack.c.l.b16 %v1557
        %v1631 = vunpack.c.l.b16 %v1558
        %v1632 = vunpack.c.l.b16 %v1559
        %v1633 = vunpack.c.l.b16 %v1560
        %v1634 = vunpack.c.l.b16 %v1561
        %v1635 = vunpack.c.l.b16 %v1562
        %v1636 = vunpack.c.l.b16 %v1563
        %v1637 = vunpack.c.l.b16 %v1564
        %v1638 = vunpack.c.l.b16 %v1565
        %v1639 = vunpack.c.l.b16 %v1566
        %v1640 = vunpack.c.l.b16 %v1567
        %v1641 = vunpack.c.l.b16 %v1568
        %v1642 = vunpack.c.l.b16 %v1569
        %v1643 = vunpack.c.l.b16 %v1570
        %v1644 = vunpack.c.l.b16 %v1571
        %v1645 = vunpack.c.l.b16 %v1572
        %v1646 = vunpack.c.l.b16 %v1573
        %v1647 = vunpack.c.l.b16 %v1574
        %v1648 = vunpack.c.l.b16 %v1575
        %v1649 = vunpack.c.l.b16 %v1576
        %v1650 = vunpack.c.l.b16 %v1577
        %v1651 = vunpack.c.l.b16 %v1578
        %v1652 = vunpack.c.l.b16 %v1579
        %v1653 = vunpack.c.l.b16 %v1580
        %v1654 = vpack.c.b16 %v1623, %v1622
        %v1655 = vpack.c.b16 %v1625, %v1624
        %v1656 = vpack.c.b16 %v1627, %v1626
        %v1657 = vpack.c.b16 %v1629, %v1628
        %v1658 = vpack.c.b16 %v1631, %v1630
        %v1659 = vpack.c.b16 %v1633, %v1632
        %v1660 = vpack.c.b16 %v1635, %v1634
        %v1661 = vpack.c.b16 %v1637, %v1636
        %v1662 = vpack.c.b16 %v1639, %v1638
        %v1663 = vpack.c.b16 %v1641, %v1640
        %v1664 = vpack.c.b16 %v1643, %v1642
        %v1665 = vpack.c.b16 %v1645, %v1644
        %v1666 = vpack.c.b16 %v1647, %v1646
        %v1667 = vpack.c.b16 %v1649, %v1648
        %v1668 = vpack.c.b16 %v1651, %v1650
        %v1669 = vpack.c.b16 %v1653, %v1652
        %v1678 = vunpack.c.l.b16 %v1582
        %v1679 = vunpack.c.l.b16 %v1583
        %v1680 = vunpack.c.l.b16 %v1584
        %v1681 = vunpack.c.l.b16 %v1585
        %v1682 = vunpack.c.l.b16 %v1586
        %v1683 = vunpack.c.l.b16 %v1587
        %v1684 = vunpack.c.l.b16 %v1588
        %v1685 = vunpack.c.l.b16 %v1589
        %v1686 = vpack.c.b16 %v1679, %v1678
        %v1687 = vpack.c.b16 %v1681, %v1680
        %v1688 = vpack.c.b16 %v1683, %v1682
        %v1689 = vpack.c.b16 %v1685, %v1684
        %v1695 = vsel %vm753, %v1654, 0
        %v1698 = vsel %vm753, %v1655, 0
        %v1701 = vsel %vm753, %v1656, 0
        %v1704 = vsel %vm753, %v1657, 0
        %v1707 = vsel %vm753, %v1658, 0
        %v1710 = vsel %vm753, %v1659, 0
        %v1713 = vsel %vm753, %v1660, 0
        %v1716 = vsel %vm753, %v1661, 0
        %v1719 = vsel %vm753, %v1662, 0
        %v1722 = vsel %vm753, %v1663, 0
        %v1725 = vsel %vm753, %v1664, 0
        %v1728 = vsel %vm753, %v1665, 0
        %v1731 = vsel %vm753, %v1666, 0
        %v1734 = vsel %vm753, %v1667, 0
        %v1737 = vsel %vm753, %v1668, 0
        %v1740 = vsel %vm753, %v1669, 0
        %1742 = vmatpush.bf16.msra.mxu0 0
        %1743 = vmatpush.bf16.msra.mxu0 0
        %1744 = vmatpush.bf16.msra.mxu0 0
        %1745 = vmatpush.bf16.msra.mxu0 0
        %1746 = vmatpush.bf16.msra.mxu0 %v1689
        %1747 = vmatpush.bf16.msra.mxu0 %v1688
        %1748 = vmatpush.bf16.msra.mxu0 %v1687
        %1749 = vmatpush.bf16.msra.mxu0 %v1686
        %1750 = vmatmul.bf16.gmra.mxu0 %v1695
        %v1751 = vpop.f32.mrf.mxu0
        %v1752 = vadd.f32 0.0, %v1751
        %v1753 = vpop.f32.mrf.mxu0
        %v1754 = vadd.f32 0.0, %v1753
        %1755 = vmatmul.bf16.gmra.mxu0 %v1698
        %v1756 = vpop.f32.mrf.mxu0
        %v1757 = vadd.f32 0.0, %v1756
        %v1758 = vpop.f32.mrf.mxu0
        %v1759 = vadd.f32 0.0, %v1758
        %1760 = vmatmul.bf16.gmra.mxu0 %v1701
        %v1761 = vpop.f32.mrf.mxu0
        %v1762 = vadd.f32 0.0, %v1761
        %v1763 = vpop.f32.mrf.mxu0
        %v1764 = vadd.f32 0.0, %v1763
        %1765 = vmatmul.bf16.gmra.mxu0 %v1704
        %v1766 = vpop.f32.mrf.mxu0
        %v1767 = vadd.f32 0.0, %v1766
        %v1768 = vpop.f32.mrf.mxu0
        %v1769 = vadd.f32 0.0, %v1768
        %1770 = vmatmul.bf16.gmra.mxu0 %v1707
        %v1771 = vpop.f32.mrf.mxu0
        %v1772 = vadd.f32 0.0, %v1771
        %v1773 = vpop.f32.mrf.mxu0
        %v1774 = vadd.f32 0.0, %v1773
        %1775 = vmatmul.bf16.gmra.mxu0 %v1710
        %v1776 = vpop.f32.mrf.mxu0
        %v1777 = vadd.f32 0.0, %v1776
        %v1778 = vpop.f32.mrf.mxu0
        %v1779 = vadd.f32 0.0, %v1778
        %1780 = vmatmul.bf16.gmra.mxu0 %v1713
        %v1781 = vpop.f32.mrf.mxu0
        %v1782 = vadd.f32 0.0, %v1781
        %v1783 = vpop.f32.mrf.mxu0
        %v1784 = vadd.f32 0.0, %v1783
        %1785 = vmatmul.bf16.gmra.mxu0 %v1716
        %v1786 = vpop.f32.mrf.mxu0
        %v1787 = vadd.f32 0.0, %v1786
        %v1788 = vpop.f32.mrf.mxu0
        %v1789 = vadd.f32 0.0, %v1788
        %1790 = vmatmul.bf16.gmra.mxu0 %v1719
        %v1791 = vpop.f32.mrf.mxu0
        %v1792 = vadd.f32 0.0, %v1791
        %v1793 = vpop.f32.mrf.mxu0
        %v1794 = vadd.f32 0.0, %v1793
        %1795 = vmatmul.bf16.gmra.mxu0 %v1722
        %v1796 = vpop.f32.mrf.mxu0
        %v1797 = vadd.f32 0.0, %v1796
        %v1798 = vpop.f32.mrf.mxu0
        %v1799 = vadd.f32 0.0, %v1798
        %1800 = vmatmul.bf16.gmra.mxu0 %v1725
        %v1801 = vpop.f32.mrf.mxu0
        %v1802 = vadd.f32 0.0, %v1801
        %v1803 = vpop.f32.mrf.mxu0
        %v1804 = vadd.f32 0.0, %v1803
        %1805 = vmatmul.bf16.gmra.mxu0 %v1728
        %v1806 = vpop.f32.mrf.mxu0
        %v1807 = vadd.f32 0.0, %v1806
        %v1808 = vpop.f32.mrf.mxu0
        %v1809 = vadd.f32 0.0, %v1808
        %1810 = vmatmul.bf16.gmra.mxu0 %v1731
        %v1811 = vpop.f32.mrf.mxu0
        %v1812 = vadd.f32 0.0, %v1811
        %v1813 = vpop.f32.mrf.mxu0
        %v1814 = vadd.f32 0.0, %v1813
        %1815 = vmatmul.bf16.gmra.mxu0 %v1734
        %v1816 = vpop.f32.mrf.mxu0
        %v1817 = vadd.f32 0.0, %v1816
        %v1818 = vpop.f32.mrf.mxu0
        %v1819 = vadd.f32 0.0, %v1818
        %1820 = vmatmul.bf16.gmra.mxu0 %v1737
        %v1821 = vpop.f32.mrf.mxu0
        %v1822 = vadd.f32 0.0, %v1821
        %v1823 = vpop.f32.mrf.mxu0
        %v1824 = vadd.f32 0.0, %v1823
        %1825 = vmatmul.bf16.gmra.mxu0 %v1740
        %v1826 = vpop.f32.mrf.mxu0
        %v1827 = vadd.f32 0.0, %v1826
        %v1828 = vpop.f32.mrf.mxu0
        %v1829 = vadd.f32 0.0, %v1828
        %1830 = vdwg.mxu0
        %v1831 = vadd.f32 %v1513, %v1752
        %v1832 = vadd.f32 %v1514, %v1754
        %v1833 = vadd.f32 %v1515, %v1757
        %v1834 = vadd.f32 %v1516, %v1759
        %v1835 = vadd.f32 %v1517, %v1762
        %v1836 = vadd.f32 %v1518, %v1764
        %v1837 = vadd.f32 %v1519, %v1767
        %v1838 = vadd.f32 %v1520, %v1769
        %v1839 = vadd.f32 %v1521, %v1772
        %v1840 = vadd.f32 %v1522, %v1774
        %v1841 = vadd.f32 %v1523, %v1777
        %v1842 = vadd.f32 %v1524, %v1779
        %v1843 = vadd.f32 %v1525, %v1782
        %v1844 = vadd.f32 %v1526, %v1784
        %v1845 = vadd.f32 %v1527, %v1787
        %v1846 = vadd.f32 %v1528, %v1789
        %v1847 = vadd.f32 %v1529, %v1792
        %v1848 = vadd.f32 %v1530, %v1794
        %v1849 = vadd.f32 %v1531, %v1797
        %v1850 = vadd.f32 %v1532, %v1799
        %v1851 = vadd.f32 %v1533, %v1802
        %v1852 = vadd.f32 %v1534, %v1804
        %v1853 = vadd.f32 %v1535, %v1807
        %v1854 = vadd.f32 %v1536, %v1809
        %v1855 = vadd.f32 %v1537, %v1812
        %v1856 = vadd.f32 %v1538, %v1814
        %v1857 = vadd.f32 %v1539, %v1817
        %v1858 = vadd.f32 %v1540, %v1819
        %v1859 = vadd.f32 %v1541, %v1822
        %v1860 = vadd.f32 %v1542, %v1824
        %v1861 = vadd.f32 %v1543, %v1827
        %v1862 = vadd.f32 %v1544, %v1829
        %v1863 = vld [vmem:[%s1548] sm:$0xf]
        %v1864 = vld [vmem:[%s1548 + $0x4] sm:$0xf]
        %v1865 = vld [vmem:[%s1548 + $0x8] sm:$0x1]
        %v1866 = vld [vmem:[%s1548 + $0xc] sm:$0xf]
        %v1867 = vld [vmem:[%s1548 + $0x10] sm:$0xf]
        %v1868 = vld [vmem:[%s1548 + $0x14] sm:$0x1]
        %v1869 = vld [vmem:[%s1548 + $0x18] sm:$0xf]
        %v1870 = vld [vmem:[%s1548 + $0x1c] sm:$0xf]
        %v1871 = vld [vmem:[%s1548 + $0x20] sm:$0x1]
        %v1872 = vld [vmem:[%s1548 + $0x24] sm:$0xf]
        %v1873 = vld [vmem:[%s1548 + $0x28] sm:$0xf]
        %v1874 = vld [vmem:[%s1548 + $0x2c] sm:$0x1]
        %v1875 = vld [vmem:[%s1548 + $0x30] sm:$0xf]
        %v1876 = vld [vmem:[%s1548 + $0x34] sm:$0xf]
        %v1877 = vld [vmem:[%s1548 + $0x38] sm:$0x1]
        %v1878 = vld [vmem:[%s1548 + $0x3c] sm:$0xf]
        %v1879 = vld [vmem:[%s1548 + $0x40] sm:$0xf]
        %v1880 = vld [vmem:[%s1548 + $0x44] sm:$0x1]
        %v1881 = vld [vmem:[%s1548 + $0x48] sm:$0xf]
        %v1882 = vld [vmem:[%s1548 + $0x4c] sm:$0xf]
        %v1883 = vld [vmem:[%s1548 + $0x50] sm:$0x1]
        %v1884 = vld [vmem:[%s1548 + $0x54] sm:$0xf]
        %v1885 = vld [vmem:[%s1548 + $0x58] sm:$0xf]
        %v1886 = vld [vmem:[%s1548 + $0x5c] sm:$0x1]
        %v1887 = vld [vmem:[%s1548 + $0x60] sm:$0xf]
        %v1888 = vld [vmem:[%s1548 + $0x64] sm:$0xf]
        %v1889 = vld [vmem:[%s1548 + $0x68] sm:$0x1]
        %v1890 = vld [vmem:[%s1548 + $0x6c] sm:$0xf]
        %v1891 = vld [vmem:[%s1548 + $0x70] sm:$0xf]
        %v1892 = vld [vmem:[%s1548 + $0x74] sm:$0x1]
        %v1893 = vld [vmem:[%s1548 + $0x78] sm:$0xf]
        %v1894 = vld [vmem:[%s1548 + $0x7c] sm:$0xf]
        %v1895 = vld [vmem:[%s1548 + $0x80] sm:$0x1]
        %v1896 = vld [vmem:[%s1548 + $0x84] sm:$0xf]
        %v1897 = vld [vmem:[%s1548 + $0x88] sm:$0xf]
        %v1898 = vld [vmem:[%s1548 + $0x8c] sm:$0x1]
        %v1899 = vld [vmem:[%s1548 + $0x90] sm:$0xf]
        %v1900 = vld [vmem:[%s1548 + $0x94] sm:$0xf]
        %v1901 = vld [vmem:[%s1548 + $0x98] sm:$0x1]
        %v1902 = vld [vmem:[%s1548 + $0x9c] sm:$0xf]
        %v1903 = vld [vmem:[%s1548 + $0xa0] sm:$0xf]
        %v1904 = vld [vmem:[%s1548 + $0xa4] sm:$0x1]
        %v1905 = vld [vmem:[%s1548 + $0xa8] sm:$0xf]
        %v1906 = vld [vmem:[%s1548 + $0xac] sm:$0xf]
        %v1907 = vld [vmem:[%s1548 + $0xb0] sm:$0x1]
        %v1908 = vld [vmem:[%s1548 + $0xb4] sm:$0xf]
        %v1909 = vld [vmem:[%s1548 + $0xb8] sm:$0xf]
        %v1910 = vld [vmem:[%s1548 + $0xbc] sm:$0x1]
        %v1912 = vshrl.u32 %v1863, 16
        %v1914 = vrot.slane %v1912, 4
        %v1915 = vshll.u32 %v1863, 16
        %v1917 = vrot.slane %v1915, 5
        %v1918 = vor.u32 %v1914, %v1917
        %v1919 = vrot.slane %v1918, 4
        %v1921 = vshll.u32 %v1864, 16
        %v1923 = vrot.slane %v1921, 5
        %v1924 = vsel %vm287, %v1919, %v1923
        %v1925 = vshrl.u32 %v1864, 16
        %v1927 = vrot.slane %v1925, 4
        %v1928 = vor.u32 %v1927, %v1923
        %v1929 = vrot.slane %v1928, 4
        %v1931 = vshll.u32 %v1865, 16
        %v1933 = vrot.slane %v1931, 5
        %v1934 = vsel %vm287, %v1929, %v1933
        %v1936 = vshrl.u32 %v1866, 16
        %v1938 = vrot.slane %v1936, 4
        %v1939 = vshll.u32 %v1866, 16
        %v1941 = vrot.slane %v1939, 5
        %v1942 = vor.u32 %v1938, %v1941
        %v1943 = vrot.slane %v1942, 4
        %v1945 = vshll.u32 %v1867, 16
        %v1947 = vrot.slane %v1945, 5
        %v1948 = vsel %vm287, %v1943, %v1947
        %v1949 = vshrl.u32 %v1867, 16
        %v1951 = vrot.slane %v1949, 4
        %v1952 = vor.u32 %v1951, %v1947
        %v1953 = vrot.slane %v1952, 4
        %v1955 = vshll.u32 %v1868, 16
        %v1957 = vrot.slane %v1955, 5
        %v1958 = vsel %vm287, %v1953, %v1957
        %v1960 = vshrl.u32 %v1869, 16
        %v1962 = vrot.slane %v1960, 4
        %v1963 = vshll.u32 %v1869, 16
        %v1965 = vrot.slane %v1963, 5
        %v1966 = vor.u32 %v1962, %v1965
        %v1967 = vrot.slane %v1966, 4
        %v1969 = vshll.u32 %v1870, 16
        %v1971 = vrot.slane %v1969, 5
        %v1972 = vsel %vm287, %v1967, %v1971
        %v1973 = vshrl.u32 %v1870, 16
        %v1975 = vrot.slane %v1973, 4
        %v1976 = vor.u32 %v1975, %v1971
        %v1977 = vrot.slane %v1976, 4
        %v1979 = vshll.u32 %v1871, 16
        %v1981 = vrot.slane %v1979, 5
        %v1982 = vsel %vm287, %v1977, %v1981
        %v1984 = vshrl.u32 %v1872, 16
        %v1986 = vrot.slane %v1984, 4
        %v1987 = vshll.u32 %v1872, 16
        %v1989 = vrot.slane %v1987, 5
        %v1990 = vor.u32 %v1986, %v1989
        %v1991 = vrot.slane %v1990, 4
        %v1993 = vshll.u32 %v1873, 16
        %v1995 = vrot.slane %v1993, 5
        %v1996 = vsel %vm287, %v1991, %v1995
        %v1997 = vshrl.u32 %v1873, 16
        %v1999 = vrot.slane %v1997, 4
        %v2000 = vor.u32 %v1999, %v1995
        %v2001 = vrot.slane %v2000, 4
        %v2003 = vshll.u32 %v1874, 16
        %v2005 = vrot.slane %v2003, 5
        %v2006 = vsel %vm287, %v2001, %v2005
        %v2008 = vshrl.u32 %v1875, 16
        %v2010 = vrot.slane %v2008, 4
        %v2011 = vshll.u32 %v1875, 16
        %v2013 = vrot.slane %v2011, 5
        %v2014 = vor.u32 %v2010, %v2013
        %v2015 = vrot.slane %v2014, 4
        %v2017 = vshll.u32 %v1876, 16
        %v2019 = vrot.slane %v2017, 5
        %v2020 = vsel %vm287, %v2015, %v2019
        %v2021 = vshrl.u32 %v1876, 16
        %v2023 = vrot.slane %v2021, 4
        %v2024 = vor.u32 %v2023, %v2019
        %v2025 = vrot.slane %v2024, 4
        %v2027 = vshll.u32 %v1877, 16
        %v2029 = vrot.slane %v2027, 5
        %v2030 = vsel %vm287, %v2025, %v2029
        %v2032 = vshrl.u32 %v1878, 16
        %v2034 = vrot.slane %v2032, 4
        %v2035 = vshll.u32 %v1878, 16
        %v2037 = vrot.slane %v2035, 5
        %v2038 = vor.u32 %v2034, %v2037
        %v2039 = vrot.slane %v2038, 4
        %v2041 = vshll.u32 %v1879, 16
        %v2043 = vrot.slane %v2041, 5
        %v2044 = vsel %vm287, %v2039, %v2043
        %v2045 = vshrl.u32 %v1879, 16
        %v2047 = vrot.slane %v2045, 4
        %v2048 = vor.u32 %v2047, %v2043
        %v2049 = vrot.slane %v2048, 4
        %v2051 = vshll.u32 %v1880, 16
        %v2053 = vrot.slane %v2051, 5
        %v2054 = vsel %vm287, %v2049, %v2053
        %v2056 = vshrl.u32 %v1881, 16
        %v2058 = vrot.slane %v2056, 4
        %v2059 = vshll.u32 %v1881, 16
        %v2061 = vrot.slane %v2059, 5
        %v2062 = vor.u32 %v2058, %v2061
        %v2063 = vrot.slane %v2062, 4
        %v2065 = vshll.u32 %v1882, 16
        %v2067 = vrot.slane %v2065, 5
        %v2068 = vsel %vm287, %v2063, %v2067
        %v2069 = vshrl.u32 %v1882, 16
        %v2071 = vrot.slane %v2069, 4
        %v2072 = vor.u32 %v2071, %v2067
        %v2073 = vrot.slane %v2072, 4
        %v2075 = vshll.u32 %v1883, 16
        %v2077 = vrot.slane %v2075, 5
        %v2078 = vsel %vm287, %v2073, %v2077
        %v2080 = vshrl.u32 %v1884, 16
        %v2082 = vrot.slane %v2080, 4
        %v2083 = vshll.u32 %v1884, 16
        %v2085 = vrot.slane %v2083, 5
        %v2086 = vor.u32 %v2082, %v2085
        %v2087 = vrot.slane %v2086, 4
        %v2089 = vshll.u32 %v1885, 16
        %v2091 = vrot.slane %v2089, 5
        %v2092 = vsel %vm287, %v2087, %v2091
        %v2093 = vshrl.u32 %v1885, 16
        %v2095 = vrot.slane %v2093, 4
        %v2096 = vor.u32 %v2095, %v2091
        %v2097 = vrot.slane %v2096, 4
        %v2099 = vshll.u32 %v1886, 16
        %v2101 = vrot.slane %v2099, 5
        %v2102 = vsel %vm287, %v2097, %v2101
        %v2104 = vshrl.u32 %v1887, 16
        %v2106 = vrot.slane %v2104, 4
        %v2107 = vshll.u32 %v1887, 16
        %v2109 = vrot.slane %v2107, 5
        %v2110 = vor.u32 %v2106, %v2109
        %v2111 = vrot.slane %v2110, 4
        %v2113 = vshll.u32 %v1888, 16
        %v2115 = vrot.slane %v2113, 5
        %v2116 = vsel %vm287, %v2111, %v2115
        %v2117 = vshrl.u32 %v1888, 16
        %v2119 = vrot.slane %v2117, 4
        %v2120 = vor.u32 %v2119, %v2115
        %v2121 = vrot.slane %v2120, 4
        %v2123 = vshll.u32 %v1889, 16
        %v2125 = vrot.slane %v2123, 5
        %v2126 = vsel %vm287, %v2121, %v2125
        %v2128 = vshrl.u32 %v1890, 16
        %v2130 = vrot.slane %v2128, 4
        %v2131 = vshll.u32 %v1890, 16
        %v2133 = vrot.slane %v2131, 5
        %v2134 = vor.u32 %v2130, %v2133
        %v2135 = vrot.slane %v2134, 4
        %v2137 = vshll.u32 %v1891, 16
        %v2139 = vrot.slane %v2137, 5
        %v2140 = vsel %vm287, %v2135, %v2139
        %v2141 = vshrl.u32 %v1891, 16
        %v2143 = vrot.slane %v2141, 4
        %v2144 = vor.u32 %v2143, %v2139
        %v2145 = vrot.slane %v2144, 4
        %v2147 = vshll.u32 %v1892, 16
        %v2149 = vrot.slane %v2147, 5
        %v2150 = vsel %vm287, %v2145, %v2149
        %v2152 = vshrl.u32 %v1893, 16
        %v2154 = vrot.slane %v2152, 4
        %v2155 = vshll.u32 %v1893, 16
        %v2157 = vrot.slane %v2155, 5
        %v2158 = vor.u32 %v2154, %v2157
        %v2159 = vrot.slane %v2158, 4
        %v2161 = vshll.u32 %v1894, 16
        %v2163 = vrot.slane %v2161, 5
        %v2164 = vsel %vm287, %v2159, %v2163
        %v2165 = vshrl.u32 %v1894, 16
        %v2167 = vrot.slane %v2165, 4
        %v2168 = vor.u32 %v2167, %v2163
        %v2169 = vrot.slane %v2168, 4
        %v2171 = vshll.u32 %v1895, 16
        %v2173 = vrot.slane %v2171, 5
        %v2174 = vsel %vm287, %v2169, %v2173
        %v2176 = vshrl.u32 %v1896, 16
        %v2178 = vrot.slane %v2176, 4
        %v2179 = vshll.u32 %v1896, 16
        %v2181 = vrot.slane %v2179, 5
        %v2182 = vor.u32 %v2178, %v2181
        %v2183 = vrot.slane %v2182, 4
        %v2185 = vshll.u32 %v1897, 16
        %v2187 = vrot.slane %v2185, 5
        %v2188 = vsel %vm287, %v2183, %v2187
        %v2189 = vshrl.u32 %v1897, 16
        %v2191 = vrot.slane %v2189, 4
        %v2192 = vor.u32 %v2191, %v2187
        %v2193 = vrot.slane %v2192, 4
        %v2195 = vshll.u32 %v1898, 16
        %v2197 = vrot.slane %v2195, 5
        %v2198 = vsel %vm287, %v2193, %v2197
        %v2200 = vshrl.u32 %v1899, 16
        %v2202 = vrot.slane %v2200, 4
        %v2203 = vshll.u32 %v1899, 16
        %v2205 = vrot.slane %v2203, 5
        %v2206 = vor.u32 %v2202, %v2205
        %v2207 = vrot.slane %v2206, 4
        %v2209 = vshll.u32 %v1900, 16
        %v2211 = vrot.slane %v2209, 5
        %v2212 = vsel %vm287, %v2207, %v2211
        %v2213 = vshrl.u32 %v1900, 16
        %v2215 = vrot.slane %v2213, 4
        %v2216 = vor.u32 %v2215, %v2211
        %v2217 = vrot.slane %v2216, 4
        %v2219 = vshll.u32 %v1901, 16
        %v2221 = vrot.slane %v2219, 5
        %v2222 = vsel %vm287, %v2217, %v2221
        %v2224 = vshrl.u32 %v1902, 16
        %v2226 = vrot.slane %v2224, 4
        %v2227 = vshll.u32 %v1902, 16
        %v2229 = vrot.slane %v2227, 5
        %v2230 = vor.u32 %v2226, %v2229
        %v2231 = vrot.slane %v2230, 4
        %v2233 = vshll.u32 %v1903, 16
        %v2235 = vrot.slane %v2233, 5
        %v2236 = vsel %vm287, %v2231, %v2235
        %v2237 = vshrl.u32 %v1903, 16
        %v2239 = vrot.slane %v2237, 4
        %v2240 = vor.u32 %v2239, %v2235
        %v2241 = vrot.slane %v2240, 4
        %v2243 = vshll.u32 %v1904, 16
        %v2245 = vrot.slane %v2243, 5
        %v2246 = vsel %vm287, %v2241, %v2245
        %v2248 = vshrl.u32 %v1905, 16
        %v2250 = vrot.slane %v2248, 4
        %v2251 = vshll.u32 %v1905, 16
        %v2253 = vrot.slane %v2251, 5
        %v2254 = vor.u32 %v2250, %v2253
        %v2255 = vrot.slane %v2254, 4
        %v2257 = vshll.u32 %v1906, 16
        %v2259 = vrot.slane %v2257, 5
        %v2260 = vsel %vm287, %v2255, %v2259
        %v2261 = vshrl.u32 %v1906, 16
        %v2263 = vrot.slane %v2261, 4
        %v2264 = vor.u32 %v2263, %v2259
        %v2265 = vrot.slane %v2264, 4
        %v2267 = vshll.u32 %v1907, 16
        %v2269 = vrot.slane %v2267, 5
        %v2270 = vsel %vm287, %v2265, %v2269
        %v2272 = vshrl.u32 %v1908, 16
        %v2274 = vrot.slane %v2272, 4
        %v2275 = vshll.u32 %v1908, 16
        %v2277 = vrot.slane %v2275, 5
        %v2278 = vor.u32 %v2274, %v2277
        %v2279 = vrot.slane %v2278, 4
        %v2281 = vshll.u32 %v1909, 16
        %v2283 = vrot.slane %v2281, 5
        %v2284 = vsel %vm287, %v2279, %v2283
        %v2285 = vshrl.u32 %v1909, 16
        %v2287 = vrot.slane %v2285, 4
        %v2288 = vor.u32 %v2287, %v2283
        %v2289 = vrot.slane %v2288, 4
        %v2291 = vshll.u32 %v1910, 16
        %v2293 = vrot.slane %v2291, 5
        %v2294 = vsel %vm287, %v2289, %v2293
        %s2295 = scalar_lea.vmem %s219, 128
        %v2296 = vld [vmem:[%s2295] sm:$0xf]
        %v2297 = vld [vmem:[%s2295 + $0x4] sm:$0xf]
        %v2298 = vld [vmem:[%s2295 + $0x8] sm:$0xf]
        %v2299 = vld [vmem:[%s2295 + $0xc] sm:$0xf]
        %v2300 = vld [vmem:[%s2295 + $0x10] sm:$0xf]
        %v2301 = vld [vmem:[%s2295 + $0x14] sm:$0xf]
        %v2302 = vld [vmem:[%s2295 + $0x18] sm:$0xf]
        %v2303 = vld [vmem:[%s2295 + $0x1c] sm:$0xf]
        %v2304 = vunpack.c.l.b16 %v1924
        %v2305 = vunpack.c.l.b16 %v1934
        %v2306 = vunpack.c.l.b16 %v1948
        %v2307 = vunpack.c.l.b16 %v1958
        %v2308 = vunpack.c.l.b16 %v1972
        %v2309 = vunpack.c.l.b16 %v1982
        %v2310 = vunpack.c.l.b16 %v1996
        %v2311 = vunpack.c.l.b16 %v2006
        %v2312 = vunpack.c.l.b16 %v2020
        %v2313 = vunpack.c.l.b16 %v2030
        %v2314 = vunpack.c.l.b16 %v2044
        %v2315 = vunpack.c.l.b16 %v2054
        %v2316 = vunpack.c.l.b16 %v2068
        %v2317 = vunpack.c.l.b16 %v2078
        %v2318 = vunpack.c.l.b16 %v2092
        %v2319 = vunpack.c.l.b16 %v2102
        %v2320 = vunpack.c.l.b16 %v2116
        %v2321 = vunpack.c.l.b16 %v2126
        %v2322 = vunpack.c.l.b16 %v2140
        %v2323 = vunpack.c.l.b16 %v2150
        %v2324 = vunpack.c.l.b16 %v2164
        %v2325 = vunpack.c.l.b16 %v2174
        %v2326 = vunpack.c.l.b16 %v2188
        %v2327 = vunpack.c.l.b16 %v2198
        %v2328 = vunpack.c.l.b16 %v2212
        %v2329 = vunpack.c.l.b16 %v2222
        %v2330 = vunpack.c.l.b16 %v2236
        %v2331 = vunpack.c.l.b16 %v2246
        %v2332 = vunpack.c.l.b16 %v2260
        %v2333 = vunpack.c.l.b16 %v2270
        %v2334 = vunpack.c.l.b16 %v2284
        %v2335 = vunpack.c.l.b16 %v2294
        %v2336 = vpack.c.b16 %v2305, %v2304
        %v2337 = vpack.c.b16 %v2307, %v2306
        %v2338 = vpack.c.b16 %v2309, %v2308
        %v2339 = vpack.c.b16 %v2311, %v2310
        %v2340 = vpack.c.b16 %v2313, %v2312
        %v2341 = vpack.c.b16 %v2315, %v2314
        %v2342 = vpack.c.b16 %v2317, %v2316
        %v2343 = vpack.c.b16 %v2319, %v2318
        %v2344 = vpack.c.b16 %v2321, %v2320
        %v2345 = vpack.c.b16 %v2323, %v2322
        %v2346 = vpack.c.b16 %v2325, %v2324
        %v2347 = vpack.c.b16 %v2327, %v2326
        %v2348 = vpack.c.b16 %v2329, %v2328
        %v2349 = vpack.c.b16 %v2331, %v2330
        %v2350 = vpack.c.b16 %v2333, %v2332
        %v2351 = vpack.c.b16 %v2335, %v2334
        %v2360 = vunpack.c.l.b16 %v2296
        %v2361 = vunpack.c.l.b16 %v2297
        %v2362 = vunpack.c.l.b16 %v2298
        %v2363 = vunpack.c.l.b16 %v2299
        %v2364 = vunpack.c.l.b16 %v2300
        %v2365 = vunpack.c.l.b16 %v2301
        %v2366 = vunpack.c.l.b16 %v2302
        %v2367 = vunpack.c.l.b16 %v2303
        %v2368 = vpack.c.b16 %v2361, %v2360
        %v2369 = vpack.c.b16 %v2363, %v2362
        %v2370 = vpack.c.b16 %v2365, %v2364
        %v2371 = vpack.c.b16 %v2367, %v2366
        %v2377 = vsel %vm753, %v2336, 0
        %v2380 = vsel %vm753, %v2337, 0
        %v2383 = vsel %vm753, %v2338, 0
        %v2386 = vsel %vm753, %v2339, 0
        %v2389 = vsel %vm753, %v2340, 0
        %v2392 = vsel %vm753, %v2341, 0
        %v2395 = vsel %vm753, %v2342, 0
        %v2398 = vsel %vm753, %v2343, 0
        %v2401 = vsel %vm753, %v2344, 0
        %v2404 = vsel %vm753, %v2345, 0
        %v2407 = vsel %vm753, %v2346, 0
        %v2410 = vsel %vm753, %v2347, 0
        %v2413 = vsel %vm753, %v2348, 0
        %v2416 = vsel %vm753, %v2349, 0
        %v2419 = vsel %vm753, %v2350, 0
        %v2422 = vsel %vm753, %v2351, 0
        %2424 = vmatpush.bf16.msra.mxu0 0
        %2425 = vmatpush.bf16.msra.mxu0 0
        %2426 = vmatpush.bf16.msra.mxu0 0
        %2427 = vmatpush.bf16.msra.mxu0 0
        %2428 = vmatpush.bf16.msra.mxu0 %v2371
        %2429 = vmatpush.bf16.msra.mxu0 %v2370
        %2430 = vmatpush.bf16.msra.mxu0 %v2369
        %2431 = vmatpush.bf16.msra.mxu0 %v2368
        %2432 = vmatmul.bf16.gmra.mxu0 %v2377
        %v2433 = vpop.f32.mrf.mxu0
        %v2434 = vadd.f32 0.0, %v2433
        %v2435 = vpop.f32.mrf.mxu0
        %v2436 = vadd.f32 0.0, %v2435
        %2437 = vmatmul.bf16.gmra.mxu0 %v2380
        %v2438 = vpop.f32.mrf.mxu0
        %v2439 = vadd.f32 0.0, %v2438
        %v2440 = vpop.f32.mrf.mxu0
        %v2441 = vadd.f32 0.0, %v2440
        %2442 = vmatmul.bf16.gmra.mxu0 %v2383
        %v2443 = vpop.f32.mrf.mxu0
        %v2444 = vadd.f32 0.0, %v2443
        %v2445 = vpop.f32.mrf.mxu0
        %v2446 = vadd.f32 0.0, %v2445
        %2447 = vmatmul.bf16.gmra.mxu0 %v2386
        %v2448 = vpop.f32.mrf.mxu0
        %v2449 = vadd.f32 0.0, %v2448
        %v2450 = vpop.f32.mrf.mxu0
        %v2451 = vadd.f32 0.0, %v2450
        %2452 = vmatmul.bf16.gmra.mxu0 %v2389
        %v2453 = vpop.f32.mrf.mxu0
        %v2454 = vadd.f32 0.0, %v2453
        %v2455 = vpop.f32.mrf.mxu0
        %v2456 = vadd.f32 0.0, %v2455
        %2457 = vmatmul.bf16.gmra.mxu0 %v2392
        %v2458 = vpop.f32.mrf.mxu0
        %v2459 = vadd.f32 0.0, %v2458
        %v2460 = vpop.f32.mrf.mxu0
        %v2461 = vadd.f32 0.0, %v2460
        %2462 = vmatmul.bf16.gmra.mxu0 %v2395
        %v2463 = vpop.f32.mrf.mxu0
        %v2464 = vadd.f32 0.0, %v2463
        %v2465 = vpop.f32.mrf.mxu0
        %v2466 = vadd.f32 0.0, %v2465
        %2467 = vmatmul.bf16.gmra.mxu0 %v2398
        %v2468 = vpop.f32.mrf.mxu0
        %v2469 = vadd.f32 0.0, %v2468
        %v2470 = vpop.f32.mrf.mxu0
        %v2471 = vadd.f32 0.0, %v2470
        %2472 = vmatmul.bf16.gmra.mxu0 %v2401
        %v2473 = vpop.f32.mrf.mxu0
        %v2474 = vadd.f32 0.0, %v2473
        %v2475 = vpop.f32.mrf.mxu0
        %v2476 = vadd.f32 0.0, %v2475
        %2477 = vmatmul.bf16.gmra.mxu0 %v2404
        %v2478 = vpop.f32.mrf.mxu0
        %v2479 = vadd.f32 0.0, %v2478
        %v2480 = vpop.f32.mrf.mxu0
        %v2481 = vadd.f32 0.0, %v2480
        %2482 = vmatmul.bf16.gmra.mxu0 %v2407
        %v2483 = vpop.f32.mrf.mxu0
        %v2484 = vadd.f32 0.0, %v2483
        %v2485 = vpop.f32.mrf.mxu0
        %v2486 = vadd.f32 0.0, %v2485
        %2487 = vmatmul.bf16.gmra.mxu0 %v2410
        %v2488 = vpop.f32.mrf.mxu0
        %v2489 = vadd.f32 0.0, %v2488
        %v2490 = vpop.f32.mrf.mxu0
        %v2491 = vadd.f32 0.0, %v2490
        %2492 = vmatmul.bf16.gmra.mxu0 %v2413
        %v2493 = vpop.f32.mrf.mxu0
        %v2494 = vadd.f32 0.0, %v2493
        %v2495 = vpop.f32.mrf.mxu0
        %v2496 = vadd.f32 0.0, %v2495
        %2497 = vmatmul.bf16.gmra.mxu0 %v2416
        %v2498 = vpop.f32.mrf.mxu0
        %v2499 = vadd.f32 0.0, %v2498
        %v2500 = vpop.f32.mrf.mxu0
        %v2501 = vadd.f32 0.0, %v2500
        %2502 = vmatmul.bf16.gmra.mxu0 %v2419
        %v2503 = vpop.f32.mrf.mxu0
        %v2504 = vadd.f32 0.0, %v2503
        %v2505 = vpop.f32.mrf.mxu0
        %v2506 = vadd.f32 0.0, %v2505
        %2507 = vmatmul.bf16.gmra.mxu0 %v2422
        %v2508 = vpop.f32.mrf.mxu0
        %v2509 = vadd.f32 0.0, %v2508
        %v2510 = vpop.f32.mrf.mxu0
        %v2511 = vadd.f32 0.0, %v2510
        %2512 = vdwg.mxu0
        %v2513 = vadd.f32 %v1831, %v2434
        %v2514 = vadd.f32 %v1832, %v2436
        %v2515 = vadd.f32 %v1833, %v2439
        %v2516 = vadd.f32 %v1834, %v2441
        %v2517 = vadd.f32 %v1835, %v2444
        %v2518 = vadd.f32 %v1836, %v2446
        %v2519 = vadd.f32 %v1837, %v2449
        %v2520 = vadd.f32 %v1838, %v2451
        %v2521 = vadd.f32 %v1839, %v2454
        %v2522 = vadd.f32 %v1840, %v2456
        %v2523 = vadd.f32 %v1841, %v2459
        %v2524 = vadd.f32 %v1842, %v2461
        %v2525 = vadd.f32 %v1843, %v2464
        %v2526 = vadd.f32 %v1844, %v2466
        %v2527 = vadd.f32 %v1845, %v2469
        %v2528 = vadd.f32 %v1846, %v2471
        %v2529 = vadd.f32 %v1847, %v2474
        %v2530 = vadd.f32 %v1848, %v2476
        %v2531 = vadd.f32 %v1849, %v2479
        %v2532 = vadd.f32 %v1850, %v2481
        %v2533 = vadd.f32 %v1851, %v2484
        %v2534 = vadd.f32 %v1852, %v2486
        %v2535 = vadd.f32 %v1853, %v2489
        %v2536 = vadd.f32 %v1854, %v2491
        %v2537 = vadd.f32 %v1855, %v2494
        %v2538 = vadd.f32 %v1856, %v2496
        %v2539 = vadd.f32 %v1857, %v2499
        %v2540 = vadd.f32 %v1858, %v2501
        %v2541 = vadd.f32 %v1859, %v2504
        %v2542 = vadd.f32 %v1860, %v2506
        %v2543 = vadd.f32 %v1861, %v2509
        %v2544 = vadd.f32 %v1862, %v2511
        %v2545 = vld [vmem:[%s1548] sm:$0xe]
        %v2546 = vld [vmem:[%s1548 + $0xc] sm:$0xe]
        %v2547 = vld [vmem:[%s1548 + $0x18] sm:$0xe]
        %v2548 = vld [vmem:[%s1548 + $0x24] sm:$0xe]
        %v2549 = vld [vmem:[%s1548 + $0x30] sm:$0xe]
        %v2550 = vld [vmem:[%s1548 + $0x3c] sm:$0xe]
        %v2551 = vld [vmem:[%s1548 + $0x48] sm:$0xe]
        %v2552 = vld [vmem:[%s1548 + $0x54] sm:$0xe]
        %v2553 = vld [vmem:[%s1548 + $0x60] sm:$0xe]
        %v2554 = vld [vmem:[%s1548 + $0x6c] sm:$0xe]
        %v2555 = vld [vmem:[%s1548 + $0x78] sm:$0xe]
        %v2556 = vld [vmem:[%s1548 + $0x84] sm:$0xe]
        %v2557 = vld [vmem:[%s1548 + $0x90] sm:$0xe]
        %v2558 = vld [vmem:[%s1548 + $0x9c] sm:$0xe]
        %v2559 = vld [vmem:[%s1548 + $0xa8] sm:$0xe]
        %v2560 = vld [vmem:[%s1548 + $0xb4] sm:$0xe]
        %v2609 = vrot.slane %v2545, 5
        %v2610 = vrot.slane %v2609, 4
        %v2611 = vrot.slane %v1864, 5
        %v2612 = vsel %vm1182, %v2610, %v2611
        %v2613 = vrot.slane %v2611, 4
        %v2614 = vrot.slane %v1865, 5
        %v2615 = vsel %vm1182, %v2613, %v2614
        %v2616 = vrot.slane %v2546, 5
        %v2617 = vrot.slane %v2616, 4
        %v2618 = vrot.slane %v1867, 5
        %v2619 = vsel %vm1182, %v2617, %v2618
        %v2620 = vrot.slane %v2618, 4
        %v2621 = vrot.slane %v1868, 5
        %v2622 = vsel %vm1182, %v2620, %v2621
        %v2623 = vrot.slane %v2547, 5
        %v2624 = vrot.slane %v2623, 4
        %v2625 = vrot.slane %v1870, 5
        %v2626 = vsel %vm1182, %v2624, %v2625
        %v2627 = vrot.slane %v2625, 4
        %v2628 = vrot.slane %v1871, 5
        %v2629 = vsel %vm1182, %v2627, %v2628
        %v2630 = vrot.slane %v2548, 5
        %v2631 = vrot.slane %v2630, 4
        %v2632 = vrot.slane %v1873, 5
        %v2633 = vsel %vm1182, %v2631, %v2632
        %v2634 = vrot.slane %v2632, 4
        %v2635 = vrot.slane %v1874, 5
        %v2636 = vsel %vm1182, %v2634, %v2635
        %v2637 = vrot.slane %v2549, 5
        %v2638 = vrot.slane %v2637, 4
        %v2639 = vrot.slane %v1876, 5
        %v2640 = vsel %vm1182, %v2638, %v2639
        %v2641 = vrot.slane %v2639, 4
        %v2642 = vrot.slane %v1877, 5
        %v2643 = vsel %vm1182, %v2641, %v2642
        %v2644 = vrot.slane %v2550, 5
        %v2645 = vrot.slane %v2644, 4
        %v2646 = vrot.slane %v1879, 5
        %v2647 = vsel %vm1182, %v2645, %v2646
        %v2648 = vrot.slane %v2646, 4
        %v2649 = vrot.slane %v1880, 5
        %v2650 = vsel %vm1182, %v2648, %v2649
        %v2651 = vrot.slane %v2551, 5
        %v2652 = vrot.slane %v2651, 4
        %v2653 = vrot.slane %v1882, 5
        %v2654 = vsel %vm1182, %v2652, %v2653
        %v2655 = vrot.slane %v2653, 4
        %v2656 = vrot.slane %v1883, 5
        %v2657 = vsel %vm1182, %v2655, %v2656
        %v2658 = vrot.slane %v2552, 5
        %v2659 = vrot.slane %v2658, 4
        %v2660 = vrot.slane %v1885, 5
        %v2661 = vsel %vm1182, %v2659, %v2660
        %v2662 = vrot.slane %v2660, 4
        %v2663 = vrot.slane %v1886, 5
        %v2664 = vsel %vm1182, %v2662, %v2663
        %v2665 = vrot.slane %v2553, 5
        %v2666 = vrot.slane %v2665, 4
        %v2667 = vrot.slane %v1888, 5
        %v2668 = vsel %vm1182, %v2666, %v2667
        %v2669 = vrot.slane %v2667, 4
        %v2670 = vrot.slane %v1889, 5
        %v2671 = vsel %vm1182, %v2669, %v2670
        %v2672 = vrot.slane %v2554, 5
        %v2673 = vrot.slane %v2672, 4
        %v2674 = vrot.slane %v1891, 5
        %v2675 = vsel %vm1182, %v2673, %v2674
        %v2676 = vrot.slane %v2674, 4
        %v2677 = vrot.slane %v1892, 5
        %v2678 = vsel %vm1182, %v2676, %v2677
        %v2679 = vrot.slane %v2555, 5
        %v2680 = vrot.slane %v2679, 4
        %v2681 = vrot.slane %v1894, 5
        %v2682 = vsel %vm1182, %v2680, %v2681
        %v2683 = vrot.slane %v2681, 4
        %v2684 = vrot.slane %v1895, 5
        %v2685 = vsel %vm1182, %v2683, %v2684
        %v2686 = vrot.slane %v2556, 5
        %v2687 = vrot.slane %v2686, 4
        %v2688 = vrot.slane %v1897, 5
        %v2689 = vsel %vm1182, %v2687, %v2688
        %v2690 = vrot.slane %v2688, 4
        %v2691 = vrot.slane %v1898, 5
        %v2692 = vsel %vm1182, %v2690, %v2691
        %v2693 = vrot.slane %v2557, 5
        %v2694 = vrot.slane %v2693, 4
        %v2695 = vrot.slane %v1900, 5
        %v2696 = vsel %vm1182, %v2694, %v2695
        %v2697 = vrot.slane %v2695, 4
        %v2698 = vrot.slane %v1901, 5
        %v2699 = vsel %vm1182, %v2697, %v2698
        %v2700 = vrot.slane %v2558, 5
        %v2701 = vrot.slane %v2700, 4
        %v2702 = vrot.slane %v1903, 5
        %v2703 = vsel %vm1182, %v2701, %v2702
        %v2704 = vrot.slane %v2702, 4
        %v2705 = vrot.slane %v1904, 5
        %v2706 = vsel %vm1182, %v2704, %v2705
        %v2707 = vrot.slane %v2559, 5
        %v2708 = vrot.slane %v2707, 4
        %v2709 = vrot.slane %v1906, 5
        %v2710 = vsel %vm1182, %v2708, %v2709
        %v2711 = vrot.slane %v2709, 4
        %v2712 = vrot.slane %v1907, 5
        %v2713 = vsel %vm1182, %v2711, %v2712
        %v2714 = vrot.slane %v2560, 5
        %v2715 = vrot.slane %v2714, 4
        %v2716 = vrot.slane %v1909, 5
        %v2717 = vsel %vm1182, %v2715, %v2716
        %v2718 = vrot.slane %v2716, 4
        %v2719 = vrot.slane %v1910, 5
        %v2720 = vsel %vm1182, %v2718, %v2719
        %s2721 = scalar_lea.vmem %s219, 160
        %v2722 = vld [vmem:[%s2721] sm:$0xf]
        %v2723 = vld [vmem:[%s2721 + $0x4] sm:$0xf]
        %v2724 = vld [vmem:[%s2721 + $0x8] sm:$0xf]
        %v2725 = vld [vmem:[%s2721 + $0xc] sm:$0xf]
        %v2726 = vld [vmem:[%s2721 + $0x10] sm:$0xf]
        %v2727 = vld [vmem:[%s2721 + $0x14] sm:$0xf]
        %v2728 = vld [vmem:[%s2721 + $0x18] sm:$0xf]
        %v2729 = vld [vmem:[%s2721 + $0x1c] sm:$0xf]
        %v2730 = vunpack.c.l.b16 %v2612
        %v2731 = vunpack.c.l.b16 %v2615
        %v2732 = vunpack.c.l.b16 %v2619
        %v2733 = vunpack.c.l.b16 %v2622
        %v2734 = vunpack.c.l.b16 %v2626
        %v2735 = vunpack.c.l.b16 %v2629
        %v2736 = vunpack.c.l.b16 %v2633
        %v2737 = vunpack.c.l.b16 %v2636
        %v2738 = vunpack.c.l.b16 %v2640
        %v2739 = vunpack.c.l.b16 %v2643
        %v2740 = vunpack.c.l.b16 %v2647
        %v2741 = vunpack.c.l.b16 %v2650
        %v2742 = vunpack.c.l.b16 %v2654
        %v2743 = vunpack.c.l.b16 %v2657
        %v2744 = vunpack.c.l.b16 %v2661
        %v2745 = vunpack.c.l.b16 %v2664
        %v2746 = vunpack.c.l.b16 %v2668
        %v2747 = vunpack.c.l.b16 %v2671
        %v2748 = vunpack.c.l.b16 %v2675
        %v2749 = vunpack.c.l.b16 %v2678
        %v2750 = vunpack.c.l.b16 %v2682
        %v2751 = vunpack.c.l.b16 %v2685
        %v2752 = vunpack.c.l.b16 %v2689
        %v2753 = vunpack.c.l.b16 %v2692
        %v2754 = vunpack.c.l.b16 %v2696
        %v2755 = vunpack.c.l.b16 %v2699
        %v2756 = vunpack.c.l.b16 %v2703
        %v2757 = vunpack.c.l.b16 %v2706
        %v2758 = vunpack.c.l.b16 %v2710
        %v2759 = vunpack.c.l.b16 %v2713
        %v2760 = vunpack.c.l.b16 %v2717
        %v2761 = vunpack.c.l.b16 %v2720
        %v2762 = vpack.c.b16 %v2731, %v2730
        %v2763 = vpack.c.b16 %v2733, %v2732
        %v2764 = vpack.c.b16 %v2735, %v2734
        %v2765 = vpack.c.b16 %v2737, %v2736
        %v2766 = vpack.c.b16 %v2739, %v2738
        %v2767 = vpack.c.b16 %v2741, %v2740
        %v2768 = vpack.c.b16 %v2743, %v2742
        %v2769 = vpack.c.b16 %v2745, %v2744
        %v2770 = vpack.c.b16 %v2747, %v2746
        %v2771 = vpack.c.b16 %v2749, %v2748
        %v2772 = vpack.c.b16 %v2751, %v2750
        %v2773 = vpack.c.b16 %v2753, %v2752
        %v2774 = vpack.c.b16 %v2755, %v2754
        %v2775 = vpack.c.b16 %v2757, %v2756
        %v2776 = vpack.c.b16 %v2759, %v2758
        %v2777 = vpack.c.b16 %v2761, %v2760
        %v2786 = vunpack.c.l.b16 %v2722
        %v2787 = vunpack.c.l.b16 %v2723
        %v2788 = vunpack.c.l.b16 %v2724
        %v2789 = vunpack.c.l.b16 %v2725
        %v2790 = vunpack.c.l.b16 %v2726
        %v2791 = vunpack.c.l.b16 %v2727
        %v2792 = vunpack.c.l.b16 %v2728
        %v2793 = vunpack.c.l.b16 %v2729
        %v2794 = vpack.c.b16 %v2787, %v2786
        %v2795 = vpack.c.b16 %v2789, %v2788
        %v2796 = vpack.c.b16 %v2791, %v2790
        %v2797 = vpack.c.b16 %v2793, %v2792
        %v2803 = vsel %vm753, %v2762, 0
        %v2806 = vsel %vm753, %v2763, 0
        %v2809 = vsel %vm753, %v2764, 0
        %v2812 = vsel %vm753, %v2765, 0
        %v2815 = vsel %vm753, %v2766, 0
        %v2818 = vsel %vm753, %v2767, 0
        %v2821 = vsel %vm753, %v2768, 0
        %v2824 = vsel %vm753, %v2769, 0
        %v2827 = vsel %vm753, %v2770, 0
        %v2830 = vsel %vm753, %v2771, 0
        %v2833 = vsel %vm753, %v2772, 0
        %v2836 = vsel %vm753, %v2773, 0
        %v2839 = vsel %vm753, %v2774, 0
        %v2842 = vsel %vm753, %v2775, 0
        %v2845 = vsel %vm753, %v2776, 0
        %v2848 = vsel %vm753, %v2777, 0
        %2850 = vmatpush.bf16.msra.mxu0 0
        %2851 = vmatpush.bf16.msra.mxu0 0
        %2852 = vmatpush.bf16.msra.mxu0 0
        %2853 = vmatpush.bf16.msra.mxu0 0
        %2854 = vmatpush.bf16.msra.mxu0 %v2797
        %2855 = vmatpush.bf16.msra.mxu0 %v2796
        %2856 = vmatpush.bf16.msra.mxu0 %v2795
        %2857 = vmatpush.bf16.msra.mxu0 %v2794
        %2858 = vmatmul.bf16.gmra.mxu0 %v2803
        %v2859 = vpop.f32.mrf.mxu0
        %v2860 = vadd.f32 0.0, %v2859
        %v2861 = vpop.f32.mrf.mxu0
        %v2862 = vadd.f32 0.0, %v2861
        %2863 = vmatmul.bf16.gmra.mxu0 %v2806
        %v2864 = vpop.f32.mrf.mxu0
        %v2865 = vadd.f32 0.0, %v2864
        %v2866 = vpop.f32.mrf.mxu0
        %v2867 = vadd.f32 0.0, %v2866
        %2868 = vmatmul.bf16.gmra.mxu0 %v2809
        %v2869 = vpop.f32.mrf.mxu0
        %v2870 = vadd.f32 0.0, %v2869
        %v2871 = vpop.f32.mrf.mxu0
        %v2872 = vadd.f32 0.0, %v2871
        %2873 = vmatmul.bf16.gmra.mxu0 %v2812
        %v2874 = vpop.f32.mrf.mxu0
        %v2875 = vadd.f32 0.0, %v2874
        %v2876 = vpop.f32.mrf.mxu0
        %v2877 = vadd.f32 0.0, %v2876
        %2878 = vmatmul.bf16.gmra.mxu0 %v2815
        %v2879 = vpop.f32.mrf.mxu0
        %v2880 = vadd.f32 0.0, %v2879
        %v2881 = vpop.f32.mrf.mxu0
        %v2882 = vadd.f32 0.0, %v2881
        %2883 = vmatmul.bf16.gmra.mxu0 %v2818
        %v2884 = vpop.f32.mrf.mxu0
        %v2885 = vadd.f32 0.0, %v2884
        %v2886 = vpop.f32.mrf.mxu0
        %v2887 = vadd.f32 0.0, %v2886
        %2888 = vmatmul.bf16.gmra.mxu0 %v2821
        %v2889 = vpop.f32.mrf.mxu0
        %v2890 = vadd.f32 0.0, %v2889
        %v2891 = vpop.f32.mrf.mxu0
        %v2892 = vadd.f32 0.0, %v2891
        %2893 = vmatmul.bf16.gmra.mxu0 %v2824
        %v2894 = vpop.f32.mrf.mxu0
        %v2895 = vadd.f32 0.0, %v2894
        %v2896 = vpop.f32.mrf.mxu0
        %v2897 = vadd.f32 0.0, %v2896
        %2898 = vmatmul.bf16.gmra.mxu0 %v2827
        %v2899 = vpop.f32.mrf.mxu0
        %v2900 = vadd.f32 0.0, %v2899
        %v2901 = vpop.f32.mrf.mxu0
        %v2902 = vadd.f32 0.0, %v2901
        %2903 = vmatmul.bf16.gmra.mxu0 %v2830
        %v2904 = vpop.f32.mrf.mxu0
        %v2905 = vadd.f32 0.0, %v2904
        %v2906 = vpop.f32.mrf.mxu0
        %v2907 = vadd.f32 0.0, %v2906
        %2908 = vmatmul.bf16.gmra.mxu0 %v2833
        %v2909 = vpop.f32.mrf.mxu0
        %v2910 = vadd.f32 0.0, %v2909
        %v2911 = vpop.f32.mrf.mxu0
        %v2912 = vadd.f32 0.0, %v2911
        %2913 = vmatmul.bf16.gmra.mxu0 %v2836
        %v2914 = vpop.f32.mrf.mxu0
        %v2915 = vadd.f32 0.0, %v2914
        %v2916 = vpop.f32.mrf.mxu0
        %v2917 = vadd.f32 0.0, %v2916
        %2918 = vmatmul.bf16.gmra.mxu0 %v2839
        %v2919 = vpop.f32.mrf.mxu0
        %v2920 = vadd.f32 0.0, %v2919
        %v2921 = vpop.f32.mrf.mxu0
        %v2922 = vadd.f32 0.0, %v2921
        %2923 = vmatmul.bf16.gmra.mxu0 %v2842
        %v2924 = vpop.f32.mrf.mxu0
        %v2925 = vadd.f32 0.0, %v2924
        %v2926 = vpop.f32.mrf.mxu0
        %v2927 = vadd.f32 0.0, %v2926
        %2928 = vmatmul.bf16.gmra.mxu0 %v2845
        %v2929 = vpop.f32.mrf.mxu0
        %v2930 = vadd.f32 0.0, %v2929
        %v2931 = vpop.f32.mrf.mxu0
        %v2932 = vadd.f32 0.0, %v2931
        %2933 = vmatmul.bf16.gmra.mxu0 %v2848
        %v2934 = vpop.f32.mrf.mxu0
        %v2935 = vadd.f32 0.0, %v2934
        %v2936 = vpop.f32.mrf.mxu0
        %v2937 = vadd.f32 0.0, %v2936
        %2938 = vdwg.mxu0
        %v2939 = vadd.f32 %v2513, %v2860
        %v2940 = vadd.f32 %v2514, %v2862
        %v2941 = vadd.f32 %v2515, %v2865
        %v2942 = vadd.f32 %v2516, %v2867
        %v2943 = vadd.f32 %v2517, %v2870
        %v2944 = vadd.f32 %v2518, %v2872
        %v2945 = vadd.f32 %v2519, %v2875
        %v2946 = vadd.f32 %v2520, %v2877
        %v2947 = vadd.f32 %v2521, %v2880
        %v2948 = vadd.f32 %v2522, %v2882
        %v2949 = vadd.f32 %v2523, %v2885
        %v2950 = vadd.f32 %v2524, %v2887
        %v2951 = vadd.f32 %v2525, %v2890
        %v2952 = vadd.f32 %v2526, %v2892
        %v2953 = vadd.f32 %v2527, %v2895
        %v2954 = vadd.f32 %v2528, %v2897
        %v2955 = vadd.f32 %v2529, %v2900
        %v2956 = vadd.f32 %v2530, %v2902
        %v2957 = vadd.f32 %v2531, %v2905
        %v2958 = vadd.f32 %v2532, %v2907
        %v2959 = vadd.f32 %v2533, %v2910
        %v2960 = vadd.f32 %v2534, %v2912
        %v2961 = vadd.f32 %v2535, %v2915
        %v2962 = vadd.f32 %v2536, %v2917
        %v2963 = vadd.f32 %v2537, %v2920
        %v2964 = vadd.f32 %v2538, %v2922
        %v2965 = vadd.f32 %v2539, %v2925
        %v2966 = vadd.f32 %v2540, %v2927
        %v2967 = vadd.f32 %v2541, %v2930
        %v2968 = vadd.f32 %v2542, %v2932
        %v2969 = vadd.f32 %v2543, %v2935
        %v2970 = vadd.f32 %v2544, %v2937
        %s2971 = sadd.s32 %s225, 2
        %s2972 = smul.u32 %s2971, 3
        %s2973 = smul.addr %s2972, 4
        %s2974 = scalar_lea.vmem %s215, %s2973
        %v2975 = vld [vmem:[%s2974] sm:$0xf]
        %v2976 = vld [vmem:[%s2974 + $0x4] sm:$0xf]
        %v2977 = vld [vmem:[%s2974 + $0xc] sm:$0xf]
        %v2978 = vld [vmem:[%s2974 + $0x10] sm:$0xf]
        %v2979 = vld [vmem:[%s2974 + $0x18] sm:$0xf]
        %v2980 = vld [vmem:[%s2974 + $0x1c] sm:$0xf]
        %v2981 = vld [vmem:[%s2974 + $0x24] sm:$0xf]
        %v2982 = vld [vmem:[%s2974 + $0x28] sm:$0xf]
        %v2983 = vld [vmem:[%s2974 + $0x30] sm:$0xf]
        %v2984 = vld [vmem:[%s2974 + $0x34] sm:$0xf]
        %v2985 = vld [vmem:[%s2974 + $0x3c] sm:$0xf]
        %v2986 = vld [vmem:[%s2974 + $0x40] sm:$0xf]
        %v2987 = vld [vmem:[%s2974 + $0x48] sm:$0xf]
        %v2988 = vld [vmem:[%s2974 + $0x4c] sm:$0xf]
        %v2989 = vld [vmem:[%s2974 + $0x54] sm:$0xf]
        %v2990 = vld [vmem:[%s2974 + $0x58] sm:$0xf]
        %v2991 = vld [vmem:[%s2974 + $0x60] sm:$0xf]
        %v2992 = vld [vmem:[%s2974 + $0x64] sm:$0xf]
        %v2993 = vld [vmem:[%s2974 + $0x6c] sm:$0xf]
        %v2994 = vld [vmem:[%s2974 + $0x70] sm:$0xf]
        %v2995 = vld [vmem:[%s2974 + $0x78] sm:$0xf]
        %v2996 = vld [vmem:[%s2974 + $0x7c] sm:$0xf]
        %v2997 = vld [vmem:[%s2974 + $0x84] sm:$0xf]
        %v2998 = vld [vmem:[%s2974 + $0x88] sm:$0xf]
        %v2999 = vld [vmem:[%s2974 + $0x90] sm:$0xf]
        %v3000 = vld [vmem:[%s2974 + $0x94] sm:$0xf]
        %v3001 = vld [vmem:[%s2974 + $0x9c] sm:$0xf]
        %v3002 = vld [vmem:[%s2974 + $0xa0] sm:$0xf]
        %v3003 = vld [vmem:[%s2974 + $0xa8] sm:$0xf]
        %v3004 = vld [vmem:[%s2974 + $0xac] sm:$0xf]
        %v3005 = vld [vmem:[%s2974 + $0xb4] sm:$0xf]
        %v3006 = vld [vmem:[%s2974 + $0xb8] sm:$0xf]
        %s3007 = scalar_lea.vmem %s219, 192
        %v3008 = vld [vmem:[%s3007] sm:$0xf]
        %v3009 = vld [vmem:[%s3007 + $0x4] sm:$0xf]
        %v3010 = vld [vmem:[%s3007 + $0x8] sm:$0xf]
        %v3011 = vld [vmem:[%s3007 + $0xc] sm:$0xf]
        %v3012 = vld [vmem:[%s3007 + $0x10] sm:$0xf]
        %v3013 = vld [vmem:[%s3007 + $0x14] sm:$0xf]
        %v3014 = vld [vmem:[%s3007 + $0x18] sm:$0xf]
        %v3015 = vld [vmem:[%s3007 + $0x1c] sm:$0xf]
        %v3048 = vunpack.c.l.b16 %v2975
        %v3049 = vunpack.c.l.b16 %v2976
        %v3050 = vunpack.c.l.b16 %v2977
        %v3051 = vunpack.c.l.b16 %v2978
        %v3052 = vunpack.c.l.b16 %v2979
        %v3053 = vunpack.c.l.b16 %v2980
        %v3054 = vunpack.c.l.b16 %v2981
        %v3055 = vunpack.c.l.b16 %v2982
        %v3056 = vunpack.c.l.b16 %v2983
        %v3057 = vunpack.c.l.b16 %v2984
        %v3058 = vunpack.c.l.b16 %v2985
        %v3059 = vunpack.c.l.b16 %v2986
        %v3060 = vunpack.c.l.b16 %v2987
        %v3061 = vunpack.c.l.b16 %v2988
        %v3062 = vunpack.c.l.b16 %v2989
        %v3063 = vunpack.c.l.b16 %v2990
        %v3064 = vunpack.c.l.b16 %v2991
        %v3065 = vunpack.c.l.b16 %v2992
        %v3066 = vunpack.c.l.b16 %v2993
        %v3067 = vunpack.c.l.b16 %v2994
        %v3068 = vunpack.c.l.b16 %v2995
        %v3069 = vunpack.c.l.b16 %v2996
        %v3070 = vunpack.c.l.b16 %v2997
        %v3071 = vunpack.c.l.b16 %v2998
        %v3072 = vunpack.c.l.b16 %v2999
        %v3073 = vunpack.c.l.b16 %v3000
        %v3074 = vunpack.c.l.b16 %v3001
        %v3075 = vunpack.c.l.b16 %v3002
        %v3076 = vunpack.c.l.b16 %v3003
        %v3077 = vunpack.c.l.b16 %v3004
        %v3078 = vunpack.c.l.b16 %v3005
        %v3079 = vunpack.c.l.b16 %v3006
        %v3080 = vpack.c.b16 %v3049, %v3048
        %v3081 = vpack.c.b16 %v3051, %v3050
        %v3082 = vpack.c.b16 %v3053, %v3052
        %v3083 = vpack.c.b16 %v3055, %v3054
        %v3084 = vpack.c.b16 %v3057, %v3056
        %v3085 = vpack.c.b16 %v3059, %v3058
        %v3086 = vpack.c.b16 %v3061, %v3060
        %v3087 = vpack.c.b16 %v3063, %v3062
        %v3088 = vpack.c.b16 %v3065, %v3064
        %v3089 = vpack.c.b16 %v3067, %v3066
        %v3090 = vpack.c.b16 %v3069, %v3068
        %v3091 = vpack.c.b16 %v3071, %v3070
        %v3092 = vpack.c.b16 %v3073, %v3072
        %v3093 = vpack.c.b16 %v3075, %v3074
        %v3094 = vpack.c.b16 %v3077, %v3076
        %v3095 = vpack.c.b16 %v3079, %v3078
        %v3104 = vunpack.c.l.b16 %v3008
        %v3105 = vunpack.c.l.b16 %v3009
        %v3106 = vunpack.c.l.b16 %v3010
        %v3107 = vunpack.c.l.b16 %v3011
        %v3108 = vunpack.c.l.b16 %v3012
        %v3109 = vunpack.c.l.b16 %v3013
        %v3110 = vunpack.c.l.b16 %v3014
        %v3111 = vunpack.c.l.b16 %v3015
        %v3112 = vpack.c.b16 %v3105, %v3104
        %v3113 = vpack.c.b16 %v3107, %v3106
        %v3114 = vpack.c.b16 %v3109, %v3108
        %v3115 = vpack.c.b16 %v3111, %v3110
        %v3121 = vsel %vm753, %v3080, 0
        %v3124 = vsel %vm753, %v3081, 0
        %v3127 = vsel %vm753, %v3082, 0
        %v3130 = vsel %vm753, %v3083, 0
        %v3133 = vsel %vm753, %v3084, 0
        %v3136 = vsel %vm753, %v3085, 0
        %v3139 = vsel %vm753, %v3086, 0
        %v3142 = vsel %vm753, %v3087, 0
        %v3145 = vsel %vm753, %v3088, 0
        %v3148 = vsel %vm753, %v3089, 0
        %v3151 = vsel %vm753, %v3090, 0
        %v3154 = vsel %vm753, %v3091, 0
        %v3157 = vsel %vm753, %v3092, 0
        %v3160 = vsel %vm753, %v3093, 0
        %v3163 = vsel %vm753, %v3094, 0
        %v3166 = vsel %vm753, %v3095, 0
        %3168 = vmatpush.bf16.msra.mxu0 0
        %3169 = vmatpush.bf16.msra.mxu0 0
        %3170 = vmatpush.bf16.msra.mxu0 0
        %3171 = vmatpush.bf16.msra.mxu0 0
        %3172 = vmatpush.bf16.msra.mxu0 %v3115
        %3173 = vmatpush.bf16.msra.mxu0 %v3114
        %3174 = vmatpush.bf16.msra.mxu0 %v3113
        %3175 = vmatpush.bf16.msra.mxu0 %v3112
        %3176 = vmatmul.bf16.gmra.mxu0 %v3121
        %v3177 = vpop.f32.mrf.mxu0
        %v3178 = vadd.f32 0.0, %v3177
        %v3179 = vpop.f32.mrf.mxu0
        %v3180 = vadd.f32 0.0, %v3179
        %3181 = vmatmul.bf16.gmra.mxu0 %v3124
        %v3182 = vpop.f32.mrf.mxu0
        %v3183 = vadd.f32 0.0, %v3182
        %v3184 = vpop.f32.mrf.mxu0
        %v3185 = vadd.f32 0.0, %v3184
        %3186 = vmatmul.bf16.gmra.mxu0 %v3127
        %v3187 = vpop.f32.mrf.mxu0
        %v3188 = vadd.f32 0.0, %v3187
        %v3189 = vpop.f32.mrf.mxu0
        %v3190 = vadd.f32 0.0, %v3189
        %3191 = vmatmul.bf16.gmra.mxu0 %v3130
        %v3192 = vpop.f32.mrf.mxu0
        %v3193 = vadd.f32 0.0, %v3192
        %v3194 = vpop.f32.mrf.mxu0
        %v3195 = vadd.f32 0.0, %v3194
        %3196 = vmatmul.bf16.gmra.mxu0 %v3133
        %v3197 = vpop.f32.mrf.mxu0
        %v3198 = vadd.f32 0.0, %v3197
        %v3199 = vpop.f32.mrf.mxu0
        %v3200 = vadd.f32 0.0, %v3199
        %3201 = vmatmul.bf16.gmra.mxu0 %v3136
        %v3202 = vpop.f32.mrf.mxu0
        %v3203 = vadd.f32 0.0, %v3202
        %v3204 = vpop.f32.mrf.mxu0
        %v3205 = vadd.f32 0.0, %v3204
        %3206 = vmatmul.bf16.gmra.mxu0 %v3139
        %v3207 = vpop.f32.mrf.mxu0
        %v3208 = vadd.f32 0.0, %v3207
        %v3209 = vpop.f32.mrf.mxu0
        %v3210 = vadd.f32 0.0, %v3209
        %3211 = vmatmul.bf16.gmra.mxu0 %v3142
        %v3212 = vpop.f32.mrf.mxu0
        %v3213 = vadd.f32 0.0, %v3212
        %v3214 = vpop.f32.mrf.mxu0
        %v3215 = vadd.f32 0.0, %v3214
        %3216 = vmatmul.bf16.gmra.mxu0 %v3145
        %v3217 = vpop.f32.mrf.mxu0
        %v3218 = vadd.f32 0.0, %v3217
        %v3219 = vpop.f32.mrf.mxu0
        %v3220 = vadd.f32 0.0, %v3219
        %3221 = vmatmul.bf16.gmra.mxu0 %v3148
        %v3222 = vpop.f32.mrf.mxu0
        %v3223 = vadd.f32 0.0, %v3222
        %v3224 = vpop.f32.mrf.mxu0
        %v3225 = vadd.f32 0.0, %v3224
        %3226 = vmatmul.bf16.gmra.mxu0 %v3151
        %v3227 = vpop.f32.mrf.mxu0
        %v3228 = vadd.f32 0.0, %v3227
        %v3229 = vpop.f32.mrf.mxu0
        %v3230 = vadd.f32 0.0, %v3229
        %3231 = vmatmul.bf16.gmra.mxu0 %v3154
        %v3232 = vpop.f32.mrf.mxu0
        %v3233 = vadd.f32 0.0, %v3232
        %v3234 = vpop.f32.mrf.mxu0
        %v3235 = vadd.f32 0.0, %v3234
        %3236 = vmatmul.bf16.gmra.mxu0 %v3157
        %v3237 = vpop.f32.mrf.mxu0
        %v3238 = vadd.f32 0.0, %v3237
        %v3239 = vpop.f32.mrf.mxu0
        %v3240 = vadd.f32 0.0, %v3239
        %3241 = vmatmul.bf16.gmra.mxu0 %v3160
        %v3242 = vpop.f32.mrf.mxu0
        %v3243 = vadd.f32 0.0, %v3242
        %v3244 = vpop.f32.mrf.mxu0
        %v3245 = vadd.f32 0.0, %v3244
        %3246 = vmatmul.bf16.gmra.mxu0 %v3163
        %v3247 = vpop.f32.mrf.mxu0
        %v3248 = vadd.f32 0.0, %v3247
        %v3249 = vpop.f32.mrf.mxu0
        %v3250 = vadd.f32 0.0, %v3249
        %3251 = vmatmul.bf16.gmra.mxu0 %v3166
        %v3252 = vpop.f32.mrf.mxu0
        %v3253 = vadd.f32 0.0, %v3252
        %v3254 = vpop.f32.mrf.mxu0
        %v3255 = vadd.f32 0.0, %v3254
        %3256 = vdwg.mxu0
        %v3257 = vadd.f32 %v2939, %v3178
        %v3258 = vadd.f32 %v2940, %v3180
        %v3259 = vadd.f32 %v2941, %v3183
        %v3260 = vadd.f32 %v2942, %v3185
        %v3261 = vadd.f32 %v2943, %v3188
        %v3262 = vadd.f32 %v2944, %v3190
        %v3263 = vadd.f32 %v2945, %v3193
        %v3264 = vadd.f32 %v2946, %v3195
        %v3265 = vadd.f32 %v2947, %v3198
        %v3266 = vadd.f32 %v2948, %v3200
        %v3267 = vadd.f32 %v2949, %v3203
        %v3268 = vadd.f32 %v2950, %v3205
        %v3269 = vadd.f32 %v2951, %v3208
        %v3270 = vadd.f32 %v2952, %v3210
        %v3271 = vadd.f32 %v2953, %v3213
        %v3272 = vadd.f32 %v2954, %v3215
        %v3273 = vadd.f32 %v2955, %v3218
        %v3274 = vadd.f32 %v2956, %v3220
        %v3275 = vadd.f32 %v2957, %v3223
        %v3276 = vadd.f32 %v2958, %v3225
        %v3277 = vadd.f32 %v2959, %v3228
        %v3278 = vadd.f32 %v2960, %v3230
        %v3279 = vadd.f32 %v2961, %v3233
        %v3280 = vadd.f32 %v2962, %v3235
        %v3281 = vadd.f32 %v2963, %v3238
        %v3282 = vadd.f32 %v2964, %v3240
        %v3283 = vadd.f32 %v2965, %v3243
        %v3284 = vadd.f32 %v2966, %v3245
        %v3285 = vadd.f32 %v2967, %v3248
        %v3286 = vadd.f32 %v2968, %v3250
        %v3287 = vadd.f32 %v2969, %v3253
        %v3288 = vadd.f32 %v2970, %v3255
        %v3289 = vld [vmem:[%s2974] sm:$0xf]
        %v3290 = vld [vmem:[%s2974 + $0x4] sm:$0xf]
        %v3291 = vld [vmem:[%s2974 + $0x8] sm:$0x1]
        %v3292 = vld [vmem:[%s2974 + $0xc] sm:$0xf]
        %v3293 = vld [vmem:[%s2974 + $0x10] sm:$0xf]
        %v3294 = vld [vmem:[%s2974 + $0x14] sm:$0x1]
        %v3295 = vld [vmem:[%s2974 + $0x18] sm:$0xf]
        %v3296 = vld [vmem:[%s2974 + $0x1c] sm:$0xf]
        %v3297 = vld [vmem:[%s2974 + $0x20] sm:$0x1]
        %v3298 = vld [vmem:[%s2974 + $0x24] sm:$0xf]
        %v3299 = vld [vmem:[%s2974 + $0x28] sm:$0xf]
        %v3300 = vld [vmem:[%s2974 + $0x2c] sm:$0x1]
        %v3301 = vld [vmem:[%s2974 + $0x30] sm:$0xf]
        %v3302 = vld [vmem:[%s2974 + $0x34] sm:$0xf]
        %v3303 = vld [vmem:[%s2974 + $0x38] sm:$0x1]
        %v3304 = vld [vmem:[%s2974 + $0x3c] sm:$0xf]
        %v3305 = vld [vmem:[%s2974 + $0x40] sm:$0xf]
        %v3306 = vld [vmem:[%s2974 + $0x44] sm:$0x1]
        %v3307 = vld [vmem:[%s2974 + $0x48] sm:$0xf]
        %v3308 = vld [vmem:[%s2974 + $0x4c] sm:$0xf]
        %v3309 = vld [vmem:[%s2974 + $0x50] sm:$0x1]
        %v3310 = vld [vmem:[%s2974 + $0x54] sm:$0xf]
        %v3311 = vld [vmem:[%s2974 + $0x58] sm:$0xf]
        %v3312 = vld [vmem:[%s2974 + $0x5c] sm:$0x1]
        %v3313 = vld [vmem:[%s2974 + $0x60] sm:$0xf]
        %v3314 = vld [vmem:[%s2974 + $0x64] sm:$0xf]
        %v3315 = vld [vmem:[%s2974 + $0x68] sm:$0x1]
        %v3316 = vld [vmem:[%s2974 + $0x6c] sm:$0xf]
        %v3317 = vld [vmem:[%s2974 + $0x70] sm:$0xf]
        %v3318 = vld [vmem:[%s2974 + $0x74] sm:$0x1]
        %v3319 = vld [vmem:[%s2974 + $0x78] sm:$0xf]
        %v3320 = vld [vmem:[%s2974 + $0x7c] sm:$0xf]
        %v3321 = vld [vmem:[%s2974 + $0x80] sm:$0x1]
        %v3322 = vld [vmem:[%s2974 + $0x84] sm:$0xf]
        %v3323 = vld [vmem:[%s2974 + $0x88] sm:$0xf]
        %v3324 = vld [vmem:[%s2974 + $0x8c] sm:$0x1]
        %v3325 = vld [vmem:[%s2974 + $0x90] sm:$0xf]
        %v3326 = vld [vmem:[%s2974 + $0x94] sm:$0xf]
        %v3327 = vld [vmem:[%s2974 + $0x98] sm:$0x1]
        %v3328 = vld [vmem:[%s2974 + $0x9c] sm:$0xf]
        %v3329 = vld [vmem:[%s2974 + $0xa0] sm:$0xf]
        %v3330 = vld [vmem:[%s2974 + $0xa4] sm:$0x1]
        %v3331 = vld [vmem:[%s2974 + $0xa8] sm:$0xf]
        %v3332 = vld [vmem:[%s2974 + $0xac] sm:$0xf]
        %v3333 = vld [vmem:[%s2974 + $0xb0] sm:$0x1]
        %v3334 = vld [vmem:[%s2974 + $0xb4] sm:$0xf]
        %v3335 = vld [vmem:[%s2974 + $0xb8] sm:$0xf]
        %v3336 = vld [vmem:[%s2974 + $0xbc] sm:$0x1]
        %v3338 = vshrl.u32 %v3289, 16
        %v3340 = vrot.slane %v3338, 4
        %v3341 = vshll.u32 %v3289, 16
        %v3343 = vrot.slane %v3341, 5
        %v3344 = vor.u32 %v3340, %v3343
        %v3345 = vrot.slane %v3344, 4
        %v3347 = vshll.u32 %v3290, 16
        %v3349 = vrot.slane %v3347, 5
        %v3350 = vsel %vm287, %v3345, %v3349
        %v3351 = vshrl.u32 %v3290, 16
        %v3353 = vrot.slane %v3351, 4
        %v3354 = vor.u32 %v3353, %v3349
        %v3355 = vrot.slane %v3354, 4
        %v3357 = vshll.u32 %v3291, 16
        %v3359 = vrot.slane %v3357, 5
        %v3360 = vsel %vm287, %v3355, %v3359
        %v3362 = vshrl.u32 %v3292, 16
        %v3364 = vrot.slane %v3362, 4
        %v3365 = vshll.u32 %v3292, 16
        %v3367 = vrot.slane %v3365, 5
        %v3368 = vor.u32 %v3364, %v3367
        %v3369 = vrot.slane %v3368, 4
        %v3371 = vshll.u32 %v3293, 16
        %v3373 = vrot.slane %v3371, 5
        %v3374 = vsel %vm287, %v3369, %v3373
        %v3375 = vshrl.u32 %v3293, 16
        %v3377 = vrot.slane %v3375, 4
        %v3378 = vor.u32 %v3377, %v3373
        %v3379 = vrot.slane %v3378, 4
        %v3381 = vshll.u32 %v3294, 16
        %v3383 = vrot.slane %v3381, 5
        %v3384 = vsel %vm287, %v3379, %v3383
        %v3386 = vshrl.u32 %v3295, 16
        %v3388 = vrot.slane %v3386, 4
        %v3389 = vshll.u32 %v3295, 16
        %v3391 = vrot.slane %v3389, 5
        %v3392 = vor.u32 %v3388, %v3391
        %v3393 = vrot.slane %v3392, 4
        %v3395 = vshll.u32 %v3296, 16
        %v3397 = vrot.slane %v3395, 5
        %v3398 = vsel %vm287, %v3393, %v3397
        %v3399 = vshrl.u32 %v3296, 16
        %v3401 = vrot.slane %v3399, 4
        %v3402 = vor.u32 %v3401, %v3397
        %v3403 = vrot.slane %v3402, 4
        %v3405 = vshll.u32 %v3297, 16
        %v3407 = vrot.slane %v3405, 5
        %v3408 = vsel %vm287, %v3403, %v3407
        %v3410 = vshrl.u32 %v3298, 16
        %v3412 = vrot.slane %v3410, 4
        %v3413 = vshll.u32 %v3298, 16
        %v3415 = vrot.slane %v3413, 5
        %v3416 = vor.u32 %v3412, %v3415
        %v3417 = vrot.slane %v3416, 4
        %v3419 = vshll.u32 %v3299, 16
        %v3421 = vrot.slane %v3419, 5
        %v3422 = vsel %vm287, %v3417, %v3421
        %v3423 = vshrl.u32 %v3299, 16
        %v3425 = vrot.slane %v3423, 4
        %v3426 = vor.u32 %v3425, %v3421
        %v3427 = vrot.slane %v3426, 4
        %v3429 = vshll.u32 %v3300, 16
        %v3431 = vrot.slane %v3429, 5
        %v3432 = vsel %vm287, %v3427, %v3431
        %v3434 = vshrl.u32 %v3301, 16
        %v3436 = vrot.slane %v3434, 4
        %v3437 = vshll.u32 %v3301, 16
        %v3439 = vrot.slane %v3437, 5
        %v3440 = vor.u32 %v3436, %v3439
        %v3441 = vrot.slane %v3440, 4
        %v3443 = vshll.u32 %v3302, 16
        %v3445 = vrot.slane %v3443, 5
        %v3446 = vsel %vm287, %v3441, %v3445
        %v3447 = vshrl.u32 %v3302, 16
        %v3449 = vrot.slane %v3447, 4
        %v3450 = vor.u32 %v3449, %v3445
        %v3451 = vrot.slane %v3450, 4
        %v3453 = vshll.u32 %v3303, 16
        %v3455 = vrot.slane %v3453, 5
        %v3456 = vsel %vm287, %v3451, %v3455
        %v3458 = vshrl.u32 %v3304, 16
        %v3460 = vrot.slane %v3458, 4
        %v3461 = vshll.u32 %v3304, 16
        %v3463 = vrot.slane %v3461, 5
        %v3464 = vor.u32 %v3460, %v3463
        %v3465 = vrot.slane %v3464, 4
        %v3467 = vshll.u32 %v3305, 16
        %v3469 = vrot.slane %v3467, 5
        %v3470 = vsel %vm287, %v3465, %v3469
        %v3471 = vshrl.u32 %v3305, 16
        %v3473 = vrot.slane %v3471, 4
        %v3474 = vor.u32 %v3473, %v3469
        %v3475 = vrot.slane %v3474, 4
        %v3477 = vshll.u32 %v3306, 16
        %v3479 = vrot.slane %v3477, 5
        %v3480 = vsel %vm287, %v3475, %v3479
        %v3482 = vshrl.u32 %v3307, 16
        %v3484 = vrot.slane %v3482, 4
        %v3485 = vshll.u32 %v3307, 16
        %v3487 = vrot.slane %v3485, 5
        %v3488 = vor.u32 %v3484, %v3487
        %v3489 = vrot.slane %v3488, 4
        %v3491 = vshll.u32 %v3308, 16
        %v3493 = vrot.slane %v3491, 5
        %v3494 = vsel %vm287, %v3489, %v3493
        %v3495 = vshrl.u32 %v3308, 16
        %v3497 = vrot.slane %v3495, 4
        %v3498 = vor.u32 %v3497, %v3493
        %v3499 = vrot.slane %v3498, 4
        %v3501 = vshll.u32 %v3309, 16
        %v3503 = vrot.slane %v3501, 5
        %v3504 = vsel %vm287, %v3499, %v3503
        %v3506 = vshrl.u32 %v3310, 16
        %v3508 = vrot.slane %v3506, 4
        %v3509 = vshll.u32 %v3310, 16
        %v3511 = vrot.slane %v3509, 5
        %v3512 = vor.u32 %v3508, %v3511
        %v3513 = vrot.slane %v3512, 4
        %v3515 = vshll.u32 %v3311, 16
        %v3517 = vrot.slane %v3515, 5
        %v3518 = vsel %vm287, %v3513, %v3517
        %v3519 = vshrl.u32 %v3311, 16
        %v3521 = vrot.slane %v3519, 4
        %v3522 = vor.u32 %v3521, %v3517
        %v3523 = vrot.slane %v3522, 4
        %v3525 = vshll.u32 %v3312, 16
        %v3527 = vrot.slane %v3525, 5
        %v3528 = vsel %vm287, %v3523, %v3527
        %v3530 = vshrl.u32 %v3313, 16
        %v3532 = vrot.slane %v3530, 4
        %v3533 = vshll.u32 %v3313, 16
        %v3535 = vrot.slane %v3533, 5
        %v3536 = vor.u32 %v3532, %v3535
        %v3537 = vrot.slane %v3536, 4
        %v3539 = vshll.u32 %v3314, 16
        %v3541 = vrot.slane %v3539, 5
        %v3542 = vsel %vm287, %v3537, %v3541
        %v3543 = vshrl.u32 %v3314, 16
        %v3545 = vrot.slane %v3543, 4
        %v3546 = vor.u32 %v3545, %v3541
        %v3547 = vrot.slane %v3546, 4
        %v3549 = vshll.u32 %v3315, 16
        %v3551 = vrot.slane %v3549, 5
        %v3552 = vsel %vm287, %v3547, %v3551
        %v3554 = vshrl.u32 %v3316, 16
        %v3556 = vrot.slane %v3554, 4
        %v3557 = vshll.u32 %v3316, 16
        %v3559 = vrot.slane %v3557, 5
        %v3560 = vor.u32 %v3556, %v3559
        %v3561 = vrot.slane %v3560, 4
        %v3563 = vshll.u32 %v3317, 16
        %v3565 = vrot.slane %v3563, 5
        %v3566 = vsel %vm287, %v3561, %v3565
        %v3567 = vshrl.u32 %v3317, 16
        %v3569 = vrot.slane %v3567, 4
        %v3570 = vor.u32 %v3569, %v3565
        %v3571 = vrot.slane %v3570, 4
        %v3573 = vshll.u32 %v3318, 16
        %v3575 = vrot.slane %v3573, 5
        %v3576 = vsel %vm287, %v3571, %v3575
        %v3578 = vshrl.u32 %v3319, 16
        %v3580 = vrot.slane %v3578, 4
        %v3581 = vshll.u32 %v3319, 16
        %v3583 = vrot.slane %v3581, 5
        %v3584 = vor.u32 %v3580, %v3583
        %v3585 = vrot.slane %v3584, 4
        %v3587 = vshll.u32 %v3320, 16
        %v3589 = vrot.slane %v3587, 5
        %v3590 = vsel %vm287, %v3585, %v3589
        %v3591 = vshrl.u32 %v3320, 16
        %v3593 = vrot.slane %v3591, 4
        %v3594 = vor.u32 %v3593, %v3589
        %v3595 = vrot.slane %v3594, 4
        %v3597 = vshll.u32 %v3321, 16
        %v3599 = vrot.slane %v3597, 5
        %v3600 = vsel %vm287, %v3595, %v3599
        %v3602 = vshrl.u32 %v3322, 16
        %v3604 = vrot.slane %v3602, 4
        %v3605 = vshll.u32 %v3322, 16
        %v3607 = vrot.slane %v3605, 5
        %v3608 = vor.u32 %v3604, %v3607
        %v3609 = vrot.slane %v3608, 4
        %v3611 = vshll.u32 %v3323, 16
        %v3613 = vrot.slane %v3611, 5
        %v3614 = vsel %vm287, %v3609, %v3613
        %v3615 = vshrl.u32 %v3323, 16
        %v3617 = vrot.slane %v3615, 4
        %v3618 = vor.u32 %v3617, %v3613
        %v3619 = vrot.slane %v3618, 4
        %v3621 = vshll.u32 %v3324, 16
        %v3623 = vrot.slane %v3621, 5
        %v3624 = vsel %vm287, %v3619, %v3623
        %v3626 = vshrl.u32 %v3325, 16
        %v3628 = vrot.slane %v3626, 4
        %v3629 = vshll.u32 %v3325, 16
        %v3631 = vrot.slane %v3629, 5
        %v3632 = vor.u32 %v3628, %v3631
        %v3633 = vrot.slane %v3632, 4
        %v3635 = vshll.u32 %v3326, 16
        %v3637 = vrot.slane %v3635, 5
        %v3638 = vsel %vm287, %v3633, %v3637
        %v3639 = vshrl.u32 %v3326, 16
        %v3641 = vrot.slane %v3639, 4
        %v3642 = vor.u32 %v3641, %v3637
        %v3643 = vrot.slane %v3642, 4
        %v3645 = vshll.u32 %v3327, 16
        %v3647 = vrot.slane %v3645, 5
        %v3648 = vsel %vm287, %v3643, %v3647
        %v3650 = vshrl.u32 %v3328, 16
        %v3652 = vrot.slane %v3650, 4
        %v3653 = vshll.u32 %v3328, 16
        %v3655 = vrot.slane %v3653, 5
        %v3656 = vor.u32 %v3652, %v3655
        %v3657 = vrot.slane %v3656, 4
        %v3659 = vshll.u32 %v3329, 16
        %v3661 = vrot.slane %v3659, 5
        %v3662 = vsel %vm287, %v3657, %v3661
        %v3663 = vshrl.u32 %v3329, 16
        %v3665 = vrot.slane %v3663, 4
        %v3666 = vor.u32 %v3665, %v3661
        %v3667 = vrot.slane %v3666, 4
        %v3669 = vshll.u32 %v3330, 16
        %v3671 = vrot.slane %v3669, 5
        %v3672 = vsel %vm287, %v3667, %v3671
        %v3674 = vshrl.u32 %v3331, 16
        %v3676 = vrot.slane %v3674, 4
        %v3677 = vshll.u32 %v3331, 16
        %v3679 = vrot.slane %v3677, 5
        %v3680 = vor.u32 %v3676, %v3679
        %v3681 = vrot.slane %v3680, 4
        %v3683 = vshll.u32 %v3332, 16
        %v3685 = vrot.slane %v3683, 5
        %v3686 = vsel %vm287, %v3681, %v3685
        %v3687 = vshrl.u32 %v3332, 16
        %v3689 = vrot.slane %v3687, 4
        %v3690 = vor.u32 %v3689, %v3685
        %v3691 = vrot.slane %v3690, 4
        %v3693 = vshll.u32 %v3333, 16
        %v3695 = vrot.slane %v3693, 5
        %v3696 = vsel %vm287, %v3691, %v3695
        %v3698 = vshrl.u32 %v3334, 16
        %v3700 = vrot.slane %v3698, 4
        %v3701 = vshll.u32 %v3334, 16
        %v3703 = vrot.slane %v3701, 5
        %v3704 = vor.u32 %v3700, %v3703
        %v3705 = vrot.slane %v3704, 4
        %v3707 = vshll.u32 %v3335, 16
        %v3709 = vrot.slane %v3707, 5
        %v3710 = vsel %vm287, %v3705, %v3709
        %v3711 = vshrl.u32 %v3335, 16
        %v3713 = vrot.slane %v3711, 4
        %v3714 = vor.u32 %v3713, %v3709
        %v3715 = vrot.slane %v3714, 4
        %v3717 = vshll.u32 %v3336, 16
        %v3719 = vrot.slane %v3717, 5
        %v3720 = vsel %vm287, %v3715, %v3719
        %s3721 = scalar_lea.vmem %s219, 224
        %v3722 = vld [vmem:[%s3721] sm:$0xf]
        %v3723 = vld [vmem:[%s3721 + $0x4] sm:$0xf]
        %v3724 = vld [vmem:[%s3721 + $0x8] sm:$0xf]
        %v3725 = vld [vmem:[%s3721 + $0xc] sm:$0xf]
        %v3726 = vld [vmem:[%s3721 + $0x10] sm:$0xf]
        %v3727 = vld [vmem:[%s3721 + $0x14] sm:$0xf]
        %v3728 = vld [vmem:[%s3721 + $0x18] sm:$0xf]
        %v3729 = vld [vmem:[%s3721 + $0x1c] sm:$0xf]
        %v3730 = vunpack.c.l.b16 %v3350
        %v3731 = vunpack.c.l.b16 %v3360
        %v3732 = vunpack.c.l.b16 %v3374
        %v3733 = vunpack.c.l.b16 %v3384
        %v3734 = vunpack.c.l.b16 %v3398
        %v3735 = vunpack.c.l.b16 %v3408
        %v3736 = vunpack.c.l.b16 %v3422
        %v3737 = vunpack.c.l.b16 %v3432
        %v3738 = vunpack.c.l.b16 %v3446
        %v3739 = vunpack.c.l.b16 %v3456
        %v3740 = vunpack.c.l.b16 %v3470
        %v3741 = vunpack.c.l.b16 %v3480
        %v3742 = vunpack.c.l.b16 %v3494
        %v3743 = vunpack.c.l.b16 %v3504
        %v3744 = vunpack.c.l.b16 %v3518
        %v3745 = vunpack.c.l.b16 %v3528
        %v3746 = vunpack.c.l.b16 %v3542
        %v3747 = vunpack.c.l.b16 %v3552
        %v3748 = vunpack.c.l.b16 %v3566
        %v3749 = vunpack.c.l.b16 %v3576
        %v3750 = vunpack.c.l.b16 %v3590
        %v3751 = vunpack.c.l.b16 %v3600
        %v3752 = vunpack.c.l.b16 %v3614
        %v3753 = vunpack.c.l.b16 %v3624
        %v3754 = vunpack.c.l.b16 %v3638
        %v3755 = vunpack.c.l.b16 %v3648
        %v3756 = vunpack.c.l.b16 %v3662
        %v3757 = vunpack.c.l.b16 %v3672
        %v3758 = vunpack.c.l.b16 %v3686
        %v3759 = vunpack.c.l.b16 %v3696
        %v3760 = vunpack.c.l.b16 %v3710
        %v3761 = vunpack.c.l.b16 %v3720
        %v3762 = vpack.c.b16 %v3731, %v3730
        %v3763 = vpack.c.b16 %v3733, %v3732
        %v3764 = vpack.c.b16 %v3735, %v3734
        %v3765 = vpack.c.b16 %v3737, %v3736
        %v3766 = vpack.c.b16 %v3739, %v3738
        %v3767 = vpack.c.b16 %v3741, %v3740
        %v3768 = vpack.c.b16 %v3743, %v3742
        %v3769 = vpack.c.b16 %v3745, %v3744
        %v3770 = vpack.c.b16 %v3747, %v3746
        %v3771 = vpack.c.b16 %v3749, %v3748
        %v3772 = vpack.c.b16 %v3751, %v3750
        %v3773 = vpack.c.b16 %v3753, %v3752
        %v3774 = vpack.c.b16 %v3755, %v3754
        %v3775 = vpack.c.b16 %v3757, %v3756
        %v3776 = vpack.c.b16 %v3759, %v3758
        %v3777 = vpack.c.b16 %v3761, %v3760
        %v3786 = vunpack.c.l.b16 %v3722
        %v3787 = vunpack.c.l.b16 %v3723
        %v3788 = vunpack.c.l.b16 %v3724
        %v3789 = vunpack.c.l.b16 %v3725
        %v3790 = vunpack.c.l.b16 %v3726
        %v3791 = vunpack.c.l.b16 %v3727
        %v3792 = vunpack.c.l.b16 %v3728
        %v3793 = vunpack.c.l.b16 %v3729
        %v3794 = vpack.c.b16 %v3787, %v3786
        %v3795 = vpack.c.b16 %v3789, %v3788
        %v3796 = vpack.c.b16 %v3791, %v3790
        %v3797 = vpack.c.b16 %v3793, %v3792
        %v3803 = vsel %vm753, %v3762, 0
        %v3806 = vsel %vm753, %v3763, 0
        %v3809 = vsel %vm753, %v3764, 0
        %v3812 = vsel %vm753, %v3765, 0
        %v3815 = vsel %vm753, %v3766, 0
        %v3818 = vsel %vm753, %v3767, 0
        %v3821 = vsel %vm753, %v3768, 0
        %v3824 = vsel %vm753, %v3769, 0
        %v3827 = vsel %vm753, %v3770, 0
        %v3830 = vsel %vm753, %v3771, 0
        %v3833 = vsel %vm753, %v3772, 0
        %v3836 = vsel %vm753, %v3773, 0
        %v3839 = vsel %vm753, %v3774, 0
        %v3842 = vsel %vm753, %v3775, 0
        %v3845 = vsel %vm753, %v3776, 0
        %v3848 = vsel %vm753, %v3777, 0
        %3850 = vmatpush.bf16.msra.mxu0 0
        %3851 = vmatpush.bf16.msra.mxu0 0
        %3852 = vmatpush.bf16.msra.mxu0 0
        %3853 = vmatpush.bf16.msra.mxu0 0
        %3854 = vmatpush.bf16.msra.mxu0 %v3797
        %3855 = vmatpush.bf16.msra.mxu0 %v3796
        %3856 = vmatpush.bf16.msra.mxu0 %v3795
        %3857 = vmatpush.bf16.msra.mxu0 %v3794
        %3858 = vmatmul.bf16.gmra.mxu0 %v3803
        %v3859 = vpop.f32.mrf.mxu0
        %v3860 = vadd.f32 0.0, %v3859
        %v3861 = vpop.f32.mrf.mxu0
        %v3862 = vadd.f32 0.0, %v3861
        %3863 = vmatmul.bf16.gmra.mxu0 %v3806
        %v3864 = vpop.f32.mrf.mxu0
        %v3865 = vadd.f32 0.0, %v3864
        %v3866 = vpop.f32.mrf.mxu0
        %v3867 = vadd.f32 0.0, %v3866
        %3868 = vmatmul.bf16.gmra.mxu0 %v3809
        %v3869 = vpop.f32.mrf.mxu0
        %v3870 = vadd.f32 0.0, %v3869
        %v3871 = vpop.f32.mrf.mxu0
        %v3872 = vadd.f32 0.0, %v3871
        %3873 = vmatmul.bf16.gmra.mxu0 %v3812
        %v3874 = vpop.f32.mrf.mxu0
        %v3875 = vadd.f32 0.0, %v3874
        %v3876 = vpop.f32.mrf.mxu0
        %v3877 = vadd.f32 0.0, %v3876
        %3878 = vmatmul.bf16.gmra.mxu0 %v3815
        %v3879 = vpop.f32.mrf.mxu0
        %v3880 = vadd.f32 0.0, %v3879
        %v3881 = vpop.f32.mrf.mxu0
        %v3882 = vadd.f32 0.0, %v3881
        %3883 = vmatmul.bf16.gmra.mxu0 %v3818
        %v3884 = vpop.f32.mrf.mxu0
        %v3885 = vadd.f32 0.0, %v3884
        %v3886 = vpop.f32.mrf.mxu0
        %v3887 = vadd.f32 0.0, %v3886
        %3888 = vmatmul.bf16.gmra.mxu0 %v3821
        %v3889 = vpop.f32.mrf.mxu0
        %v3890 = vadd.f32 0.0, %v3889
        %v3891 = vpop.f32.mrf.mxu0
        %v3892 = vadd.f32 0.0, %v3891
        %3893 = vmatmul.bf16.gmra.mxu0 %v3824
        %v3894 = vpop.f32.mrf.mxu0
        %v3895 = vadd.f32 0.0, %v3894
        %v3896 = vpop.f32.mrf.mxu0
        %v3897 = vadd.f32 0.0, %v3896
        %3898 = vmatmul.bf16.gmra.mxu0 %v3827
        %v3899 = vpop.f32.mrf.mxu0
        %v3900 = vadd.f32 0.0, %v3899
        %v3901 = vpop.f32.mrf.mxu0
        %v3902 = vadd.f32 0.0, %v3901
        %3903 = vmatmul.bf16.gmra.mxu0 %v3830
        %v3904 = vpop.f32.mrf.mxu0
        %v3905 = vadd.f32 0.0, %v3904
        %v3906 = vpop.f32.mrf.mxu0
        %v3907 = vadd.f32 0.0, %v3906
        %3908 = vmatmul.bf16.gmra.mxu0 %v3833
        %v3909 = vpop.f32.mrf.mxu0
        %v3910 = vadd.f32 0.0, %v3909
        %v3911 = vpop.f32.mrf.mxu0
        %v3912 = vadd.f32 0.0, %v3911
        %3913 = vmatmul.bf16.gmra.mxu0 %v3836
        %v3914 = vpop.f32.mrf.mxu0
        %v3915 = vadd.f32 0.0, %v3914
        %v3916 = vpop.f32.mrf.mxu0
        %v3917 = vadd.f32 0.0, %v3916
        %3918 = vmatmul.bf16.gmra.mxu0 %v3839
        %v3919 = vpop.f32.mrf.mxu0
        %v3920 = vadd.f32 0.0, %v3919
        %v3921 = vpop.f32.mrf.mxu0
        %v3922 = vadd.f32 0.0, %v3921
        %3923 = vmatmul.bf16.gmra.mxu0 %v3842
        %v3924 = vpop.f32.mrf.mxu0
        %v3925 = vadd.f32 0.0, %v3924
        %v3926 = vpop.f32.mrf.mxu0
        %v3927 = vadd.f32 0.0, %v3926
        %3928 = vmatmul.bf16.gmra.mxu0 %v3845
        %v3929 = vpop.f32.mrf.mxu0
        %v3930 = vadd.f32 0.0, %v3929
        %v3931 = vpop.f32.mrf.mxu0
        %v3932 = vadd.f32 0.0, %v3931
        %3933 = vmatmul.bf16.gmra.mxu0 %v3848
        %v3934 = vpop.f32.mrf.mxu0
        %v3935 = vadd.f32 0.0, %v3934
        %v3936 = vpop.f32.mrf.mxu0
        %v3937 = vadd.f32 0.0, %v3936
        %3938 = vdwg.mxu0
        %v3939 = vadd.f32 %v3257, %v3860
        %v3940 = vadd.f32 %v3258, %v3862
        %v3941 = vadd.f32 %v3259, %v3865
        %v3942 = vadd.f32 %v3260, %v3867
        %v3943 = vadd.f32 %v3261, %v3870
        %v3944 = vadd.f32 %v3262, %v3872
        %v3945 = vadd.f32 %v3263, %v3875
        %v3946 = vadd.f32 %v3264, %v3877
        %v3947 = vadd.f32 %v3265, %v3880
        %v3948 = vadd.f32 %v3266, %v3882
        %v3949 = vadd.f32 %v3267, %v3885
        %v3950 = vadd.f32 %v3268, %v3887
        %v3951 = vadd.f32 %v3269, %v3890
        %v3952 = vadd.f32 %v3270, %v3892
        %v3953 = vadd.f32 %v3271, %v3895
        %v3954 = vadd.f32 %v3272, %v3897
        %v3955 = vadd.f32 %v3273, %v3900
        %v3956 = vadd.f32 %v3274, %v3902
        %v3957 = vadd.f32 %v3275, %v3905
        %v3958 = vadd.f32 %v3276, %v3907
        %v3959 = vadd.f32 %v3277, %v3910
        %v3960 = vadd.f32 %v3278, %v3912
        %v3961 = vadd.f32 %v3279, %v3915
        %v3962 = vadd.f32 %v3280, %v3917
        %v3963 = vadd.f32 %v3281, %v3920
        %v3964 = vadd.f32 %v3282, %v3922
        %v3965 = vadd.f32 %v3283, %v3925
        %v3966 = vadd.f32 %v3284, %v3927
        %v3967 = vadd.f32 %v3285, %v3930
        %v3968 = vadd.f32 %v3286, %v3932
        %v3969 = vadd.f32 %v3287, %v3935
        %v3970 = vadd.f32 %v3288, %v3937
        %v3971 = vld [vmem:[%s2974] sm:$0xe]
        %v3972 = vld [vmem:[%s2974 + $0xc] sm:$0xe]
        %v3973 = vld [vmem:[%s2974 + $0x18] sm:$0xe]
        %v3974 = vld [vmem:[%s2974 + $0x24] sm:$0xe]
        %v3975 = vld [vmem:[%s2974 + $0x30] sm:$0xe]
        %v3976 = vld [vmem:[%s2974 + $0x3c] sm:$0xe]
        %v3977 = vld [vmem:[%s2974 + $0x48] sm:$0xe]
        %v3978 = vld [vmem:[%s2974 + $0x54] sm:$0xe]
        %v3979 = vld [vmem:[%s2974 + $0x60] sm:$0xe]
        %v3980 = vld [vmem:[%s2974 + $0x6c] sm:$0xe]
        %v3981 = vld [vmem:[%s2974 + $0x78] sm:$0xe]
        %v3982 = vld [vmem:[%s2974 + $0x84] sm:$0xe]
        %v3983 = vld [vmem:[%s2974 + $0x90] sm:$0xe]
        %v3984 = vld [vmem:[%s2974 + $0x9c] sm:$0xe]
        %v3985 = vld [vmem:[%s2974 + $0xa8] sm:$0xe]
        %v3986 = vld [vmem:[%s2974 + $0xb4] sm:$0xe]
        %v4035 = vrot.slane %v3971, 5
        %v4036 = vrot.slane %v4035, 4
        %v4037 = vrot.slane %v3290, 5
        %v4038 = vsel %vm1182, %v4036, %v4037
        %v4039 = vrot.slane %v4037, 4
        %v4040 = vrot.slane %v3291, 5
        %v4041 = vsel %vm1182, %v4039, %v4040
        %v4042 = vrot.slane %v3972, 5
        %v4043 = vrot.slane %v4042, 4
        %v4044 = vrot.slane %v3293, 5
        %v4045 = vsel %vm1182, %v4043, %v4044
        %v4046 = vrot.slane %v4044, 4
        %v4047 = vrot.slane %v3294, 5
        %v4048 = vsel %vm1182, %v4046, %v4047
        %v4049 = vrot.slane %v3973, 5
        %v4050 = vrot.slane %v4049, 4
        %v4051 = vrot.slane %v3296, 5
        %v4052 = vsel %vm1182, %v4050, %v4051
        %v4053 = vrot.slane %v4051, 4
        %v4054 = vrot.slane %v3297, 5
        %v4055 = vsel %vm1182, %v4053, %v4054
        %v4056 = vrot.slane %v3974, 5
        %v4057 = vrot.slane %v4056, 4
        %v4058 = vrot.slane %v3299, 5
        %v4059 = vsel %vm1182, %v4057, %v4058
        %v4060 = vrot.slane %v4058, 4
        %v4061 = vrot.slane %v3300, 5
        %v4062 = vsel %vm1182, %v4060, %v4061
        %v4063 = vrot.slane %v3975, 5
        %v4064 = vrot.slane %v4063, 4
        %v4065 = vrot.slane %v3302, 5
        %v4066 = vsel %vm1182, %v4064, %v4065
        %v4067 = vrot.slane %v4065, 4
        %v4068 = vrot.slane %v3303, 5
        %v4069 = vsel %vm1182, %v4067, %v4068
        %v4070 = vrot.slane %v3976, 5
        %v4071 = vrot.slane %v4070, 4
        %v4072 = vrot.slane %v3305, 5
        %v4073 = vsel %vm1182, %v4071, %v4072
        %v4074 = vrot.slane %v4072, 4
        %v4075 = vrot.slane %v3306, 5
        %v4076 = vsel %vm1182, %v4074, %v4075
        %v4077 = vrot.slane %v3977, 5
        %v4078 = vrot.slane %v4077, 4
        %v4079 = vrot.slane %v3308, 5
        %v4080 = vsel %vm1182, %v4078, %v4079
        %v4081 = vrot.slane %v4079, 4
        %v4082 = vrot.slane %v3309, 5
        %v4083 = vsel %vm1182, %v4081, %v4082
        %v4084 = vrot.slane %v3978, 5
        %v4085 = vrot.slane %v4084, 4
        %v4086 = vrot.slane %v3311, 5
        %v4087 = vsel %vm1182, %v4085, %v4086
        %v4088 = vrot.slane %v4086, 4
        %v4089 = vrot.slane %v3312, 5
        %v4090 = vsel %vm1182, %v4088, %v4089
        %v4091 = vrot.slane %v3979, 5
        %v4092 = vrot.slane %v4091, 4
        %v4093 = vrot.slane %v3314, 5
        %v4094 = vsel %vm1182, %v4092, %v4093
        %v4095 = vrot.slane %v4093, 4
        %v4096 = vrot.slane %v3315, 5
        %v4097 = vsel %vm1182, %v4095, %v4096
        %v4098 = vrot.slane %v3980, 5
        %v4099 = vrot.slane %v4098, 4
        %v4100 = vrot.slane %v3317, 5
        %v4101 = vsel %vm1182, %v4099, %v4100
        %v4102 = vrot.slane %v4100, 4
        %v4103 = vrot.slane %v3318, 5
        %v4104 = vsel %vm1182, %v4102, %v4103
        %v4105 = vrot.slane %v3981, 5
        %v4106 = vrot.slane %v4105, 4
        %v4107 = vrot.slane %v3320, 5
        %v4108 = vsel %vm1182, %v4106, %v4107
        %v4109 = vrot.slane %v4107, 4
        %v4110 = vrot.slane %v3321, 5
        %v4111 = vsel %vm1182, %v4109, %v4110
        %v4112 = vrot.slane %v3982, 5
        %v4113 = vrot.slane %v4112, 4
        %v4114 = vrot.slane %v3323, 5
        %v4115 = vsel %vm1182, %v4113, %v4114
        %v4116 = vrot.slane %v4114, 4
        %v4117 = vrot.slane %v3324, 5
        %v4118 = vsel %vm1182, %v4116, %v4117
        %v4119 = vrot.slane %v3983, 5
        %v4120 = vrot.slane %v4119, 4
        %v4121 = vrot.slane %v3326, 5
        %v4122 = vsel %vm1182, %v4120, %v4121
        %v4123 = vrot.slane %v4121, 4
        %v4124 = vrot.slane %v3327, 5
        %v4125 = vsel %vm1182, %v4123, %v4124
        %v4126 = vrot.slane %v3984, 5
        %v4127 = vrot.slane %v4126, 4
        %v4128 = vrot.slane %v3329, 5
        %v4129 = vsel %vm1182, %v4127, %v4128
        %v4130 = vrot.slane %v4128, 4
        %v4131 = vrot.slane %v3330, 5
        %v4132 = vsel %vm1182, %v4130, %v4131
        %v4133 = vrot.slane %v3985, 5
        %v4134 = vrot.slane %v4133, 4
        %v4135 = vrot.slane %v3332, 5
        %v4136 = vsel %vm1182, %v4134, %v4135
        %v4137 = vrot.slane %v4135, 4
        %v4138 = vrot.slane %v3333, 5
        %v4139 = vsel %vm1182, %v4137, %v4138
        %v4140 = vrot.slane %v3986, 5
        %v4141 = vrot.slane %v4140, 4
        %v4142 = vrot.slane %v3335, 5
        %v4143 = vsel %vm1182, %v4141, %v4142
        %v4144 = vrot.slane %v4142, 4
        %v4145 = vrot.slane %v3336, 5
        %v4146 = vsel %vm1182, %v4144, %v4145
        %s4147 = scalar_lea.vmem %s219, 256
        %v4148 = vld [vmem:[%s4147] sm:$0xf]
        %v4149 = vld [vmem:[%s4147 + $0x4] sm:$0xf]
        %v4150 = vld [vmem:[%s4147 + $0x8] sm:$0xf]
        %v4151 = vld [vmem:[%s4147 + $0xc] sm:$0xf]
        %v4152 = vld [vmem:[%s4147 + $0x10] sm:$0xf]
        %v4153 = vld [vmem:[%s4147 + $0x14] sm:$0xf]
        %v4154 = vld [vmem:[%s4147 + $0x18] sm:$0xf]
        %v4155 = vld [vmem:[%s4147 + $0x1c] sm:$0xf]
        %v4156 = vunpack.c.l.b16 %v4038
        %v4157 = vunpack.c.l.b16 %v4041
        %v4158 = vunpack.c.l.b16 %v4045
        %v4159 = vunpack.c.l.b16 %v4048
        %v4160 = vunpack.c.l.b16 %v4052
        %v4161 = vunpack.c.l.b16 %v4055
        %v4162 = vunpack.c.l.b16 %v4059
        %v4163 = vunpack.c.l.b16 %v4062
        %v4164 = vunpack.c.l.b16 %v4066
        %v4165 = vunpack.c.l.b16 %v4069
        %v4166 = vunpack.c.l.b16 %v4073
        %v4167 = vunpack.c.l.b16 %v4076
        %v4168 = vunpack.c.l.b16 %v4080
        %v4169 = vunpack.c.l.b16 %v4083
        %v4170 = vunpack.c.l.b16 %v4087
        %v4171 = vunpack.c.l.b16 %v4090
        %v4172 = vunpack.c.l.b16 %v4094
        %v4173 = vunpack.c.l.b16 %v4097
        %v4174 = vunpack.c.l.b16 %v4101
        %v4175 = vunpack.c.l.b16 %v4104
        %v4176 = vunpack.c.l.b16 %v4108
        %v4177 = vunpack.c.l.b16 %v4111
        %v4178 = vunpack.c.l.b16 %v4115
        %v4179 = vunpack.c.l.b16 %v4118
        %v4180 = vunpack.c.l.b16 %v4122
        %v4181 = vunpack.c.l.b16 %v4125
        %v4182 = vunpack.c.l.b16 %v4129
        %v4183 = vunpack.c.l.b16 %v4132
        %v4184 = vunpack.c.l.b16 %v4136
        %v4185 = vunpack.c.l.b16 %v4139
        %v4186 = vunpack.c.l.b16 %v4143
        %v4187 = vunpack.c.l.b16 %v4146
        %v4188 = vpack.c.b16 %v4157, %v4156
        %v4189 = vpack.c.b16 %v4159, %v4158
        %v4190 = vpack.c.b16 %v4161, %v4160
        %v4191 = vpack.c.b16 %v4163, %v4162
        %v4192 = vpack.c.b16 %v4165, %v4164
        %v4193 = vpack.c.b16 %v4167, %v4166
        %v4194 = vpack.c.b16 %v4169, %v4168
        %v4195 = vpack.c.b16 %v4171, %v4170
        %v4196 = vpack.c.b16 %v4173, %v4172
        %v4197 = vpack.c.b16 %v4175, %v4174
        %v4198 = vpack.c.b16 %v4177, %v4176
        %v4199 = vpack.c.b16 %v4179, %v4178
        %v4200 = vpack.c.b16 %v4181, %v4180
        %v4201 = vpack.c.b16 %v4183, %v4182
        %v4202 = vpack.c.b16 %v4185, %v4184
        %v4203 = vpack.c.b16 %v4187, %v4186
        %v4212 = vunpack.c.l.b16 %v4148
        %v4213 = vunpack.c.l.b16 %v4149
        %v4214 = vunpack.c.l.b16 %v4150
        %v4215 = vunpack.c.l.b16 %v4151
        %v4216 = vunpack.c.l.b16 %v4152
        %v4217 = vunpack.c.l.b16 %v4153
        %v4218 = vunpack.c.l.b16 %v4154
        %v4219 = vunpack.c.l.b16 %v4155
        %v4220 = vpack.c.b16 %v4213, %v4212
        %v4221 = vpack.c.b16 %v4215, %v4214
        %v4222 = vpack.c.b16 %v4217, %v4216
        %v4223 = vpack.c.b16 %v4219, %v4218
        %v4229 = vsel %vm753, %v4188, 0
        %v4232 = vsel %vm753, %v4189, 0
        %v4235 = vsel %vm753, %v4190, 0
        %v4238 = vsel %vm753, %v4191, 0
        %v4241 = vsel %vm753, %v4192, 0
        %v4244 = vsel %vm753, %v4193, 0
        %v4247 = vsel %vm753, %v4194, 0
        %v4250 = vsel %vm753, %v4195, 0
        %v4253 = vsel %vm753, %v4196, 0
        %v4256 = vsel %vm753, %v4197, 0
        %v4259 = vsel %vm753, %v4198, 0
        %v4262 = vsel %vm753, %v4199, 0
        %v4265 = vsel %vm753, %v4200, 0
        %v4268 = vsel %vm753, %v4201, 0
        %v4271 = vsel %vm753, %v4202, 0
        %v4274 = vsel %vm753, %v4203, 0
        %4276 = vmatpush.bf16.msra.mxu0 0
        %4277 = vmatpush.bf16.msra.mxu0 0
        %4278 = vmatpush.bf16.msra.mxu0 0
        %4279 = vmatpush.bf16.msra.mxu0 0
        %4280 = vmatpush.bf16.msra.mxu0 %v4223
        %4281 = vmatpush.bf16.msra.mxu0 %v4222
        %4282 = vmatpush.bf16.msra.mxu0 %v4221
        %4283 = vmatpush.bf16.msra.mxu0 %v4220
        %4284 = vmatmul.bf16.gmra.mxu0 %v4229
        %v4285 = vpop.f32.mrf.mxu0
        %v4286 = vadd.f32 0.0, %v4285
        %v4287 = vpop.f32.mrf.mxu0
        %v4288 = vadd.f32 0.0, %v4287
        %4289 = vmatmul.bf16.gmra.mxu0 %v4232
        %v4290 = vpop.f32.mrf.mxu0
        %v4291 = vadd.f32 0.0, %v4290
        %v4292 = vpop.f32.mrf.mxu0
        %v4293 = vadd.f32 0.0, %v4292
        %4294 = vmatmul.bf16.gmra.mxu0 %v4235
        %v4295 = vpop.f32.mrf.mxu0
        %v4296 = vadd.f32 0.0, %v4295
        %v4297 = vpop.f32.mrf.mxu0
        %v4298 = vadd.f32 0.0, %v4297
        %4299 = vmatmul.bf16.gmra.mxu0 %v4238
        %v4300 = vpop.f32.mrf.mxu0
        %v4301 = vadd.f32 0.0, %v4300
        %v4302 = vpop.f32.mrf.mxu0
        %v4303 = vadd.f32 0.0, %v4302
        %4304 = vmatmul.bf16.gmra.mxu0 %v4241
        %v4305 = vpop.f32.mrf.mxu0
        %v4306 = vadd.f32 0.0, %v4305
        %v4307 = vpop.f32.mrf.mxu0
        %v4308 = vadd.f32 0.0, %v4307
        %4309 = vmatmul.bf16.gmra.mxu0 %v4244
        %v4310 = vpop.f32.mrf.mxu0
        %v4311 = vadd.f32 0.0, %v4310
        %v4312 = vpop.f32.mrf.mxu0
        %v4313 = vadd.f32 0.0, %v4312
        %4314 = vmatmul.bf16.gmra.mxu0 %v4247
        %v4315 = vpop.f32.mrf.mxu0
        %v4316 = vadd.f32 0.0, %v4315
        %v4317 = vpop.f32.mrf.mxu0
        %v4318 = vadd.f32 0.0, %v4317
        %4319 = vmatmul.bf16.gmra.mxu0 %v4250
        %v4320 = vpop.f32.mrf.mxu0
        %v4321 = vadd.f32 0.0, %v4320
        %v4322 = vpop.f32.mrf.mxu0
        %v4323 = vadd.f32 0.0, %v4322
        %4324 = vmatmul.bf16.gmra.mxu0 %v4253
        %v4325 = vpop.f32.mrf.mxu0
        %v4326 = vadd.f32 0.0, %v4325
        %v4327 = vpop.f32.mrf.mxu0
        %v4328 = vadd.f32 0.0, %v4327
        %4329 = vmatmul.bf16.gmra.mxu0 %v4256
        %v4330 = vpop.f32.mrf.mxu0
        %v4331 = vadd.f32 0.0, %v4330
        %v4332 = vpop.f32.mrf.mxu0
        %v4333 = vadd.f32 0.0, %v4332
        %4334 = vmatmul.bf16.gmra.mxu0 %v4259
        %v4335 = vpop.f32.mrf.mxu0
        %v4336 = vadd.f32 0.0, %v4335
        %v4337 = vpop.f32.mrf.mxu0
        %v4338 = vadd.f32 0.0, %v4337
        %4339 = vmatmul.bf16.gmra.mxu0 %v4262
        %v4340 = vpop.f32.mrf.mxu0
        %v4341 = vadd.f32 0.0, %v4340
        %v4342 = vpop.f32.mrf.mxu0
        %v4343 = vadd.f32 0.0, %v4342
        %4344 = vmatmul.bf16.gmra.mxu0 %v4265
        %v4345 = vpop.f32.mrf.mxu0
        %v4346 = vadd.f32 0.0, %v4345
        %v4347 = vpop.f32.mrf.mxu0
        %v4348 = vadd.f32 0.0, %v4347
        %4349 = vmatmul.bf16.gmra.mxu0 %v4268
        %v4350 = vpop.f32.mrf.mxu0
        %v4351 = vadd.f32 0.0, %v4350
        %v4352 = vpop.f32.mrf.mxu0
        %v4353 = vadd.f32 0.0, %v4352
        %4354 = vmatmul.bf16.gmra.mxu0 %v4271
        %v4355 = vpop.f32.mrf.mxu0
        %v4356 = vadd.f32 0.0, %v4355
        %v4357 = vpop.f32.mrf.mxu0
        %v4358 = vadd.f32 0.0, %v4357
        %4359 = vmatmul.bf16.gmra.mxu0 %v4274
        %v4360 = vpop.f32.mrf.mxu0
        %v4361 = vadd.f32 0.0, %v4360
        %v4362 = vpop.f32.mrf.mxu0
        %v4363 = vadd.f32 0.0, %v4362
        %4364 = vdwg.mxu0
        %v4365 = vadd.f32 %v3939, %v4286
        %v4366 = vadd.f32 %v3940, %v4288
        %v4367 = vadd.f32 %v3941, %v4291
        %v4368 = vadd.f32 %v3942, %v4293
        %v4369 = vadd.f32 %v3943, %v4296
        %v4370 = vadd.f32 %v3944, %v4298
        %v4371 = vadd.f32 %v3945, %v4301
        %v4372 = vadd.f32 %v3946, %v4303
        %v4373 = vadd.f32 %v3947, %v4306
        %v4374 = vadd.f32 %v3948, %v4308
        %v4375 = vadd.f32 %v3949, %v4311
        %v4376 = vadd.f32 %v3950, %v4313
        %v4377 = vadd.f32 %v3951, %v4316
        %v4378 = vadd.f32 %v3952, %v4318
        %v4379 = vadd.f32 %v3953, %v4321
        %v4380 = vadd.f32 %v3954, %v4323
        %v4381 = vadd.f32 %v3955, %v4326
        %v4382 = vadd.f32 %v3956, %v4328
        %v4383 = vadd.f32 %v3957, %v4331
        %v4384 = vadd.f32 %v3958, %v4333
        %v4385 = vadd.f32 %v3959, %v4336
        %v4386 = vadd.f32 %v3960, %v4338
        %v4387 = vadd.f32 %v3961, %v4341
        %v4388 = vadd.f32 %v3962, %v4343
        %v4389 = vadd.f32 %v3963, %v4346
        %v4390 = vadd.f32 %v3964, %v4348
        %v4391 = vadd.f32 %v3965, %v4351
        %v4392 = vadd.f32 %v3966, %v4353
        %v4393 = vadd.f32 %v3967, %v4356
        %v4394 = vadd.f32 %v3968, %v4358
        %v4395 = vadd.f32 %v3969, %v4361
        %v4396 = vadd.f32 %v3970, %v4363
        %v4397 = vld [vmem:[%s222] sm:$0x1]
        %v4399 = vperm.slane %v4397, 0
        %v4401 = vadd.f32 %v4365, %v4399
        %v4402 = vadd.f32 %v4366, %v4399
        %v4403 = vadd.f32 %v4367, %v4399
        %v4404 = vadd.f32 %v4368, %v4399
        %v4405 = vadd.f32 %v4369, %v4399
        %v4406 = vadd.f32 %v4370, %v4399
        %v4407 = vadd.f32 %v4371, %v4399
        %v4408 = vadd.f32 %v4372, %v4399
        %v4409 = vadd.f32 %v4373, %v4399
        %v4410 = vadd.f32 %v4374, %v4399
        %v4411 = vadd.f32 %v4375, %v4399
        %v4412 = vadd.f32 %v4376, %v4399
        %v4413 = vadd.f32 %v4377, %v4399
        %v4414 = vadd.f32 %v4378, %v4399
        %v4415 = vadd.f32 %v4379, %v4399
        %v4416 = vadd.f32 %v4380, %v4399
        %v4417 = vadd.f32 %v4381, %v4399
        %v4418 = vadd.f32 %v4382, %v4399
        %v4419 = vadd.f32 %v4383, %v4399
        %v4420 = vadd.f32 %v4384, %v4399
        %v4421 = vadd.f32 %v4385, %v4399
        %v4422 = vadd.f32 %v4386, %v4399
        %v4423 = vadd.f32 %v4387, %v4399
        %v4424 = vadd.f32 %v4388, %v4399
        %v4425 = vadd.f32 %v4389, %v4399
        %v4426 = vadd.f32 %v4390, %v4399
        %v4427 = vadd.f32 %v4391, %v4399
        %v4428 = vadd.f32 %v4392, %v4399
        %v4429 = vadd.f32 %v4393, %v4399
        %v4430 = vadd.f32 %v4394, %v4399
        %v4431 = vadd.f32 %v4395, %v4399
        %v4432 = vadd.f32 %v4396, %v4399
        %v4433 = vmax.f32 %v4401, 0.0
        %v4434 = vmax.f32 %v4402, 0.0
        %v4435 = vmax.f32 %v4403, 0.0
        %v4436 = vmax.f32 %v4404, 0.0
        %v4437 = vmax.f32 %v4405, 0.0
        %v4438 = vmax.f32 %v4406, 0.0
        %v4439 = vmax.f32 %v4407, 0.0
        %v4440 = vmax.f32 %v4408, 0.0
        %v4441 = vmax.f32 %v4409, 0.0
        %v4442 = vmax.f32 %v4410, 0.0
        %v4443 = vmax.f32 %v4411, 0.0
        %v4444 = vmax.f32 %v4412, 0.0
        %v4445 = vmax.f32 %v4413, 0.0
        %v4446 = vmax.f32 %v4414, 0.0
        %v4447 = vmax.f32 %v4415, 0.0
        %v4448 = vmax.f32 %v4416, 0.0
        %v4449 = vmax.f32 %v4417, 0.0
        %v4450 = vmax.f32 %v4418, 0.0
        %v4451 = vmax.f32 %v4419, 0.0
        %v4452 = vmax.f32 %v4420, 0.0
        %v4453 = vmax.f32 %v4421, 0.0
        %v4454 = vmax.f32 %v4422, 0.0
        %v4455 = vmax.f32 %v4423, 0.0
        %v4456 = vmax.f32 %v4424, 0.0
        %v4457 = vmax.f32 %v4425, 0.0
        %v4458 = vmax.f32 %v4426, 0.0
        %v4459 = vmax.f32 %v4427, 0.0
        %v4460 = vmax.f32 %v4428, 0.0
        %v4461 = vmax.f32 %v4429, 0.0
        %v4462 = vmax.f32 %v4430, 0.0
        %v4463 = vmax.f32 %v4431, 0.0
        %v4464 = vmax.f32 %v4432, 0.0
        %v4465 = vpack.c.bf16 %v4433, %v4433
        %v4466 = vpack.c.bf16 %v4434, %v4434
        %v4467 = vpack.c.bf16 %v4435, %v4435
        %v4468 = vpack.c.bf16 %v4436, %v4436
        %v4469 = vpack.c.bf16 %v4437, %v4437
        %v4470 = vpack.c.bf16 %v4438, %v4438
        %v4471 = vpack.c.bf16 %v4439, %v4439
        %v4472 = vpack.c.bf16 %v4440, %v4440
        %v4473 = vpack.c.bf16 %v4441, %v4441
        %v4474 = vpack.c.bf16 %v4442, %v4442
        %v4475 = vpack.c.bf16 %v4443, %v4443
        %v4476 = vpack.c.bf16 %v4444, %v4444
        %v4477 = vpack.c.bf16 %v4445, %v4445
        %v4478 = vpack.c.bf16 %v4446, %v4446
        %v4479 = vpack.c.bf16 %v4447, %v4447
        %v4480 = vpack.c.bf16 %v4448, %v4448
        %v4481 = vpack.c.bf16 %v4449, %v4449
        %v4482 = vpack.c.bf16 %v4450, %v4450
        %v4483 = vpack.c.bf16 %v4451, %v4451
        %v4484 = vpack.c.bf16 %v4452, %v4452
        %v4485 = vpack.c.bf16 %v4453, %v4453
        %v4486 = vpack.c.bf16 %v4454, %v4454
        %v4487 = vpack.c.bf16 %v4455, %v4455
        %v4488 = vpack.c.bf16 %v4456, %v4456
        %v4489 = vpack.c.bf16 %v4457, %v4457
        %v4490 = vpack.c.bf16 %v4458, %v4458
        %v4491 = vpack.c.bf16 %v4459, %v4459
        %v4492 = vpack.c.bf16 %v4460, %v4460
        %v4493 = vpack.c.bf16 %v4461, %v4461
        %v4494 = vpack.c.bf16 %v4462, %v4462
        %v4495 = vpack.c.bf16 %v4463, %v4463
        %v4496 = vpack.c.bf16 %v4464, %v4464
        %vm4497 = vcmask 519168
        %4498 = vst.msk [vmem:[%s210] sm:$0xf] %vm4497, %v4465
        %4499 = vst.msk [vmem:[%s210 + $0x4] sm:$0xf] %vm4497, %v4466
        %4500 = vst.msk [vmem:[%s210 + $0x8] sm:$0xf] %vm4497, %v4467
        %4501 = vst.msk [vmem:[%s210 + $0xc] sm:$0xf] %vm4497, %v4468
        %4502 = vst.msk [vmem:[%s210 + $0x10] sm:$0xf] %vm4497, %v4469
        %4503 = vst.msk [vmem:[%s210 + $0x14] sm:$0xf] %vm4497, %v4470
        %4504 = vst.msk [vmem:[%s210 + $0x18] sm:$0xf] %vm4497, %v4471
        %4505 = vst.msk [vmem:[%s210 + $0x1c] sm:$0xf] %vm4497, %v4472
        %4506 = vst.msk [vmem:[%s210 + $0x20] sm:$0xf] %vm4497, %v4473
        %4507 = vst.msk [vmem:[%s210 + $0x24] sm:$0xf] %vm4497, %v4474
        %4508 = vst.msk [vmem:[%s210 + $0x28] sm:$0xf] %vm4497, %v4475
        %4509 = vst.msk [vmem:[%s210 + $0x2c] sm:$0xf] %vm4497, %v4476
        %4510 = vst.msk [vmem:[%s210 + $0x30] sm:$0xf] %vm4497, %v4477
        %4511 = vst.msk [vmem:[%s210 + $0x34] sm:$0xf] %vm4497, %v4478
        %4512 = vst.msk [vmem:[%s210 + $0x38] sm:$0xf] %vm4497, %v4479
        %4513 = vst.msk [vmem:[%s210 + $0x3c] sm:$0xf] %vm4497, %v4480
        %4514 = vst.msk [vmem:[%s210 + $0x40] sm:$0xf] %vm4497, %v4481
        %4515 = vst.msk [vmem:[%s210 + $0x44] sm:$0xf] %vm4497, %v4482
        %4516 = vst.msk [vmem:[%s210 + $0x48] sm:$0xf] %vm4497, %v4483
        %4517 = vst.msk [vmem:[%s210 + $0x4c] sm:$0xf] %vm4497, %v4484
        %4518 = vst.msk [vmem:[%s210 + $0x50] sm:$0xf] %vm4497, %v4485
        %4519 = vst.msk [vmem:[%s210 + $0x54] sm:$0xf] %vm4497, %v4486
        %4520 = vst.msk [vmem:[%s210 + $0x58] sm:$0xf] %vm4497, %v4487
        %4521 = vst.msk [vmem:[%s210 + $0x5c] sm:$0xf] %vm4497, %v4488
        %4522 = vst.msk [vmem:[%s210 + $0x60] sm:$0xf] %vm4497, %v4489
        %4523 = vst.msk [vmem:[%s210 + $0x64] sm:$0xf] %vm4497, %v4490
        %4524 = vst.msk [vmem:[%s210 + $0x68] sm:$0xf] %vm4497, %v4491
        %4525 = vst.msk [vmem:[%s210 + $0x6c] sm:$0xf] %vm4497, %v4492
        %4526 = vst.msk [vmem:[%s210 + $0x70] sm:$0xf] %vm4497, %v4493
        %4527 = vst.msk [vmem:[%s210 + $0x74] sm:$0xf] %vm4497, %v4494
        %4528 = vst.msk [vmem:[%s210 + $0x78] sm:$0xf] %vm4497, %v4495
        %4529 = vst.msk [vmem:[%s210 + $0x7c] sm:$0xf] %vm4497, %v4496
        %s4530 = sand.u32 %s126, 1
        %s4531 = scalar_lea.sflag [#allocation3], %s4530
        %s4532 = sand.u32 %s126, 1
        %s4533 = smul.addr %s4532, 128
        %s4534 = scalar_lea.vmem [#allocation2], %s4533
        // Predicated region
        $region33: #{tpu_custom_call.1} parent=31 // pred_check
          %p4535 = pneg %p136
        $region34: #{tpu_custom_call.1} parent=31 // pred_check_branch
          %4537 = sbr.rel (%p4535) target = $region36
        $region35: #{tpu_custom_call.1} parent=31 // pred_region
          %s4538 = smul.u32 16, %s24
          %4540 = vsyncadd %s4531, 0
          %s4541 = smul.addr %s4538, 2
          %s4542 = sadd.s32 %s23, %s4541
          %s4543 = smul.addr %s22, 32
          %s4544 = sadd.s32 %s4542, %s4543
          %s4545 = smul.addr %s4544, 4
          %s4546 = scalar_lea.hbm %s3, %s4545
          %s4547 = sshll.u32 %s4534, 4
          %s4548 = int_to_ptr.vmem [resolvable:$true] %s4547
          %s4549 = sshll.u32 %s4546, 4
          %s4550 = int_to_ptr.hbm [resolvable:$true] %s4549
          %4555 = dma.vmem_to_hbm [thread:$0]  %s4548, 2048, %s4550, %s4531, 64, 64, 4
        $region36: #{tpu_custom_call.1} parent=31 // pred_fallthru
          _
      $region32: #{tpu_custom_call.1} parent=5 // pred_fallthru
        _
      %p4556 = scmp.le.s32.totalorder 2, %s12
      // Predicated region
      $region37: #{tpu_custom_call.1} parent=5 // pred_check
        %p4557 = pneg %p4556
      $region38: #{tpu_custom_call.1} parent=5 // pred_check_branch
        %4559 = sbr.rel (%p4557) target = $region40
      $region39: #{tpu_custom_call.1} parent=5 // pred_region
        %s4560 = ssub.s32 %s12, 2
        // Predicated region
        $region41: #{tpu_custom_call.1} parent=39 // pred_check
          %p4561 = pneg %p142
        $region42: #{tpu_custom_call.1} parent=39 // pred_check_branch
          %4563 = sbr.rel (%p4561) target = $region44
        $region43: #{tpu_custom_call.1} parent=39 // pred_region
          %s4564 = sand.u32 %s127, 1
          %s4565 = scalar_lea.sflag [#allocation3], %s4564
          %s4566 = sand.u32 %s127, 1
          %s4567 = smul.addr %s4566, 128
          %s4568 = scalar_lea.vmem [#allocation2], %s4567
          %4570 = dma.done %s4565, 2048
        $region44: #{tpu_custom_call.1} parent=39 // pred_fallthru
          _
      $region40: #{tpu_custom_call.1} parent=5 // pred_fallthru
        _
    $region6: #{tpu_custom_call.1} parent=1 // loop_footer
      %s16 = sadd.s32 1, %s12
    $region7: #{tpu_custom_call.1} parent=1 // loop_footer_branch
      %11 = sbr.rel target = $region3
    $region8: #{tpu_custom_call.1} parent=1 // loop_exit
      _
    %4571 = vsyncpa [#allocation3], 1
    %s4572 = scalar_lea.sflag [#allocation3], 1
    %4573 = vsyncpa %s4572, 1

</llo_original>
